<compile_context>
chip_gen: v6e
topology: v6e:2x2x1
jax: 0.10.0
libtpu: 0.0.40
codegen_flags: <defaults>
</compile_context>

<pallas_src>
import functools

import jax
import jax.numpy as jnp
from jax import lax
from jax.experimental import pallas as pl
from jax.experimental.pallas import tpu as pltpu

IN_DIM = 39
HID = 128


def _round_up(x, m):
    return ((x + m - 1) // m) * m


# --------------------------------------------------------------------------
# Pass 1: layer-1 input projection, parallel over time chunks (no recurrence)
# --------------------------------------------------------------------------
def _proj_kernel(x_ref, w_ref, b_ref, out_ref):
    # x_ref: (Tc*Bp, IN_DIM), w_ref: (IN_DIM, 3H), b_ref: (1, 3H)
    out_ref[...] = (
        jnp.dot(x_ref[...], w_ref[...], preferred_element_type=jnp.float32)
        + b_ref[...]
    )


# --------------------------------------------------------------------------
# Pass 2: the two-layer GRU recurrence, time-chunked, sequential grid axis
# --------------------------------------------------------------------------
def _recurrent_kernel(gi1_ref, whh1_ref, bhh1n_ref, wih2_ref, whh2_ref,
                      b2_ref, bhh2n_ref, h2_out_ref, h1_sc, h2_sc,
                      *, seq_len, seq_len_padded):
    c = pl.program_id(0)
    tc = gi1_ref.shape[0]          # time steps per chunk
    bp = h1_sc.shape[0]            # padded batch
    hid = h1_sc.shape[1]

    @pl.when(c == 0)
    def _():
        h1_sc[...] = jnp.zeros_like(h1_sc)
        h2_sc[...] = jnp.zeros_like(h2_sc)

    # Hoist weight loads and bias broadcasts out of the per-step loop.
    whh1 = whh1_ref[...]                                   # (H, 3H)
    wih2 = wih2_ref[...]                                   # (H, 3H)
    whh2 = whh2_ref[...]                                   # (H, 3H)
    bhh1_n = jnp.broadcast_to(bhh1n_ref[...], (bp, hid))   # (Bp, H)
    bhh2_n = jnp.broadcast_to(bhh2n_ref[...], (bp, hid))   # (Bp, H)
    b2 = jnp.broadcast_to(b2_ref[...], (bp, 3 * hid))      # (Bp, 3H)

    def step(i, carry):
        h1, h2 = carry
        # gi1 already contains b_ih1 (+ b_hh1 merged for the r,z gates).
        gi1 = gi1_ref[i]                                               # (Bp, 3H)

        # ---- GRU layer 1 (only the h-dependent matmul is serial) ----
        gh1 = jnp.dot(h1, whh1, preferred_element_type=jnp.float32)    # (Bp, 3H)
        r1 = jax.nn.sigmoid(gi1[:, 0:hid] + gh1[:, 0:hid])
        z1 = jax.nn.sigmoid(gi1[:, hid:2 * hid] + gh1[:, hid:2 * hid])
        n1 = jnp.tanh(gi1[:, 2 * hid:] + r1 * (gh1[:, 2 * hid:] + bhh1_n))
        h1_new = (1.0 - z1) * n1 + z1 * h1

        # ---- GRU layer 2 (consumes layer-1 output at this step) ----
        gi2 = jnp.dot(h1_new, wih2, preferred_element_type=jnp.float32) + b2
        gh2 = jnp.dot(h2, whh2, preferred_element_type=jnp.float32)
        r2 = jax.nn.sigmoid(gi2[:, 0:hid] + gh2[:, 0:hid])
        z2 = jax.nn.sigmoid(gi2[:, hid:2 * hid] + gh2[:, hid:2 * hid])
        n2 = jnp.tanh(gi2[:, 2 * hid:] + r2 * (gh2[:, 2 * hid:] + bhh2_n))
        h2_new = (1.0 - z2) * n2 + z2 * h2

        if seq_len_padded != seq_len:
            # Padded tail time steps must not advance the state.
            valid = (c * tc + i) < seq_len
            h1_new = jnp.where(valid, h1_new, h1)
            h2_new = jnp.where(valid, h2_new, h2)
        return (h1_new, h2_new)

    h1_fin, h2_fin = lax.fori_loop(
        0, tc, step, (h1_sc[...], h2_sc[...]), unroll=True)

    # One store per state per chunk (not per step).
    h1_sc[...] = h1_fin
    h2_sc[...] = h2_fin

    @pl.when(c == pl.num_programs(0) - 1)
    def _():
        h2_out_ref[...] = h2_fin


# --------------------------------------------------------------------------
# Wrapper
# --------------------------------------------------------------------------
@jax.jit
def encoder_forward(x, params):
    """x: (B, T, IN_DIM) float32 (batch_first, like PyTorch).
    Returns h2: (1, B, HID) — final hidden state of GRU2."""
    B, T, _ = x.shape
    (wih1, whh1, bih1, bhh1, wih2, whh2, bih2, bhh2) = params

    # Pad batch to a sublane multiple and pick a time chunk size.
    b_pad = _round_up(max(B, 8), 8)
    tc = min(T, 32)                      # unrolled in-kernel; keep code size sane
    n_chunks = -(-T // tc)
    t_pad = n_chunks * tc

    # Time-major, padded, and flattened for the projection GEMM.
    x_tm = jnp.transpose(x, (1, 0, 2))                                # (T, B, D)
    x_tm = jnp.pad(x_tm, ((0, t_pad - T), (0, b_pad - B), (0, 0)))    # (Tp, Bp, D)
    x_flat = x_tm.reshape(t_pad * b_pad, IN_DIM)

    # Transpose weights so the kernels compute x @ W on the MXU.
    wih1_t = wih1.T          # (IN_DIM, 3H)
    whh1_t = whh1.T          # (HID, 3H)
    wih2_t = wih2.T          # (HID, 3H)
    whh2_t = whh2.T          # (HID, 3H)

    # Merge r/z biases (b_ih + b_hh added once); keep b_hh_n separate since
    # PyTorch applies it inside r * (W_hn h + b_hn).
    zero_h = jnp.zeros((HID,), jnp.float32)
    b1_merged = (bih1 + jnp.concatenate([bhh1[:2 * HID], zero_h]))[None, :]
    b2_merged = (bih2 + jnp.concatenate([bhh2[:2 * HID], zero_h]))[None, :]
    bhh1_n = bhh1[2 * HID:][None, :]
    bhh2_n = bhh2[2 * HID:][None, :]

    rows = tc * b_pad   # rows of x handled per projection grid step

    # ---- Pass 1: gi1 = x @ W_ih1^T + merged bias, fully parallel ----
    gi1_flat = pl.pallas_call(
        _proj_kernel,
        out_shape=jax.ShapeDtypeStruct((t_pad * b_pad, 3 * HID), jnp.float32),
        grid_spec=pltpu.PrefetchScalarGridSpec(
            num_scalar_prefetch=0,
            grid=(n_chunks,),
            in_specs=[
                pl.BlockSpec((rows, IN_DIM), lambda c: (c, 0)),
                pl.BlockSpec((IN_DIM, 3 * HID), lambda c: (0, 0)),
                pl.BlockSpec((1, 3 * HID), lambda c: (0, 0)),
            ],
            out_specs=pl.BlockSpec((rows, 3 * HID), lambda c: (c, 0)),
        ),
        compiler_params=pltpu.CompilerParams(
            dimension_semantics=("parallel",)),
    )(x_flat, wih1_t, b1_merged)
    gi1 = gi1_flat.reshape(t_pad, b_pad, 3 * HID)

    # ---- Pass 2: the serial recurrence over time chunks ----
    rec_kernel = functools.partial(
        _recurrent_kernel, seq_len=T, seq_len_padded=t_pad)

    h2 = pl.pallas_call(
        rec_kernel,
        out_shape=jax.ShapeDtypeStruct((b_pad, HID), jnp.float32),
        grid_spec=pltpu.PrefetchScalarGridSpec(
            num_scalar_prefetch=0,
            grid=(n_chunks,),
            in_specs=[
                pl.BlockSpec((tc, b_pad, 3 * HID), lambda c: (c, 0, 0)),  # gi1 chunk
                pl.BlockSpec((HID, 3 * HID), lambda c: (0, 0)),           # whh1_t
                pl.BlockSpec((1, HID), lambda c: (0, 0)),                 # bhh1_n
                pl.BlockSpec((HID, 3 * HID), lambda c: (0, 0)),           # wih2_t
                pl.BlockSpec((HID, 3 * HID), lambda c: (0, 0)),           # whh2_t
                pl.BlockSpec((1, 3 * HID), lambda c: (0, 0)),             # b2_merged
                pl.BlockSpec((1, HID), lambda c: (0, 0)),                 # bhh2_n
            ],
            out_specs=pl.BlockSpec((b_pad, HID), lambda c: (0, 0)),       # resident
            scratch_shapes=[
                pltpu.VMEM((b_pad, HID), jnp.float32),  # h1 state
                pltpu.VMEM((b_pad, HID), jnp.float32),  # h2 state
            ],
        ),
        compiler_params=pltpu.CompilerParams(
            dimension_semantics=("arbitrary",)),  # recurrence -> sequential
    )(gi1, whh1_t, bhh1_n, wih2_t, whh2_t, b2_merged, bhh2_n)

    return h2[None, :B, :]   # (1, B, HID), strip batch padding


# --------------------------------------------------------------------------
# Parameters + pure-JAX reference (PyTorch nn.GRU semantics)
# --------------------------------------------------------------------------
def init_params(key):
    """Deterministic GRU parameters, PyTorch shapes, uniform(-1/sqrt(H), 1/sqrt(H))."""
    k = 1.0 / jnp.sqrt(jnp.float32(HID))
    keys = jax.random.split(key, 8)
    u = lambda kk, shape: jax.random.uniform(kk, shape, jnp.float32, -k, k)
    wih1 = u(keys[0], (3 * HID, IN_DIM))
    whh1 = u(keys[1], (3 * HID, HID))
    bih1 = u(keys[2], (3 * HID,))
    bhh1 = u(keys[3], (3 * HID,))
    wih2 = u(keys[4], (3 * HID, HID))
    whh2 = u(keys[5], (3 * HID, HID))
    bih2 = u(keys[6], (3 * HID,))
    bhh2 = u(keys[7], (3 * HID,))
    return (wih1, whh1, bih1, bhh1, wih2, whh2, bih2, bhh2)


def _gru_cell_ref(x_t, h_prev, w_ih_t, w_hh_t, b_ih, b_hh):
    gi = jnp.dot(x_t, w_ih_t, preferred_element_type=jnp.float32) + b_ih
    gh = jnp.dot(h_prev, w_hh_t, preferred_element_type=jnp.float32) + b_hh
    H = h_prev.shape[-1]
    r = jax.nn.sigmoid(gi[:, 0:H] + gh[:, 0:H])
    z = jax.nn.sigmoid(gi[:, H:2 * H] + gh[:, H:2 * H])
    n = jnp.tanh(gi[:, 2 * H:] + r * gh[:, 2 * H:])
    return (1.0 - z) * n + z * h_prev


def encoder_reference(x, params):
    """Pure-JAX reference (lax.scan) mirroring torch.nn.GRU semantics."""
    (wih1, whh1, bih1, bhh1, wih2, whh2, bih2, bhh2) = params
    B, T, _ = x.shape
    x_tm = jnp.transpose(x, (1, 0, 2))

    def make_step(wih, whh, bih, bhh):
        wih_t, whh_t = wih.T, whh.T
        bih2d, bhh2d = bih[None, :], bhh[None, :]

        def step(h, x_t):
            h_new = _gru_cell_ref(x_t, h, wih_t, whh_t, bih2d, bhh2d)
            return h_new, h_new
        return step

    h0 = jnp.zeros((B, HID), jnp.float32)
    _, y1 = jax.lax.scan(make_step(wih1, whh1, bih1, bhh1), h0, x_tm)
    h2_final, _ = jax.lax.scan(make_step(wih2, whh2, bih2, bhh2), h0, y1)
    return h2_final[None, :, :]  # (1, B, HID)


if __name__ == "__main__":
    key = jax.random.PRNGKey(0)
    kx, kp = jax.random.split(key)

    B, T = 2, 8
    x = jax.random.normal(kx, (B, T, IN_DIM), dtype=jnp.float32)
    params = init_params(kp)

    h2 = encoder_forward(x, params)
    jax.block_until_ready(h2)

    h2_ref = encoder_reference(x, params)
    assert h2.shape == (1, B, HID)
    assert jnp.allclose(h2, h2_ref, atol=1e-4, rtol=1e-4), "mismatch vs JAX reference"

    print("KERNEL_OK")
</pallas_src>

<mosaic_0001>
module attributes {stable_mosaic.version = 11 : i64} {
  func.func @_proj_kernel(%arg0: i32, %arg1: memref<64x39xf32, #tpu.memory_space<vmem>>, %arg2: memref<39x384xf32, #tpu.memory_space<vmem>>, %arg3: memref<1x384xf32, #tpu.memory_space<vmem>>, %arg4: memref<64x384xf32, #tpu.memory_space<vmem>>) attributes {dimension_semantics = [#tpu.dimension_semantics<parallel>], iteration_bounds = array<i64: 1>, scalar_prefetch = 0 : i64, scratch_operands = 0 : i64, tpu.core_type = #tpu.core_type<tc>, window_params = [{transform_indices = @transform_0, window_bounds = array<i64: 64, 39>}, {pipeline_mode = #tpu.pipeline_mode<synchronous>, transform_indices = @transform_1, window_bounds = array<i64: 39, 384>}, {pipeline_mode = #tpu.pipeline_mode<synchronous>, transform_indices = @transform_2, window_bounds = array<i64: 1, 384>}, {transform_indices = @transform_3, window_bounds = array<i64: 64, 384>}]} {
    %c0 = arith.constant 0 : index
    %c0_0 = arith.constant 0 : index
    %0 = vector.load %arg1[%c0, %c0_0] : memref<64x39xf32, #tpu.memory_space<vmem>>, vector<64x39xf32>
    %c0_1 = arith.constant 0 : index
    %c0_2 = arith.constant 0 : index
    %1 = vector.load %arg2[%c0_1, %c0_2] : memref<39x384xf32, #tpu.memory_space<vmem>>, vector<39x384xf32>
    %cst = arith.constant dense<0.000000e+00> : vector<64x384xf32>
    %2 = tpu.matmul %0, %1, %cst {dimension_numbers = #tpu.dot_dimension_numbers<[1], [0], [0], [1], [0, 0, 1, 1], [], []>} : vector<64x39xf32>, vector<39x384xf32>, vector<64x384xf32> -> vector<64x384xf32>
    %c0_3 = arith.constant 0 : index
    %c0_4 = arith.constant 0 : index
    %3 = vector.load %arg3[%c0_3, %c0_4] : memref<1x384xf32, #tpu.memory_space<vmem>>, vector<1x384xf32>
    %4 = vector.broadcast %3 : vector<1x384xf32> to vector<64x384xf32>
    %5 = arith.addf %2, %4 : vector<64x384xf32>
    %c0_5 = arith.constant 0 : index
    %c0_6 = arith.constant 0 : index
    %6 = vector.load %arg4[%c0_5, %c0_6] : memref<64x384xf32, #tpu.memory_space<vmem>>, vector<64x384xf32>
    tpu.vector_store %arg4[%c0_5, %c0_6], %5 {strides = array<i32>} : memref<64x384xf32, #tpu.memory_space<vmem>>, vector<64x384xf32>,
    return
  }
  func.func @transform_0(%arg0: i32) -> (i32, i32) {
    %c0_i32 = arith.constant 0 : i32
    %c0_i32_0 = arith.constant 0 : i32
    return %arg0, %c0_i32 : i32, i32
  }
  func.func @transform_1(%arg0: i32) -> (i32, i32) {
    %c0_i32 = arith.constant 0 : i32
    %c0_i32_0 = arith.constant 0 : i32
    %c0_i32_1 = arith.constant 0 : i32
    return %c0_i32, %c0_i32_0 : i32, i32
  }
  func.func @transform_2(%arg0: i32) -> (i32, i32) {
    %c0_i32 = arith.constant 0 : i32
    %c0_i32_0 = arith.constant 0 : i32
    %c0_i32_1 = arith.constant 0 : i32
    return %c0_i32, %c0_i32_0 : i32, i32
  }
  func.func @transform_3(%arg0: i32) -> (i32, i32) {
    %c0_i32 = arith.constant 0 : i32
    %c0_i32_0 = arith.constant 0 : i32
    return %arg0, %c0_i32 : i32, i32
  }
}

module attributes {stable_mosaic.version = 11 : i64} {
  func.func @_recurrent_kernel(%arg0: i32, %arg1: memref<8x8x384xf32, #tpu.memory_space<vmem>>, %arg2: memref<128x384xf32, #tpu.memory_space<vmem>>, %arg3: memref<1x128xf32, #tpu.memory_space<vmem>>, %arg4: memref<128x384xf32, #tpu.memory_space<vmem>>, %arg5: memref<128x384xf32, #tpu.memory_space<vmem>>, %arg6: memref<1x384xf32, #tpu.memory_space<vmem>>, %arg7: memref<1x128xf32, #tpu.memory_space<vmem>>, %arg8: memref<8x128xf32, #tpu.memory_space<vmem>>, %arg9: memref<8x128xf32, #tpu.memory_space<vmem>>, %arg10: memref<8x128xf32, #tpu.memory_space<vmem>>) attributes {dimension_semantics = [#tpu.dimension_semantics<arbitrary>], iteration_bounds = array<i64: 1>, scalar_prefetch = 0 : i64, scratch_operands = 2 : i64, tpu.core_type = #tpu.core_type<tc>, window_params = [{transform_indices = @transform_0, window_bounds = array<i64: 8, 8, 384>}, {pipeline_mode = #tpu.pipeline_mode<synchronous>, transform_indices = @transform_1, window_bounds = array<i64: 128, 384>}, {pipeline_mode = #tpu.pipeline_mode<synchronous>, transform_indices = @transform_2, window_bounds = array<i64: 1, 128>}, {pipeline_mode = #tpu.pipeline_mode<synchronous>, transform_indices = @transform_3, window_bounds = array<i64: 128, 384>}, {pipeline_mode = #tpu.pipeline_mode<synchronous>, transform_indices = @transform_4, window_bounds = array<i64: 128, 384>}, {pipeline_mode = #tpu.pipeline_mode<synchronous>, transform_indices = @transform_5, window_bounds = array<i64: 1, 384>}, {pipeline_mode = #tpu.pipeline_mode<synchronous>, transform_indices = @transform_6, window_bounds = array<i64: 1, 128>}, {pipeline_mode = #tpu.pipeline_mode<synchronous>, transform_indices = @transform_7, window_bounds = array<i64: 8, 128>}]} {
    %c0_i32 = arith.constant 0 : i32
    %0 = arith.cmpi eq, %arg0, %c0_i32 : i32
    %1 = arith.extui %0 : i1 to i32
    %c0_i32_0 = arith.constant 0 : i32
    %2 = arith.cmpi ne, %1, %c0_i32_0 : i32
    scf.if %2 {
      %cst_110 = arith.constant 0.000000e+00 : f32
      %510 = vector.broadcast %cst_110 : f32 to vector<8x128xf32>
      %c0_111 = arith.constant 0 : index
      %c0_112 = arith.constant 0 : index
      %511 = vector.load %arg9[%c0_111, %c0_112] : memref<8x128xf32, #tpu.memory_space<vmem>>, vector<8x128xf32>
      tpu.vector_store %arg9[%c0_111, %c0_112], %510 {strides = array<i32>} : memref<8x128xf32, #tpu.memory_space<vmem>>, vector<8x128xf32>,
      %cst_113 = arith.constant 0.000000e+00 : f32
      %512 = vector.broadcast %cst_113 : f32 to vector<8x128xf32>
      %c0_114 = arith.constant 0 : index
      %c0_115 = arith.constant 0 : index
      %513 = vector.load %arg10[%c0_114, %c0_115] : memref<8x128xf32, #tpu.memory_space<vmem>>, vector<8x128xf32>
      tpu.vector_store %arg10[%c0_114, %c0_115], %512 {strides = array<i32>} : memref<8x128xf32, #tpu.memory_space<vmem>>, vector<8x128xf32>,
    } else {
    }
    %c0 = arith.constant 0 : index
    %c0_1 = arith.constant 0 : index
    %3 = vector.load %arg2[%c0, %c0_1] : memref<128x384xf32, #tpu.memory_space<vmem>>, vector<128x384xf32>
    %c0_2 = arith.constant 0 : index
    %c0_3 = arith.constant 0 : index
    %4 = vector.load %arg4[%c0_2, %c0_3] : memref<128x384xf32, #tpu.memory_space<vmem>>, vector<128x384xf32>
    %c0_4 = arith.constant 0 : index
    %c0_5 = arith.constant 0 : index
    %5 = vector.load %arg5[%c0_4, %c0_5] : memref<128x384xf32, #tpu.memory_space<vmem>>, vector<128x384xf32>
    %c0_6 = arith.constant 0 : index
    %c0_7 = arith.constant 0 : index
    %6 = vector.load %arg3[%c0_6, %c0_7] : memref<1x128xf32, #tpu.memory_space<vmem>>, vector<1x128xf32>
    %7 = vector.shape_cast %6 : vector<1x128xf32> to vector<1x128xf32>
    %8 = vector.broadcast %7 : vector<1x128xf32> to vector<8x128xf32>
    %c0_8 = arith.constant 0 : index
    %c0_9 = arith.constant 0 : index
    %9 = vector.load %arg7[%c0_8, %c0_9] : memref<1x128xf32, #tpu.memory_space<vmem>>, vector<1x128xf32>
    %10 = vector.shape_cast %9 : vector<1x128xf32> to vector<1x128xf32>
    %11 = vector.broadcast %10 : vector<1x128xf32> to vector<8x128xf32>
    %c0_10 = arith.constant 0 : index
    %c0_11 = arith.constant 0 : index
    %12 = vector.load %arg6[%c0_10, %c0_11] : memref<1x384xf32, #tpu.memory_space<vmem>>, vector<1x384xf32>
    %13 = vector.shape_cast %12 : vector<1x384xf32> to vector<1x384xf32>
    %14 = vector.broadcast %13 : vector<1x384xf32> to vector<8x384xf32>
    %c0_12 = arith.constant 0 : index
    %c0_13 = arith.constant 0 : index
    %15 = vector.load %arg9[%c0_12, %c0_13] : memref<8x128xf32, #tpu.memory_space<vmem>>, vector<8x128xf32>
    %c0_14 = arith.constant 0 : index
    %c0_15 = arith.constant 0 : index
    %16 = vector.load %arg10[%c0_14, %c0_15] : memref<8x128xf32, #tpu.memory_space<vmem>>, vector<8x128xf32>
    %c0_i32_16 = arith.constant 0 : i32
    %17 = arith.index_cast %c0_i32_16 : i32 to index
    %c0_17 = arith.constant 0 : index
    %c0_18 = arith.constant 0 : index
    %18 = vector.load %arg1[%17, %c0_17, %c0_18] : memref<8x8x384xf32, #tpu.memory_space<vmem>>, vector<1x8x384xf32>
    %19 = vector.shape_cast %18 : vector<1x8x384xf32> to vector<8x384xf32>
    %cst = arith.constant dense<0.000000e+00> : vector<8x384xf32>
    %20 = tpu.matmul %15, %3, %cst {dimension_numbers = #tpu.dot_dimension_numbers<[1], [0], [0], [1], [0, 0, 1, 1], [], []>} : vector<8x128xf32>, vector<128x384xf32>, vector<8x384xf32> -> vector<8x384xf32>
    %21 = vector.extract_strided_slice %19 {offsets = [0, 0], sizes = [8, 128], strides = [1, 1]} : vector<8x384xf32> to vector<8x128xf32>
    %22 = vector.extract_strided_slice %20 {offsets = [0, 0], sizes = [8, 128], strides = [1, 1]} : vector<8x384xf32> to vector<8x128xf32>
    %23 = arith.addf %21, %22 : vector<8x128xf32>
    %24 = arith.negf %23 : vector<8x128xf32>
    %25 = math.exp %24 : vector<8x128xf32>
    %cst_19 = arith.constant 1.000000e+00 : f32
    %26 = vector.broadcast %cst_19 : f32 to vector<8x128xf32>
    %27 = arith.addf %26, %25 : vector<8x128xf32>
    %28 = arith.divf %26, %27 : vector<8x128xf32>
    %29 = vector.extract_strided_slice %19 {offsets = [0, 128], sizes = [8, 128], strides = [1, 1]} : vector<8x384xf32> to vector<8x128xf32>
    %30 = vector.extract_strided_slice %20 {offsets = [0, 128], sizes = [8, 128], strides = [1, 1]} : vector<8x384xf32> to vector<8x128xf32>
    %31 = arith.addf %29, %30 : vector<8x128xf32>
    %32 = arith.negf %31 : vector<8x128xf32>
    %33 = math.exp %32 : vector<8x128xf32>
    %cst_20 = arith.constant 1.000000e+00 : f32
    %34 = vector.broadcast %cst_20 : f32 to vector<8x128xf32>
    %35 = arith.addf %34, %33 : vector<8x128xf32>
    %36 = arith.divf %34, %35 : vector<8x128xf32>
    %37 = vector.extract_strided_slice %19 {offsets = [0, 256], sizes = [8, 128], strides = [1, 1]} : vector<8x384xf32> to vector<8x128xf32>
    %38 = vector.extract_strided_slice %20 {offsets = [0, 256], sizes = [8, 128], strides = [1, 1]} : vector<8x384xf32> to vector<8x128xf32>
    %39 = arith.addf %38, %8 : vector<8x128xf32>
    %40 = arith.mulf %28, %39 : vector<8x128xf32>
    %41 = arith.addf %37, %40 : vector<8x128xf32>
    %42 = math.tanh %41 : vector<8x128xf32>
    %cst_21 = arith.constant 1.000000e+00 : f32
    %43 = vector.broadcast %cst_21 : f32 to vector<8x128xf32>
    %44 = arith.subf %43, %36 : vector<8x128xf32>
    %45 = arith.mulf %44, %42 : vector<8x128xf32>
    %46 = arith.mulf %36, %15 : vector<8x128xf32>
    %47 = arith.addf %45, %46 : vector<8x128xf32>
    %cst_22 = arith.constant dense<0.000000e+00> : vector<8x384xf32>
    %48 = tpu.matmul %47, %4, %cst_22 {dimension_numbers = #tpu.dot_dimension_numbers<[1], [0], [0], [1], [0, 0, 1, 1], [], []>} : vector<8x128xf32>, vector<128x384xf32>, vector<8x384xf32> -> vector<8x384xf32>
    %49 = arith.addf %48, %14 : vector<8x384xf32>
    %cst_23 = arith.constant dense<0.000000e+00> : vector<8x384xf32>
    %50 = tpu.matmul %16, %5, %cst_23 {dimension_numbers = #tpu.dot_dimension_numbers<[1], [0], [0], [1], [0, 0, 1, 1], [], []>} : vector<8x128xf32>, vector<128x384xf32>, vector<8x384xf32> -> vector<8x384xf32>
    %51 = vector.extract_strided_slice %49 {offsets = [0, 0], sizes = [8, 128], strides = [1, 1]} : vector<8x384xf32> to vector<8x128xf32>
    %52 = vector.extract_strided_slice %50 {offsets = [0, 0], sizes = [8, 128], strides = [1, 1]} : vector<8x384xf32> to vector<8x128xf32>
    %53 = arith.addf %51, %52 : vector<8x128xf32>
    %54 = arith.negf %53 : vector<8x128xf32>
    %55 = math.exp %54 : vector<8x128xf32>
    %cst_24 = arith.constant 1.000000e+00 : f32
    %56 = vector.broadcast %cst_24 : f32 to vector<8x128xf32>
    %57 = arith.addf %56, %55 : vector<8x128xf32>
    %58 = arith.divf %56, %57 : vector<8x128xf32>
    %59 = vector.extract_strided_slice %49 {offsets = [0, 128], sizes = [8, 128], strides = [1, 1]} : vector<8x384xf32> to vector<8x128xf32>
    %60 = vector.extract_strided_slice %50 {offsets = [0, 128], sizes = [8, 128], strides = [1, 1]} : vector<8x384xf32> to vector<8x128xf32>
    %61 = arith.addf %59, %60 : vector<8x128xf32>
    %62 = arith.negf %61 : vector<8x128xf32>
    %63 = math.exp %62 : vector<8x128xf32>
    %cst_25 = arith.constant 1.000000e+00 : f32
    %64 = vector.broadcast %cst_25 : f32 to vector<8x128xf32>
    %65 = arith.addf %64, %63 : vector<8x128xf32>
    %66 = arith.divf %64, %65 : vector<8x128xf32>
    %67 = vector.extract_strided_slice %49 {offsets = [0, 256], sizes = [8, 128], strides = [1, 1]} : vector<8x384xf32> to vector<8x128xf32>
    %68 = vector.extract_strided_slice %50 {offsets = [0, 256], sizes = [8, 128], strides = [1, 1]} : vector<8x384xf32> to vector<8x128xf32>
    %69 = arith.addf %68, %11 : vector<8x128xf32>
    %70 = arith.mulf %58, %69 : vector<8x128xf32>
    %71 = arith.addf %67, %70 : vector<8x128xf32>
    %72 = math.tanh %71 : vector<8x128xf32>
    %cst_26 = arith.constant 1.000000e+00 : f32
    %73 = vector.broadcast %cst_26 : f32 to vector<8x128xf32>
    %74 = arith.subf %73, %66 : vector<8x128xf32>
    %75 = arith.mulf %74, %72 : vector<8x128xf32>
    %76 = arith.mulf %66, %16 : vector<8x128xf32>
    %77 = arith.addf %75, %76 : vector<8x128xf32>
    %c1_i32 = arith.constant 1 : i32
    %78 = arith.index_cast %c1_i32 : i32 to index
    %c0_27 = arith.constant 0 : index
    %c0_28 = arith.constant 0 : index
    %79 = vector.load %arg1[%78, %c0_27, %c0_28] : memref<8x8x384xf32, #tpu.memory_space<vmem>>, vector<1x8x384xf32>
    %80 = vector.shape_cast %79 : vector<1x8x384xf32> to vector<8x384xf32>
    %cst_29 = arith.constant dense<0.000000e+00> : vector<8x384xf32>
    %81 = tpu.matmul %47, %3, %cst_29 {dimension_numbers = #tpu.dot_dimension_numbers<[1], [0], [0], [1], [0, 0, 1, 1], [], []>} : vector<8x128xf32>, vector<128x384xf32>, vector<8x384xf32> -> vector<8x384xf32>
    %82 = vector.extract_strided_slice %80 {offsets = [0, 0], sizes = [8, 128], strides = [1, 1]} : vector<8x384xf32> to vector<8x128xf32>
    %83 = vector.extract_strided_slice %81 {offsets = [0, 0], sizes = [8, 128], strides = [1, 1]} : vector<8x384xf32> to vector<8x128xf32>
    %84 = arith.addf %82, %83 : vector<8x128xf32>
    %85 = arith.negf %84 : vector<8x128xf32>
    %86 = math.exp %85 : vector<8x128xf32>
    %cst_30 = arith.constant 1.000000e+00 : f32
    %87 = vector.broadcast %cst_30 : f32 to vector<8x128xf32>
    %88 = arith.addf %87, %86 : vector<8x128xf32>
    %89 = arith.divf %87, %88 : vector<8x128xf32>
    %90 = vector.extract_strided_slice %80 {offsets = [0, 128], sizes = [8, 128], strides = [1, 1]} : vector<8x384xf32> to vector<8x128xf32>
    %91 = vector.extract_strided_slice %81 {offsets = [0, 128], sizes = [8, 128], strides = [1, 1]} : vector<8x384xf32> to vector<8x128xf32>
    %92 = arith.addf %90, %91 : vector<8x128xf32>
    %93 = arith.negf %92 : vector<8x128xf32>
    %94 = math.exp %93 : vector<8x128xf32>
    %cst_31 = arith.constant 1.000000e+00 : f32
    %95 = vector.broadcast %cst_31 : f32 to vector<8x128xf32>
    %96 = arith.addf %95, %94 : vector<8x128xf32>
    %97 = arith.divf %95, %96 : vector<8x128xf32>
    %98 = vector.extract_strided_slice %80 {offsets = [0, 256], sizes = [8, 128], strides = [1, 1]} : vector<8x384xf32> to vector<8x128xf32>
    %99 = vector.extract_strided_slice %81 {offsets = [0, 256], sizes = [8, 128], strides = [1, 1]} : vector<8x384xf32> to vector<8x128xf32>
    %100 = arith.addf %99, %8 : vector<8x128xf32>
    %101 = arith.mulf %89, %100 : vector<8x128xf32>
    %102 = arith.addf %98, %101 : vector<8x128xf32>
    %103 = math.tanh %102 : vector<8x128xf32>
    %cst_32 = arith.constant 1.000000e+00 : f32
    %104 = vector.broadcast %cst_32 : f32 to vector<8x128xf32>
    %105 = arith.subf %104, %97 : vector<8x128xf32>
    %106 = arith.mulf %105, %103 : vector<8x128xf32>
    %107 = arith.mulf %97, %47 : vector<8x128xf32>
    %108 = arith.addf %106, %107 : vector<8x128xf32>
    %cst_33 = arith.constant dense<0.000000e+00> : vector<8x384xf32>
    %109 = tpu.matmul %108, %4, %cst_33 {dimension_numbers = #tpu.dot_dimension_numbers<[1], [0], [0], [1], [0, 0, 1, 1], [], []>} : vector<8x128xf32>, vector<128x384xf32>, vector<8x384xf32> -> vector<8x384xf32>
    %110 = arith.addf %109, %14 : vector<8x384xf32>
    %cst_34 = arith.constant dense<0.000000e+00> : vector<8x384xf32>
    %111 = tpu.matmul %77, %5, %cst_34 {dimension_numbers = #tpu.dot_dimension_numbers<[1], [0], [0], [1], [0, 0, 1, 1], [], []>} : vector<8x128xf32>, vector<128x384xf32>, vector<8x384xf32> -> vector<8x384xf32>
    %112 = vector.extract_strided_slice %110 {offsets = [0, 0], sizes = [8, 128], strides = [1, 1]} : vector<8x384xf32> to vector<8x128xf32>
    %113 = vector.extract_strided_slice %111 {offsets = [0, 0], sizes = [8, 128], strides = [1, 1]} : vector<8x384xf32> to vector<8x128xf32>
    %114 = arith.addf %112, %113 : vector<8x128xf32>
    %115 = arith.negf %114 : vector<8x128xf32>
    %116 = math.exp %115 : vector<8x128xf32>
    %cst_35 = arith.constant 1.000000e+00 : f32
    %117 = vector.broadcast %cst_35 : f32 to vector<8x128xf32>
    %118 = arith.addf %117, %116 : vector<8x128xf32>
    %119 = arith.divf %117, %118 : vector<8x128xf32>
    %120 = vector.extract_strided_slice %110 {offsets = [0, 128], sizes = [8, 128], strides = [1, 1]} : vector<8x384xf32> to vector<8x128xf32>
    %121 = vector.extract_strided_slice %111 {offsets = [0, 128], sizes = [8, 128], strides = [1, 1]} : vector<8x384xf32> to vector<8x128xf32>
    %122 = arith.addf %120, %121 : vector<8x128xf32>
    %123 = arith.negf %122 : vector<8x128xf32>
    %124 = math.exp %123 : vector<8x128xf32>
    %cst_36 = arith.constant 1.000000e+00 : f32
    %125 = vector.broadcast %cst_36 : f32 to vector<8x128xf32>
    %126 = arith.addf %125, %124 : vector<8x128xf32>
    %127 = arith.divf %125, %126 : vector<8x128xf32>
    %128 = vector.extract_strided_slice %110 {offsets = [0, 256], sizes = [8, 128], strides = [1, 1]} : vector<8x384xf32> to vector<8x128xf32>
    %129 = vector.extract_strided_slice %111 {offsets = [0, 256], sizes = [8, 128], strides = [1, 1]} : vector<8x384xf32> to vector<8x128xf32>
    %130 = arith.addf %129, %11 : vector<8x128xf32>
    %131 = arith.mulf %119, %130 : vector<8x128xf32>
    %132 = arith.addf %128, %131 : vector<8x128xf32>
    %133 = math.tanh %132 : vector<8x128xf32>
    %cst_37 = arith.constant 1.000000e+00 : f32
    %134 = vector.broadcast %cst_37 : f32 to vector<8x128xf32>
    %135 = arith.subf %134, %127 : vector<8x128xf32>
    %136 = arith.mulf %135, %133 : vector<8x128xf32>
    %137 = arith.mulf %127, %77 : vector<8x128xf32>
    %138 = arith.addf %136, %137 : vector<8x128xf32>
    %c2_i32 = arith.constant 2 : i32
    %139 = arith.index_cast %c2_i32 : i32 to index
    %c0_38 = arith.constant 0 : index
    %c0_39 = arith.constant 0 : index
    %140 = vector.load %arg1[%139, %c0_38, %c0_39] : memref<8x8x384xf32, #tpu.memory_space<vmem>>, vector<1x8x384xf32>
    %141 = vector.shape_cast %140 : vector<1x8x384xf32> to vector<8x384xf32>
    %cst_40 = arith.constant dense<0.000000e+00> : vector<8x384xf32>
    %142 = tpu.matmul %108, %3, %cst_40 {dimension_numbers = #tpu.dot_dimension_numbers<[1], [0], [0], [1], [0, 0, 1, 1], [], []>} : vector<8x128xf32>, vector<128x384xf32>, vector<8x384xf32> -> vector<8x384xf32>
    %143 = vector.extract_strided_slice %141 {offsets = [0, 0], sizes = [8, 128], strides = [1, 1]} : vector<8x384xf32> to vector<8x128xf32>
    %144 = vector.extract_strided_slice %142 {offsets = [0, 0], sizes = [8, 128], strides = [1, 1]} : vector<8x384xf32> to vector<8x128xf32>
    %145 = arith.addf %143, %144 : vector<8x128xf32>
    %146 = arith.negf %145 : vector<8x128xf32>
    %147 = math.exp %146 : vector<8x128xf32>
    %cst_41 = arith.constant 1.000000e+00 : f32
    %148 = vector.broadcast %cst_41 : f32 to vector<8x128xf32>
    %149 = arith.addf %148, %147 : vector<8x128xf32>
    %150 = arith.divf %148, %149 : vector<8x128xf32>
    %151 = vector.extract_strided_slice %141 {offsets = [0, 128], sizes = [8, 128], strides = [1, 1]} : vector<8x384xf32> to vector<8x128xf32>
    %152 = vector.extract_strided_slice %142 {offsets = [0, 128], sizes = [8, 128], strides = [1, 1]} : vector<8x384xf32> to vector<8x128xf32>
    %153 = arith.addf %151, %152 : vector<8x128xf32>
    %154 = arith.negf %153 : vector<8x128xf32>
    %155 = math.exp %154 : vector<8x128xf32>
    %cst_42 = arith.constant 1.000000e+00 : f32
    %156 = vector.broadcast %cst_42 : f32 to vector<8x128xf32>
    %157 = arith.addf %156, %155 : vector<8x128xf32>
    %158 = arith.divf %156, %157 : vector<8x128xf32>
    %159 = vector.extract_strided_slice %141 {offsets = [0, 256], sizes = [8, 128], strides = [1, 1]} : vector<8x384xf32> to vector<8x128xf32>
    %160 = vector.extract_strided_slice %142 {offsets = [0, 256], sizes = [8, 128], strides = [1, 1]} : vector<8x384xf32> to vector<8x128xf32>
    %161 = arith.addf %160, %8 : vector<8x128xf32>
    %162 = arith.mulf %150, %161 : vector<8x128xf32>
    %163 = arith.addf %159, %162 : vector<8x128xf32>
    %164 = math.tanh %163 : vector<8x128xf32>
    %cst_43 = arith.constant 1.000000e+00 : f32
    %165 = vector.broadcast %cst_43 : f32 to vector<8x128xf32>
    %166 = arith.subf %165, %158 : vector<8x128xf32>
    %167 = arith.mulf %166, %164 : vector<8x128xf32>
    %168 = arith.mulf %158, %108 : vector<8x128xf32>
    %169 = arith.addf %167, %168 : vector<8x128xf32>
    %cst_44 = arith.constant dense<0.000000e+00> : vector<8x384xf32>
    %170 = tpu.matmul %169, %4, %cst_44 {dimension_numbers = #tpu.dot_dimension_numbers<[1], [0], [0], [1], [0, 0, 1, 1], [], []>} : vector<8x128xf32>, vector<128x384xf32>, vector<8x384xf32> -> vector<8x384xf32>
    %171 = arith.addf %170, %14 : vector<8x384xf32>
    %cst_45 = arith.constant dense<0.000000e+00> : vector<8x384xf32>
    %172 = tpu.matmul %138, %5, %cst_45 {dimension_numbers = #tpu.dot_dimension_numbers<[1], [0], [0], [1], [0, 0, 1, 1], [], []>} : vector<8x128xf32>, vector<128x384xf32>, vector<8x384xf32> -> vector<8x384xf32>
    %173 = vector.extract_strided_slice %171 {offsets = [0, 0], sizes = [8, 128], strides = [1, 1]} : vector<8x384xf32> to vector<8x128xf32>
    %174 = vector.extract_strided_slice %172 {offsets = [0, 0], sizes = [8, 128], strides = [1, 1]} : vector<8x384xf32> to vector<8x128xf32>
    %175 = arith.addf %173, %174 : vector<8x128xf32>
    %176 = arith.negf %175 : vector<8x128xf32>
    %177 = math.exp %176 : vector<8x128xf32>
    %cst_46 = arith.constant 1.000000e+00 : f32
    %178 = vector.broadcast %cst_46 : f32 to vector<8x128xf32>
    %179 = arith.addf %178, %177 : vector<8x128xf32>
    %180 = arith.divf %178, %179 : vector<8x128xf32>
    %181 = vector.extract_strided_slice %171 {offsets = [0, 128], sizes = [8, 128], strides = [1, 1]} : vector<8x384xf32> to vector<8x128xf32>
    %182 = vector.extract_strided_slice %172 {offsets = [0, 128], sizes = [8, 128], strides = [1, 1]} : vector<8x384xf32> to vector<8x128xf32>
    %183 = arith.addf %181, %182 : vector<8x128xf32>
    %184 = arith.negf %183 : vector<8x128xf32>
    %185 = math.exp %184 : vector<8x128xf32>
    %cst_47 = arith.constant 1.000000e+00 : f32
    %186 = vector.broadcast %cst_47 : f32 to vector<8x128xf32>
    %187 = arith.addf %186, %185 : vector<8x128xf32>
    %188 = arith.divf %186, %187 : vector<8x128xf32>
    %189 = vector.extract_strided_slice %171 {offsets = [0, 256], sizes = [8, 128], strides = [1, 1]} : vector<8x384xf32> to vector<8x128xf32>
    %190 = vector.extract_strided_slice %172 {offsets = [0, 256], sizes = [8, 128], strides = [1, 1]} : vector<8x384xf32> to vector<8x128xf32>
    %191 = arith.addf %190, %11 : vector<8x128xf32>
    %192 = arith.mulf %180, %191 : vector<8x128xf32>
    %193 = arith.addf %189, %192 : vector<8x128xf32>
    %194 = math.tanh %193 : vector<8x128xf32>
    %cst_48 = arith.constant 1.000000e+00 : f32
    %195 = vector.broadcast %cst_48 : f32 to vector<8x128xf32>
    %196 = arith.subf %195, %188 : vector<8x128xf32>
    %197 = arith.mulf %196, %194 : vector<8x128xf32>
    %198 = arith.mulf %188, %138 : vector<8x128xf32>
    %199 = arith.addf %197, %198 : vector<8x128xf32>
    %c3_i32 = arith.constant 3 : i32
    %200 = arith.index_cast %c3_i32 : i32 to index
    %c0_49 = arith.constant 0 : index
    %c0_50 = arith.constant 0 : index
    %201 = vector.load %arg1[%200, %c0_49, %c0_50] : memref<8x8x384xf32, #tpu.memory_space<vmem>>, vector<1x8x384xf32>
    %202 = vector.shape_cast %201 : vector<1x8x384xf32> to vector<8x384xf32>
    %cst_51 = arith.constant dense<0.000000e+00> : vector<8x384xf32>
    %203 = tpu.matmul %169, %3, %cst_51 {dimension_numbers = #tpu.dot_dimension_numbers<[1], [0], [0], [1], [0, 0, 1, 1], [], []>} : vector<8x128xf32>, vector<128x384xf32>, vector<8x384xf32> -> vector<8x384xf32>
    %204 = vector.extract_strided_slice %202 {offsets = [0, 0], sizes = [8, 128], strides = [1, 1]} : vector<8x384xf32> to vector<8x128xf32>
    %205 = vector.extract_strided_slice %203 {offsets = [0, 0], sizes = [8, 128], strides = [1, 1]} : vector<8x384xf32> to vector<8x128xf32>
    %206 = arith.addf %204, %205 : vector<8x128xf32>
    %207 = arith.negf %206 : vector<8x128xf32>
    %208 = math.exp %207 : vector<8x128xf32>
    %cst_52 = arith.constant 1.000000e+00 : f32
    %209 = vector.broadcast %cst_52 : f32 to vector<8x128xf32>
    %210 = arith.addf %209, %208 : vector<8x128xf32>
    %211 = arith.divf %209, %210 : vector<8x128xf32>
    %212 = vector.extract_strided_slice %202 {offsets = [0, 128], sizes = [8, 128], strides = [1, 1]} : vector<8x384xf32> to vector<8x128xf32>
    %213 = vector.extract_strided_slice %203 {offsets = [0, 128], sizes = [8, 128], strides = [1, 1]} : vector<8x384xf32> to vector<8x128xf32>
    %214 = arith.addf %212, %213 : vector<8x128xf32>
    %215 = arith.negf %214 : vector<8x128xf32>
    %216 = math.exp %215 : vector<8x128xf32>
    %cst_53 = arith.constant 1.000000e+00 : f32
    %217 = vector.broadcast %cst_53 : f32 to vector<8x128xf32>
    %218 = arith.addf %217, %216 : vector<8x128xf32>
    %219 = arith.divf %217, %218 : vector<8x128xf32>
    %220 = vector.extract_strided_slice %202 {offsets = [0, 256], sizes = [8, 128], strides = [1, 1]} : vector<8x384xf32> to vector<8x128xf32>
    %221 = vector.extract_strided_slice %203 {offsets = [0, 256], sizes = [8, 128], strides = [1, 1]} : vector<8x384xf32> to vector<8x128xf32>
    %222 = arith.addf %221, %8 : vector<8x128xf32>
    %223 = arith.mulf %211, %222 : vector<8x128xf32>
    %224 = arith.addf %220, %223 : vector<8x128xf32>
    %225 = math.tanh %224 : vector<8x128xf32>
    %cst_54 = arith.constant 1.000000e+00 : f32
    %226 = vector.broadcast %cst_54 : f32 to vector<8x128xf32>
    %227 = arith.subf %226, %219 : vector<8x128xf32>
    %228 = arith.mulf %227, %225 : vector<8x128xf32>
    %229 = arith.mulf %219, %169 : vector<8x128xf32>
    %230 = arith.addf %228, %229 : vector<8x128xf32>
    %cst_55 = arith.constant dense<0.000000e+00> : vector<8x384xf32>
    %231 = tpu.matmul %230, %4, %cst_55 {dimension_numbers = #tpu.dot_dimension_numbers<[1], [0], [0], [1], [0, 0, 1, 1], [], []>} : vector<8x128xf32>, vector<128x384xf32>, vector<8x384xf32> -> vector<8x384xf32>
    %232 = arith.addf %231, %14 : vector<8x384xf32>
    %cst_56 = arith.constant dense<0.000000e+00> : vector<8x384xf32>
    %233 = tpu.matmul %199, %5, %cst_56 {dimension_numbers = #tpu.dot_dimension_numbers<[1], [0], [0], [1], [0, 0, 1, 1], [], []>} : vector<8x128xf32>, vector<128x384xf32>, vector<8x384xf32> -> vector<8x384xf32>
    %234 = vector.extract_strided_slice %232 {offsets = [0, 0], sizes = [8, 128], strides = [1, 1]} : vector<8x384xf32> to vector<8x128xf32>
    %235 = vector.extract_strided_slice %233 {offsets = [0, 0], sizes = [8, 128], strides = [1, 1]} : vector<8x384xf32> to vector<8x128xf32>
    %236 = arith.addf %234, %235 : vector<8x128xf32>
    %237 = arith.negf %236 : vector<8x128xf32>
    %238 = math.exp %237 : vector<8x128xf32>
    %cst_57 = arith.constant 1.000000e+00 : f32
    %239 = vector.broadcast %cst_57 : f32 to vector<8x128xf32>
    %240 = arith.addf %239, %238 : vector<8x128xf32>
    %241 = arith.divf %239, %240 : vector<8x128xf32>
    %242 = vector.extract_strided_slice %232 {offsets = [0, 128], sizes = [8, 128], strides = [1, 1]} : vector<8x384xf32> to vector<8x128xf32>
    %243 = vector.extract_strided_slice %233 {offsets = [0, 128], sizes = [8, 128], strides = [1, 1]} : vector<8x384xf32> to vector<8x128xf32>
    %244 = arith.addf %242, %243 : vector<8x128xf32>
    %245 = arith.negf %244 : vector<8x128xf32>
    %246 = math.exp %245 : vector<8x128xf32>
    %cst_58 = arith.constant 1.000000e+00 : f32
    %247 = vector.broadcast %cst_58 : f32 to vector<8x128xf32>
    %248 = arith.addf %247, %246 : vector<8x128xf32>
    %249 = arith.divf %247, %248 : vector<8x128xf32>
    %250 = vector.extract_strided_slice %232 {offsets = [0, 256], sizes = [8, 128], strides = [1, 1]} : vector<8x384xf32> to vector<8x128xf32>
    %251 = vector.extract_strided_slice %233 {offsets = [0, 256], sizes = [8, 128], strides = [1, 1]} : vector<8x384xf32> to vector<8x128xf32>
    %252 = arith.addf %251, %11 : vector<8x128xf32>
    %253 = arith.mulf %241, %252 : vector<8x128xf32>
    %254 = arith.addf %250, %253 : vector<8x128xf32>
    %255 = math.tanh %254 : vector<8x128xf32>
    %cst_59 = arith.constant 1.000000e+00 : f32
    %256 = vector.broadcast %cst_59 : f32 to vector<8x128xf32>
    %257 = arith.subf %256, %249 : vector<8x128xf32>
    %258 = arith.mulf %257, %255 : vector<8x128xf32>
    %259 = arith.mulf %249, %199 : vector<8x128xf32>
    %260 = arith.addf %258, %259 : vector<8x128xf32>
    %c4_i32 = arith.constant 4 : i32
    %261 = arith.index_cast %c4_i32 : i32 to index
    %c0_60 = arith.constant 0 : index
    %c0_61 = arith.constant 0 : index
    %262 = vector.load %arg1[%261, %c0_60, %c0_61] : memref<8x8x384xf32, #tpu.memory_space<vmem>>, vector<1x8x384xf32>
    %263 = vector.shape_cast %262 : vector<1x8x384xf32> to vector<8x384xf32>
    %cst_62 = arith.constant dense<0.000000e+00> : vector<8x384xf32>
    %264 = tpu.matmul %230, %3, %cst_62 {dimension_numbers = #tpu.dot_dimension_numbers<[1], [0], [0], [1], [0, 0, 1, 1], [], []>} : vector<8x128xf32>, vector<128x384xf32>, vector<8x384xf32> -> vector<8x384xf32>
    %265 = vector.extract_strided_slice %263 {offsets = [0, 0], sizes = [8, 128], strides = [1, 1]} : vector<8x384xf32> to vector<8x128xf32>
    %266 = vector.extract_strided_slice %264 {offsets = [0, 0], sizes = [8, 128], strides = [1, 1]} : vector<8x384xf32> to vector<8x128xf32>
    %267 = arith.addf %265, %266 : vector<8x128xf32>
    %268 = arith.negf %267 : vector<8x128xf32>
    %269 = math.exp %268 : vector<8x128xf32>
    %cst_63 = arith.constant 1.000000e+00 : f32
    %270 = vector.broadcast %cst_63 : f32 to vector<8x128xf32>
    %271 = arith.addf %270, %269 : vector<8x128xf32>
    %272 = arith.divf %270, %271 : vector<8x128xf32>
    %273 = vector.extract_strided_slice %263 {offsets = [0, 128], sizes = [8, 128], strides = [1, 1]} : vector<8x384xf32> to vector<8x128xf32>
    %274 = vector.extract_strided_slice %264 {offsets = [0, 128], sizes = [8, 128], strides = [1, 1]} : vector<8x384xf32> to vector<8x128xf32>
    %275 = arith.addf %273, %274 : vector<8x128xf32>
    %276 = arith.negf %275 : vector<8x128xf32>
    %277 = math.exp %276 : vector<8x128xf32>
    %cst_64 = arith.constant 1.000000e+00 : f32
    %278 = vector.broadcast %cst_64 : f32 to vector<8x128xf32>
    %279 = arith.addf %278, %277 : vector<8x128xf32>
    %280 = arith.divf %278, %279 : vector<8x128xf32>
    %281 = vector.extract_strided_slice %263 {offsets = [0, 256], sizes = [8, 128], strides = [1, 1]} : vector<8x384xf32> to vector<8x128xf32>
    %282 = vector.extract_strided_slice %264 {offsets = [0, 256], sizes = [8, 128], strides = [1, 1]} : vector<8x384xf32> to vector<8x128xf32>
    %283 = arith.addf %282, %8 : vector<8x128xf32>
    %284 = arith.mulf %272, %283 : vector<8x128xf32>
    %285 = arith.addf %281, %284 : vector<8x128xf32>
    %286 = math.tanh %285 : vector<8x128xf32>
    %cst_65 = arith.constant 1.000000e+00 : f32
    %287 = vector.broadcast %cst_65 : f32 to vector<8x128xf32>
    %288 = arith.subf %287, %280 : vector<8x128xf32>
    %289 = arith.mulf %288, %286 : vector<8x128xf32>
    %290 = arith.mulf %280, %230 : vector<8x128xf32>
    %291 = arith.addf %289, %290 : vector<8x128xf32>
    %cst_66 = arith.constant dense<0.000000e+00> : vector<8x384xf32>
    %292 = tpu.matmul %291, %4, %cst_66 {dimension_numbers = #tpu.dot_dimension_numbers<[1], [0], [0], [1], [0, 0, 1, 1], [], []>} : vector<8x128xf32>, vector<128x384xf32>, vector<8x384xf32> -> vector<8x384xf32>
    %293 = arith.addf %292, %14 : vector<8x384xf32>
    %cst_67 = arith.constant dense<0.000000e+00> : vector<8x384xf32>
    %294 = tpu.matmul %260, %5, %cst_67 {dimension_numbers = #tpu.dot_dimension_numbers<[1], [0], [0], [1], [0, 0, 1, 1], [], []>} : vector<8x128xf32>, vector<128x384xf32>, vector<8x384xf32> -> vector<8x384xf32>
    %295 = vector.extract_strided_slice %293 {offsets = [0, 0], sizes = [8, 128], strides = [1, 1]} : vector<8x384xf32> to vector<8x128xf32>
    %296 = vector.extract_strided_slice %294 {offsets = [0, 0], sizes = [8, 128], strides = [1, 1]} : vector<8x384xf32> to vector<8x128xf32>
    %297 = arith.addf %295, %296 : vector<8x128xf32>
    %298 = arith.negf %297 : vector<8x128xf32>
    %299 = math.exp %298 : vector<8x128xf32>
    %cst_68 = arith.constant 1.000000e+00 : f32
    %300 = vector.broadcast %cst_68 : f32 to vector<8x128xf32>
    %301 = arith.addf %300, %299 : vector<8x128xf32>
    %302 = arith.divf %300, %301 : vector<8x128xf32>
    %303 = vector.extract_strided_slice %293 {offsets = [0, 128], sizes = [8, 128], strides = [1, 1]} : vector<8x384xf32> to vector<8x128xf32>
    %304 = vector.extract_strided_slice %294 {offsets = [0, 128], sizes = [8, 128], strides = [1, 1]} : vector<8x384xf32> to vector<8x128xf32>
    %305 = arith.addf %303, %304 : vector<8x128xf32>
    %306 = arith.negf %305 : vector<8x128xf32>
    %307 = math.exp %306 : vector<8x128xf32>
    %cst_69 = arith.constant 1.000000e+00 : f32
    %308 = vector.broadcast %cst_69 : f32 to vector<8x128xf32>
    %309 = arith.addf %308, %307 : vector<8x128xf32>
    %310 = arith.divf %308, %309 : vector<8x128xf32>
    %311 = vector.extract_strided_slice %293 {offsets = [0, 256], sizes = [8, 128], strides = [1, 1]} : vector<8x384xf32> to vector<8x128xf32>
    %312 = vector.extract_strided_slice %294 {offsets = [0, 256], sizes = [8, 128], strides = [1, 1]} : vector<8x384xf32> to vector<8x128xf32>
    %313 = arith.addf %312, %11 : vector<8x128xf32>
    %314 = arith.mulf %302, %313 : vector<8x128xf32>
    %315 = arith.addf %311, %314 : vector<8x128xf32>
    %316 = math.tanh %315 : vector<8x128xf32>
    %cst_70 = arith.constant 1.000000e+00 : f32
    %317 = vector.broadcast %cst_70 : f32 to vector<8x128xf32>
    %318 = arith.subf %317, %310 : vector<8x128xf32>
    %319 = arith.mulf %318, %316 : vector<8x128xf32>
    %320 = arith.mulf %310, %260 : vector<8x128xf32>
    %321 = arith.addf %319, %320 : vector<8x128xf32>
    %c5_i32 = arith.constant 5 : i32
    %322 = arith.index_cast %c5_i32 : i32 to index
    %c0_71 = arith.constant 0 : index
    %c0_72 = arith.constant 0 : index
    %323 = vector.load %arg1[%322, %c0_71, %c0_72] : memref<8x8x384xf32, #tpu.memory_space<vmem>>, vector<1x8x384xf32>
    %324 = vector.shape_cast %323 : vector<1x8x384xf32> to vector<8x384xf32>
    %cst_73 = arith.constant dense<0.000000e+00> : vector<8x384xf32>
    %325 = tpu.matmul %291, %3, %cst_73 {dimension_numbers = #tpu.dot_dimension_numbers<[1], [0], [0], [1], [0, 0, 1, 1], [], []>} : vector<8x128xf32>, vector<128x384xf32>, vector<8x384xf32> -> vector<8x384xf32>
    %326 = vector.extract_strided_slice %324 {offsets = [0, 0], sizes = [8, 128], strides = [1, 1]} : vector<8x384xf32> to vector<8x128xf32>
    %327 = vector.extract_strided_slice %325 {offsets = [0, 0], sizes = [8, 128], strides = [1, 1]} : vector<8x384xf32> to vector<8x128xf32>
    %328 = arith.addf %326, %327 : vector<8x128xf32>
    %329 = arith.negf %328 : vector<8x128xf32>
    %330 = math.exp %329 : vector<8x128xf32>
    %cst_74 = arith.constant 1.000000e+00 : f32
    %331 = vector.broadcast %cst_74 : f32 to vector<8x128xf32>
    %332 = arith.addf %331, %330 : vector<8x128xf32>
    %333 = arith.divf %331, %332 : vector<8x128xf32>
    %334 = vector.extract_strided_slice %324 {offsets = [0, 128], sizes = [8, 128], strides = [1, 1]} : vector<8x384xf32> to vector<8x128xf32>
    %335 = vector.extract_strided_slice %325 {offsets = [0, 128], sizes = [8, 128], strides = [1, 1]} : vector<8x384xf32> to vector<8x128xf32>
    %336 = arith.addf %334, %335 : vector<8x128xf32>
    %337 = arith.negf %336 : vector<8x128xf32>
    %338 = math.exp %337 : vector<8x128xf32>
    %cst_75 = arith.constant 1.000000e+00 : f32
    %339 = vector.broadcast %cst_75 : f32 to vector<8x128xf32>
    %340 = arith.addf %339, %338 : vector<8x128xf32>
    %341 = arith.divf %339, %340 : vector<8x128xf32>
    %342 = vector.extract_strided_slice %324 {offsets = [0, 256], sizes = [8, 128], strides = [1, 1]} : vector<8x384xf32> to vector<8x128xf32>
    %343 = vector.extract_strided_slice %325 {offsets = [0, 256], sizes = [8, 128], strides = [1, 1]} : vector<8x384xf32> to vector<8x128xf32>
    %344 = arith.addf %343, %8 : vector<8x128xf32>
    %345 = arith.mulf %333, %344 : vector<8x128xf32>
    %346 = arith.addf %342, %345 : vector<8x128xf32>
    %347 = math.tanh %346 : vector<8x128xf32>
    %cst_76 = arith.constant 1.000000e+00 : f32
    %348 = vector.broadcast %cst_76 : f32 to vector<8x128xf32>
    %349 = arith.subf %348, %341 : vector<8x128xf32>
    %350 = arith.mulf %349, %347 : vector<8x128xf32>
    %351 = arith.mulf %341, %291 : vector<8x128xf32>
    %352 = arith.addf %350, %351 : vector<8x128xf32>
    %cst_77 = arith.constant dense<0.000000e+00> : vector<8x384xf32>
    %353 = tpu.matmul %352, %4, %cst_77 {dimension_numbers = #tpu.dot_dimension_numbers<[1], [0], [0], [1], [0, 0, 1, 1], [], []>} : vector<8x128xf32>, vector<128x384xf32>, vector<8x384xf32> -> vector<8x384xf32>
    %354 = arith.addf %353, %14 : vector<8x384xf32>
    %cst_78 = arith.constant dense<0.000000e+00> : vector<8x384xf32>
    %355 = tpu.matmul %321, %5, %cst_78 {dimension_numbers = #tpu.dot_dimension_numbers<[1], [0], [0], [1], [0, 0, 1, 1], [], []>} : vector<8x128xf32>, vector<128x384xf32>, vector<8x384xf32> -> vector<8x384xf32>
    %356 = vector.extract_strided_slice %354 {offsets = [0, 0], sizes = [8, 128], strides = [1, 1]} : vector<8x384xf32> to vector<8x128xf32>
    %357 = vector.extract_strided_slice %355 {offsets = [0, 0], sizes = [8, 128], strides = [1, 1]} : vector<8x384xf32> to vector<8x128xf32>
    %358 = arith.addf %356, %357 : vector<8x128xf32>
    %359 = arith.negf %358 : vector<8x128xf32>
    %360 = math.exp %359 : vector<8x128xf32>
    %cst_79 = arith.constant 1.000000e+00 : f32
    %361 = vector.broadcast %cst_79 : f32 to vector<8x128xf32>
    %362 = arith.addf %361, %360 : vector<8x128xf32>
    %363 = arith.divf %361, %362 : vector<8x128xf32>
    %364 = vector.extract_strided_slice %354 {offsets = [0, 128], sizes = [8, 128], strides = [1, 1]} : vector<8x384xf32> to vector<8x128xf32>
    %365 = vector.extract_strided_slice %355 {offsets = [0, 128], sizes = [8, 128], strides = [1, 1]} : vector<8x384xf32> to vector<8x128xf32>
    %366 = arith.addf %364, %365 : vector<8x128xf32>
    %367 = arith.negf %366 : vector<8x128xf32>
    %368 = math.exp %367 : vector<8x128xf32>
    %cst_80 = arith.constant 1.000000e+00 : f32
    %369 = vector.broadcast %cst_80 : f32 to vector<8x128xf32>
    %370 = arith.addf %369, %368 : vector<8x128xf32>
    %371 = arith.divf %369, %370 : vector<8x128xf32>
    %372 = vector.extract_strided_slice %354 {offsets = [0, 256], sizes = [8, 128], strides = [1, 1]} : vector<8x384xf32> to vector<8x128xf32>
    %373 = vector.extract_strided_slice %355 {offsets = [0, 256], sizes = [8, 128], strides = [1, 1]} : vector<8x384xf32> to vector<8x128xf32>
    %374 = arith.addf %373, %11 : vector<8x128xf32>
    %375 = arith.mulf %363, %374 : vector<8x128xf32>
    %376 = arith.addf %372, %375 : vector<8x128xf32>
    %377 = math.tanh %376 : vector<8x128xf32>
    %cst_81 = arith.constant 1.000000e+00 : f32
    %378 = vector.broadcast %cst_81 : f32 to vector<8x128xf32>
    %379 = arith.subf %378, %371 : vector<8x128xf32>
    %380 = arith.mulf %379, %377 : vector<8x128xf32>
    %381 = arith.mulf %371, %321 : vector<8x128xf32>
    %382 = arith.addf %380, %381 : vector<8x128xf32>
    %c6_i32 = arith.constant 6 : i32
    %383 = arith.index_cast %c6_i32 : i32 to index
    %c0_82 = arith.constant 0 : index
    %c0_83 = arith.constant 0 : index
    %384 = vector.load %arg1[%383, %c0_82, %c0_83] : memref<8x8x384xf32, #tpu.memory_space<vmem>>, vector<1x8x384xf32>
    %385 = vector.shape_cast %384 : vector<1x8x384xf32> to vector<8x384xf32>
    %cst_84 = arith.constant dense<0.000000e+00> : vector<8x384xf32>
    %386 = tpu.matmul %352, %3, %cst_84 {dimension_numbers = #tpu.dot_dimension_numbers<[1], [0], [0], [1], [0, 0, 1, 1], [], []>} : vector<8x128xf32>, vector<128x384xf32>, vector<8x384xf32> -> vector<8x384xf32>
    %387 = vector.extract_strided_slice %385 {offsets = [0, 0], sizes = [8, 128], strides = [1, 1]} : vector<8x384xf32> to vector<8x128xf32>
    %388 = vector.extract_strided_slice %386 {offsets = [0, 0], sizes = [8, 128], strides = [1, 1]} : vector<8x384xf32> to vector<8x128xf32>
    %389 = arith.addf %387, %388 : vector<8x128xf32>
    %390 = arith.negf %389 : vector<8x128xf32>
    %391 = math.exp %390 : vector<8x128xf32>
    %cst_85 = arith.constant 1.000000e+00 : f32
    %392 = vector.broadcast %cst_85 : f32 to vector<8x128xf32>
    %393 = arith.addf %392, %391 : vector<8x128xf32>
    %394 = arith.divf %392, %393 : vector<8x128xf32>
    %395 = vector.extract_strided_slice %385 {offsets = [0, 128], sizes = [8, 128], strides = [1, 1]} : vector<8x384xf32> to vector<8x128xf32>
    %396 = vector.extract_strided_slice %386 {offsets = [0, 128], sizes = [8, 128], strides = [1, 1]} : vector<8x384xf32> to vector<8x128xf32>
    %397 = arith.addf %395, %396 : vector<8x128xf32>
    %398 = arith.negf %397 : vector<8x128xf32>
    %399 = math.exp %398 : vector<8x128xf32>
    %cst_86 = arith.constant 1.000000e+00 : f32
    %400 = vector.broadcast %cst_86 : f32 to vector<8x128xf32>
    %401 = arith.addf %400, %399 : vector<8x128xf32>
    %402 = arith.divf %400, %401 : vector<8x128xf32>
    %403 = vector.extract_strided_slice %385 {offsets = [0, 256], sizes = [8, 128], strides = [1, 1]} : vector<8x384xf32> to vector<8x128xf32>
    %404 = vector.extract_strided_slice %386 {offsets = [0, 256], sizes = [8, 128], strides = [1, 1]} : vector<8x384xf32> to vector<8x128xf32>
    %405 = arith.addf %404, %8 : vector<8x128xf32>
    %406 = arith.mulf %394, %405 : vector<8x128xf32>
    %407 = arith.addf %403, %406 : vector<8x128xf32>
    %408 = math.tanh %407 : vector<8x128xf32>
    %cst_87 = arith.constant 1.000000e+00 : f32
    %409 = vector.broadcast %cst_87 : f32 to vector<8x128xf32>
    %410 = arith.subf %409, %402 : vector<8x128xf32>
    %411 = arith.mulf %410, %408 : vector<8x128xf32>
    %412 = arith.mulf %402, %352 : vector<8x128xf32>
    %413 = arith.addf %411, %412 : vector<8x128xf32>
    %cst_88 = arith.constant dense<0.000000e+00> : vector<8x384xf32>
    %414 = tpu.matmul %413, %4, %cst_88 {dimension_numbers = #tpu.dot_dimension_numbers<[1], [0], [0], [1], [0, 0, 1, 1], [], []>} : vector<8x128xf32>, vector<128x384xf32>, vector<8x384xf32> -> vector<8x384xf32>
    %415 = arith.addf %414, %14 : vector<8x384xf32>
    %cst_89 = arith.constant dense<0.000000e+00> : vector<8x384xf32>
    %416 = tpu.matmul %382, %5, %cst_89 {dimension_numbers = #tpu.dot_dimension_numbers<[1], [0], [0], [1], [0, 0, 1, 1], [], []>} : vector<8x128xf32>, vector<128x384xf32>, vector<8x384xf32> -> vector<8x384xf32>
    %417 = vector.extract_strided_slice %415 {offsets = [0, 0], sizes = [8, 128], strides = [1, 1]} : vector<8x384xf32> to vector<8x128xf32>
    %418 = vector.extract_strided_slice %416 {offsets = [0, 0], sizes = [8, 128], strides = [1, 1]} : vector<8x384xf32> to vector<8x128xf32>
    %419 = arith.addf %417, %418 : vector<8x128xf32>
    %420 = arith.negf %419 : vector<8x128xf32>
    %421 = math.exp %420 : vector<8x128xf32>
    %cst_90 = arith.constant 1.000000e+00 : f32
    %422 = vector.broadcast %cst_90 : f32 to vector<8x128xf32>
    %423 = arith.addf %422, %421 : vector<8x128xf32>
    %424 = arith.divf %422, %423 : vector<8x128xf32>
    %425 = vector.extract_strided_slice %415 {offsets = [0, 128], sizes = [8, 128], strides = [1, 1]} : vector<8x384xf32> to vector<8x128xf32>
    %426 = vector.extract_strided_slice %416 {offsets = [0, 128], sizes = [8, 128], strides = [1, 1]} : vector<8x384xf32> to vector<8x128xf32>
    %427 = arith.addf %425, %426 : vector<8x128xf32>
    %428 = arith.negf %427 : vector<8x128xf32>
    %429 = math.exp %428 : vector<8x128xf32>
    %cst_91 = arith.constant 1.000000e+00 : f32
    %430 = vector.broadcast %cst_91 : f32 to vector<8x128xf32>
    %431 = arith.addf %430, %429 : vector<8x128xf32>
    %432 = arith.divf %430, %431 : vector<8x128xf32>
    %433 = vector.extract_strided_slice %415 {offsets = [0, 256], sizes = [8, 128], strides = [1, 1]} : vector<8x384xf32> to vector<8x128xf32>
    %434 = vector.extract_strided_slice %416 {offsets = [0, 256], sizes = [8, 128], strides = [1, 1]} : vector<8x384xf32> to vector<8x128xf32>
    %435 = arith.addf %434, %11 : vector<8x128xf32>
    %436 = arith.mulf %424, %435 : vector<8x128xf32>
    %437 = arith.addf %433, %436 : vector<8x128xf32>
    %438 = math.tanh %437 : vector<8x128xf32>
    %cst_92 = arith.constant 1.000000e+00 : f32
    %439 = vector.broadcast %cst_92 : f32 to vector<8x128xf32>
    %440 = arith.subf %439, %432 : vector<8x128xf32>
    %441 = arith.mulf %440, %438 : vector<8x128xf32>
    %442 = arith.mulf %432, %382 : vector<8x128xf32>
    %443 = arith.addf %441, %442 : vector<8x128xf32>
    %c7_i32 = arith.constant 7 : i32
    %444 = arith.index_cast %c7_i32 : i32 to index
    %c0_93 = arith.constant 0 : index
    %c0_94 = arith.constant 0 : index
    %445 = vector.load %arg1[%444, %c0_93, %c0_94] : memref<8x8x384xf32, #tpu.memory_space<vmem>>, vector<1x8x384xf32>
    %446 = vector.shape_cast %445 : vector<1x8x384xf32> to vector<8x384xf32>
    %cst_95 = arith.constant dense<0.000000e+00> : vector<8x384xf32>
    %447 = tpu.matmul %413, %3, %cst_95 {dimension_numbers = #tpu.dot_dimension_numbers<[1], [0], [0], [1], [0, 0, 1, 1], [], []>} : vector<8x128xf32>, vector<128x384xf32>, vector<8x384xf32> -> vector<8x384xf32>
    %448 = vector.extract_strided_slice %446 {offsets = [0, 0], sizes = [8, 128], strides = [1, 1]} : vector<8x384xf32> to vector<8x128xf32>
    %449 = vector.extract_strided_slice %447 {offsets = [0, 0], sizes = [8, 128], strides = [1, 1]} : vector<8x384xf32> to vector<8x128xf32>
    %450 = arith.addf %448, %449 : vector<8x128xf32>
    %451 = arith.negf %450 : vector<8x128xf32>
    %452 = math.exp %451 : vector<8x128xf32>
    %cst_96 = arith.constant 1.000000e+00 : f32
    %453 = vector.broadcast %cst_96 : f32 to vector<8x128xf32>
    %454 = arith.addf %453, %452 : vector<8x128xf32>
    %455 = arith.divf %453, %454 : vector<8x128xf32>
    %456 = vector.extract_strided_slice %446 {offsets = [0, 128], sizes = [8, 128], strides = [1, 1]} : vector<8x384xf32> to vector<8x128xf32>
    %457 = vector.extract_strided_slice %447 {offsets = [0, 128], sizes = [8, 128], strides = [1, 1]} : vector<8x384xf32> to vector<8x128xf32>
    %458 = arith.addf %456, %457 : vector<8x128xf32>
    %459 = arith.negf %458 : vector<8x128xf32>
    %460 = math.exp %459 : vector<8x128xf32>
    %cst_97 = arith.constant 1.000000e+00 : f32
    %461 = vector.broadcast %cst_97 : f32 to vector<8x128xf32>
    %462 = arith.addf %461, %460 : vector<8x128xf32>
    %463 = arith.divf %461, %462 : vector<8x128xf32>
    %464 = vector.extract_strided_slice %446 {offsets = [0, 256], sizes = [8, 128], strides = [1, 1]} : vector<8x384xf32> to vector<8x128xf32>
    %465 = vector.extract_strided_slice %447 {offsets = [0, 256], sizes = [8, 128], strides = [1, 1]} : vector<8x384xf32> to vector<8x128xf32>
    %466 = arith.addf %465, %8 : vector<8x128xf32>
    %467 = arith.mulf %455, %466 : vector<8x128xf32>
    %468 = arith.addf %464, %467 : vector<8x128xf32>
    %469 = math.tanh %468 : vector<8x128xf32>
    %cst_98 = arith.constant 1.000000e+00 : f32
    %470 = vector.broadcast %cst_98 : f32 to vector<8x128xf32>
    %471 = arith.subf %470, %463 : vector<8x128xf32>
    %472 = arith.mulf %471, %469 : vector<8x128xf32>
    %473 = arith.mulf %463, %413 : vector<8x128xf32>
    %474 = arith.addf %472, %473 : vector<8x128xf32>
    %cst_99 = arith.constant dense<0.000000e+00> : vector<8x384xf32>
    %475 = tpu.matmul %474, %4, %cst_99 {dimension_numbers = #tpu.dot_dimension_numbers<[1], [0], [0], [1], [0, 0, 1, 1], [], []>} : vector<8x128xf32>, vector<128x384xf32>, vector<8x384xf32> -> vector<8x384xf32>
    %476 = arith.addf %475, %14 : vector<8x384xf32>
    %cst_100 = arith.constant dense<0.000000e+00> : vector<8x384xf32>
    %477 = tpu.matmul %443, %5, %cst_100 {dimension_numbers = #tpu.dot_dimension_numbers<[1], [0], [0], [1], [0, 0, 1, 1], [], []>} : vector<8x128xf32>, vector<128x384xf32>, vector<8x384xf32> -> vector<8x384xf32>
    %478 = vector.extract_strided_slice %476 {offsets = [0, 0], sizes = [8, 128], strides = [1, 1]} : vector<8x384xf32> to vector<8x128xf32>
    %479 = vector.extract_strided_slice %477 {offsets = [0, 0], sizes = [8, 128], strides = [1, 1]} : vector<8x384xf32> to vector<8x128xf32>
    %480 = arith.addf %478, %479 : vector<8x128xf32>
    %481 = arith.negf %480 : vector<8x128xf32>
    %482 = math.exp %481 : vector<8x128xf32>
    %cst_101 = arith.constant 1.000000e+00 : f32
    %483 = vector.broadcast %cst_101 : f32 to vector<8x128xf32>
    %484 = arith.addf %483, %482 : vector<8x128xf32>
    %485 = arith.divf %483, %484 : vector<8x128xf32>
    %486 = vector.extract_strided_slice %476 {offsets = [0, 128], sizes = [8, 128], strides = [1, 1]} : vector<8x384xf32> to vector<8x128xf32>
    %487 = vector.extract_strided_slice %477 {offsets = [0, 128], sizes = [8, 128], strides = [1, 1]} : vector<8x384xf32> to vector<8x128xf32>
    %488 = arith.addf %486, %487 : vector<8x128xf32>
    %489 = arith.negf %488 : vector<8x128xf32>
    %490 = math.exp %489 : vector<8x128xf32>
    %cst_102 = arith.constant 1.000000e+00 : f32
    %491 = vector.broadcast %cst_102 : f32 to vector<8x128xf32>
    %492 = arith.addf %491, %490 : vector<8x128xf32>
    %493 = arith.divf %491, %492 : vector<8x128xf32>
    %494 = vector.extract_strided_slice %476 {offsets = [0, 256], sizes = [8, 128], strides = [1, 1]} : vector<8x384xf32> to vector<8x128xf32>
    %495 = vector.extract_strided_slice %477 {offsets = [0, 256], sizes = [8, 128], strides = [1, 1]} : vector<8x384xf32> to vector<8x128xf32>
    %496 = arith.addf %495, %11 : vector<8x128xf32>
    %497 = arith.mulf %485, %496 : vector<8x128xf32>
    %498 = arith.addf %494, %497 : vector<8x128xf32>
    %499 = math.tanh %498 : vector<8x128xf32>
    %cst_103 = arith.constant 1.000000e+00 : f32
    %500 = vector.broadcast %cst_103 : f32 to vector<8x128xf32>
    %501 = arith.subf %500, %493 : vector<8x128xf32>
    %502 = arith.mulf %501, %499 : vector<8x128xf32>
    %503 = arith.mulf %493, %443 : vector<8x128xf32>
    %504 = arith.addf %502, %503 : vector<8x128xf32>
    %c8_i32 = arith.constant 8 : i32
    %c0_104 = arith.constant 0 : index
    %c0_105 = arith.constant 0 : index
    %505 = vector.load %arg9[%c0_104, %c0_105] : memref<8x128xf32, #tpu.memory_space<vmem>>, vector<8x128xf32>
    tpu.vector_store %arg9[%c0_104, %c0_105], %474 {strides = array<i32>} : memref<8x128xf32, #tpu.memory_space<vmem>>, vector<8x128xf32>,
    %c0_106 = arith.constant 0 : index
    %c0_107 = arith.constant 0 : index
    %506 = vector.load %arg10[%c0_106, %c0_107] : memref<8x128xf32, #tpu.memory_space<vmem>>, vector<8x128xf32>
    tpu.vector_store %arg10[%c0_106, %c0_107], %504 {strides = array<i32>} : memref<8x128xf32, #tpu.memory_space<vmem>>, vector<8x128xf32>,
    %c0_i32_108 = arith.constant 0 : i32
    %507 = arith.cmpi eq, %arg0, %c0_i32_108 : i32
    %508 = arith.extui %507 : i1 to i32
    %c0_i32_109 = arith.constant 0 : i32
    %509 = arith.cmpi ne, %508, %c0_i32_109 : i32
    scf.if %509 {
      %c0_110 = arith.constant 0 : index
      %c0_111 = arith.constant 0 : index
      %510 = vector.load %arg8[%c0_110, %c0_111] : memref<8x128xf32, #tpu.memory_space<vmem>>, vector<8x128xf32>
      tpu.vector_store %arg8[%c0_110, %c0_111], %504 {strides = array<i32>} : memref<8x128xf32, #tpu.memory_space<vmem>>, vector<8x128xf32>,
    } else {
    }
    return
  }
  func.func @transform_0(%arg0: i32) -> (i32, i32, i32) {
    %c0_i32 = arith.constant 0 : i32
    %c0_i32_0 = arith.constant 0 : i32
    %c0_i32_1 = arith.constant 0 : i32
    return %arg0, %c0_i32, %c0_i32_0 : i32, i32, i32
  }
  func.func @transform_1(%arg0: i32) -> (i32, i32) {
    %c0_i32 = arith.constant 0 : i32
    %c0_i32_0 = arith.constant 0 : i32
    %c0_i32_1 = arith.constant 0 : i32
    return %c0_i32, %c0_i32_0 : i32, i32
  }
  func.func @transform_2(%arg0: i32) -> (i32, i32) {
    %c0_i32 = arith.constant 0 : i32
    %c0_i32_0 = arith.constant 0 : i32
    %c0_i32_1 = arith.constant 0 : i32
    return %c0_i32, %c0_i32_0 : i32, i32
  }
  func.func @transform_3(%arg0: i32) -> (i32, i32) {
    %c0_i32 = arith.constant 0 : i32
    %c0_i32_0 = arith.constant 0 : i32
    %c0_i32_1 = arith.constant 0 : i32
    return %c0_i32, %c0_i32_0 : i32, i32
  }
  func.func @transform_4(%arg0: i32) -> (i32, i32) {
    %c0_i32 = arith.constant 0 : i32
    %c0_i32_0 = arith.constant 0 : i32
    %c0_i32_1 = arith.constant 0 : i32
    return %c0_i32, %c0_i32_0 : i32, i32
  }
  func.func @transform_5(%arg0: i32) -> (i32, i32) {
    %c0_i32 = arith.constant 0 : i32
    %c0_i32_0 = arith.constant 0 : i32
    %c0_i32_1 = arith.constant 0 : i32
    return %c0_i32, %c0_i32_0 : i32, i32
  }
  func.func @transform_6(%arg0: i32) -> (i32, i32) {
    %c0_i32 = arith.constant 0 : i32
    %c0_i32_0 = arith.constant 0 : i32
    %c0_i32_1 = arith.constant 0 : i32
    return %c0_i32, %c0_i32_0 : i32, i32
  }
  func.func @transform_7(%arg0: i32) -> (i32, i32) {
    %c0_i32 = arith.constant 0 : i32
    %c0_i32_0 = arith.constant 0 : i32
    %c0_i32_1 = arith.constant 0 : i32
    return %c0_i32, %c0_i32_0 : i32, i32
  }
}

</mosaic_0001>

<llo_original>
// kernel: encoder_forward.2
$region0: #{encoder_forward.2}
  #allocation0 [shape = 'u32[]', space=smem, size = 0x4, offset = 0x4, fixed_abs, tag = 'smem constant byte address 0x4 - core index']
  #allocation1 [shape = 'u32[144,128]{1,0:T(1,128)}', space=vmem, size = 0x12000, scoped, tag = 'internal scratch']
  %s0 = inlined_call_operand.vmem [shape: f32[64,39], index: 0, kind: input, shape index: {}]
  %s1 = inlined_call_operand.hbm [shape: f32[39,384], index: 1, kind: input, shape index: {}]
  %s2 = inlined_call_operand.vmem [shape: f32[1,384], index: 2, kind: input, shape index: {}]
  %s3 = inlined_call_operand.vmem [shape: f32[64,384], index: 3, kind: output, shape index: {}]
  %s4 = sld [smem:[#allocation0]]
  $region26: #{encoder_forward.2} parent=0
    _
  %s6 = ssub.s32 1, %s4
  %s7 = scalar_select 0, %s6, %s4
  $region1: #{encoder_forward.2} parent=0
    #allocation2 [shape = 'u8[61440]{0}', space=vmem, size = 0xf000, scoped, tag = 'input window, operand 1, single buffered']
    #allocation3 [shape = 's32[1]{0}', space=sflag, size = 0x4, scoped, tag = 'scoped memory for encoder_forward.2']
    %8 = vsyncpa [#allocation3], 0
    // Predicated region
    $region2: #{encoder_forward.2} parent=1 // pred_check
      _
    $region3: #{encoder_forward.2} parent=1 // pred_check_branch
      %10 = sbr.rel (0) target = $region5
    $region4: #{encoder_forward.2} parent=1 // pred_region
      _
    $region5: #{encoder_forward.2} parent=1 // pred_fallthru
      _
    // Predicated region
    $region6: #{encoder_forward.2} parent=1 // pred_check
      _
    $region7: #{encoder_forward.2} parent=1 // pred_check_branch
      %12 = sbr.rel (0) target = $region9
    $region8: #{encoder_forward.2} parent=1 // pred_region
      %s14 = ssub.s32 1920, 1920
      %15 = vsyncadd [#allocation3], %s14
      %s16 = sshll.u32 [#allocation2], 4
      %s17 = int_to_ptr.vmem [resolvable:$true] %s16
      %22 = dma.hbm_to_vmem [thread:$0]  %s1, 1920, %s17, [#allocation3], 384, 384, 24
    $region9: #{encoder_forward.2} parent=1 // pred_fallthru
      _
    // Predicated region
    $region10: #{encoder_forward.2} parent=1 // pred_check
      _
    $region11: #{encoder_forward.2} parent=1 // pred_check_branch
      %24 = sbr.rel (0) target = $region13
    $region12: #{encoder_forward.2} parent=1 // pred_region
      _
    $region13: #{encoder_forward.2} parent=1 // pred_fallthru
      _
    // Predicated region
    $region14: #{encoder_forward.2} parent=1 // pred_check
      _
    $region15: #{encoder_forward.2} parent=1 // pred_check_branch
      %26 = sbr.rel (0) target = $region17
    $region16: #{encoder_forward.2} parent=1 // pred_region
      %27 = dma.done [#allocation3], 1920
    $region17: #{encoder_forward.2} parent=1 // pred_fallthru
      _
    %v28 = vld [vmem:[%s0] sm:$0xff]
    %v29 = vld [vmem:[%s0 + $0x8] sm:$0xff]
    %v30 = vld [vmem:[%s0 + $0x10] sm:$0xff]
    %v31 = vld [vmem:[%s0 + $0x18] sm:$0xff]
    %v32 = vld [vmem:[%s0 + $0x20] sm:$0xff]
    %v33 = vld [vmem:[%s0 + $0x28] sm:$0xff]
    %v34 = vld [vmem:[%s0 + $0x30] sm:$0xff]
    %v35 = vld [vmem:[%s0 + $0x38] sm:$0xff]
    %v36 = vld [vmem:[#allocation2] sm:$0xff]
    %v37 = vld [vmem:[#allocation2 + $0x8] sm:$0xff]
    %v38 = vld [vmem:[#allocation2 + $0x10] sm:$0xff]
    %v39 = vld [vmem:[#allocation2 + $0x18] sm:$0xff]
    %v40 = vld [vmem:[#allocation2 + $0x20] sm:$0xff]
    %v41 = vld [vmem:[#allocation2 + $0x28] sm:$0xff]
    %v42 = vld [vmem:[#allocation2 + $0x30] sm:$0xff]
    %v43 = vld [vmem:[#allocation2 + $0x38] sm:$0xff]
    %v44 = vld [vmem:[#allocation2 + $0x40] sm:$0xff]
    %v45 = vld [vmem:[#allocation2 + $0x48] sm:$0xff]
    %v46 = vld [vmem:[#allocation2 + $0x50] sm:$0xff]
    %v47 = vld [vmem:[#allocation2 + $0x58] sm:$0xff]
    %v48 = vld [vmem:[#allocation2 + $0x60] sm:$0x7f]
    %v49 = vld [vmem:[#allocation2 + $0x68] sm:$0x7f]
    %v50 = vld [vmem:[#allocation2 + $0x70] sm:$0x7f]
    %v51 = vld [vmem:[%s2] sm:$0x7]
    %v53 = vlaneseq
    %v54 = vshrl.u32 %v53, 7
    %v55 = vsub.s32 0, %v54
    %v56 = vrot.slane %v51, %v55
    %v57 = vlaneseq
    %v58 = vshrl.u32 %v57, 7
    %v59 = vsub.s32 1, %v58
    %v60 = vrot.slane %v51, %v59
    %v61 = vlaneseq
    %v62 = vshrl.u32 %v61, 7
    %v63 = vsub.s32 2, %v62
    %v64 = vrot.slane %v51, %v63
    %vm68 = vcmask 318464
    %v70 = vsel %vm68, %v28, 0
    %v73 = vsel %vm68, %v29, 0
    %v76 = vsel %vm68, %v30, 0
    %v79 = vsel %vm68, %v31, 0
    %v82 = vsel %vm68, %v32, 0
    %v85 = vsel %vm68, %v33, 0
    %v88 = vsel %vm68, %v34, 0
    %v91 = vsel %vm68, %v35, 0
    %vm93 = vcmask 1046528
    %v95 = vsel %vm93, %v48, 0
    %v98 = vsel %vm93, %v49, 0
    %v101 = vsel %vm93, %v50, 0
    %103 = vmatprep.subr.mxu0 0.0
    %104 = vmatpush1.msra.mxu0 0.0
    %105 = vmatprep.subr.mxu0 0.0
    %106 = vmatpush1.msra.mxu0 0.0
    %107 = vmatprep.subr.mxu0 0.0
    %108 = vmatpush1.msra.mxu0 0.0
    %109 = vmatprep.subr.mxu0 0.0
    %110 = vmatpush1.msra.mxu0 0.0
    %111 = vmatprep.subr.mxu0 0.0
    %112 = vmatpush1.msra.mxu0 0.0
    %113 = vmatprep.subr.mxu0 0.0
    %114 = vmatpush1.msra.mxu0 0.0
    %115 = vmatprep.subr.mxu0 0.0
    %116 = vmatpush1.msra.mxu0 0.0
    %117 = vmatprep.subr.mxu0 0.0
    %118 = vmatpush1.msra.mxu0 0.0
    %119 = vmatprep.subr.mxu0 0.0
    %120 = vmatpush1.msra.mxu0 0.0
    %121 = vmatprep.subr.mxu0 0.0
    %122 = vmatpush1.msra.mxu0 0.0
    %123 = vmatprep.subr.mxu0 0.0
    %124 = vmatpush1.msra.mxu0 0.0
    %125 = vmatprep.subr.mxu0 %v98
    %126 = vmatpush1.msra.mxu0 %v95
    %127 = vmatprep.subr.mxu0 %v46
    %128 = vmatpush1.msra.mxu0 %v45
    %129 = vmatprep.subr.mxu0 %v43
    %130 = vmatpush1.msra.mxu0 %v42
    %131 = vmatprep.subr.mxu0 %v40
    %132 = vmatpush1.msra.mxu0 %v39
    %133 = vmatprep.subr.mxu0 %v37
    %134 = vmatpush1.msra.mxu0 %v36
    %135 = vmatprep.subr.mxu0 0.0
    %136 = vmatpush2.msra.mxu0 0.0
    %137 = vmatprep.subr.mxu0 0.0
    %138 = vmatpush2.msra.mxu0 0.0
    %139 = vmatprep.subr.mxu0 0.0
    %140 = vmatpush2.msra.mxu0 0.0
    %141 = vmatprep.subr.mxu0 0.0
    %142 = vmatpush2.msra.mxu0 0.0
    %143 = vmatprep.subr.mxu0 0.0
    %144 = vmatpush2.msra.mxu0 0.0
    %145 = vmatprep.subr.mxu0 0.0
    %146 = vmatpush2.msra.mxu0 0.0
    %147 = vmatprep.subr.mxu0 0.0
    %148 = vmatpush2.msra.mxu0 0.0
    %149 = vmatprep.subr.mxu0 0.0
    %150 = vmatpush2.msra.mxu0 0.0
    %151 = vmatprep.subr.mxu0 0.0
    %152 = vmatpush2.msra.mxu0 0.0
    %153 = vmatprep.subr.mxu0 0.0
    %154 = vmatpush2.msra.mxu0 0.0
    %155 = vmatprep.subr.mxu0 0.0
    %156 = vmatpush2.msra.mxu0 0.0
    %157 = vmatprep.subr.mxu0 0.0
    %158 = vmatpush2.msra.mxu0 0.0
    %159 = vmatprep.subr.mxu0 0.0
    %160 = vmatpush2.msra.mxu0 0.0
    %161 = vmatprep.subr.mxu0 0.0
    %162 = vmatpush2.msra.mxu0 0.0
    %163 = vmatprep.subr.mxu0 0.0
    %164 = vmatpush2.msra.mxu0 0.0
    %165 = vmatprep.subr.mxu0 0.0
    %166 = vmatpush2.msra.mxu0 0.0
    %167 = vmatprep.mubr.f32.mxu0 0.0
    %168 = vmatmul.mubr.f32.gmra.mxu0 %v70
    %v169 = vpop.f32.mrf.mxu0
    %v170 = vadd.f32 %v56, %v169
    %v171 = vpop.f32.mrf.mxu0
    %v172 = vadd.f32 %v60, %v171
    %173 = vmatprep.mubr.f32.mxu0 0.0
    %174 = vmatmul.mubr.f32.gmra.mxu0 %v73
    %v175 = vpop.f32.mrf.mxu0
    %v176 = vadd.f32 %v56, %v175
    %v177 = vpop.f32.mrf.mxu0
    %v178 = vadd.f32 %v60, %v177
    %179 = vmatprep.mubr.f32.mxu0 0.0
    %180 = vmatmul.mubr.f32.gmra.mxu0 %v76
    %v181 = vpop.f32.mrf.mxu0
    %v182 = vadd.f32 %v56, %v181
    %v183 = vpop.f32.mrf.mxu0
    %v184 = vadd.f32 %v60, %v183
    %185 = vmatprep.mubr.f32.mxu0 0.0
    %186 = vmatmul.mubr.f32.gmra.mxu0 %v79
    %v187 = vpop.f32.mrf.mxu0
    %v188 = vadd.f32 %v56, %v187
    %v189 = vpop.f32.mrf.mxu0
    %v190 = vadd.f32 %v60, %v189
    %191 = vmatprep.mubr.f32.mxu0 0.0
    %192 = vmatmul.mubr.f32.gmra.mxu0 %v82
    %v193 = vpop.f32.mrf.mxu0
    %v194 = vadd.f32 %v56, %v193
    %v195 = vpop.f32.mrf.mxu0
    %v196 = vadd.f32 %v60, %v195
    %197 = vmatprep.mubr.f32.mxu0 0.0
    %198 = vmatmul.mubr.f32.gmra.mxu0 %v85
    %v199 = vpop.f32.mrf.mxu0
    %v200 = vadd.f32 %v56, %v199
    %v201 = vpop.f32.mrf.mxu0
    %v202 = vadd.f32 %v60, %v201
    %203 = vmatprep.mubr.f32.mxu0 0.0
    %204 = vmatmul.mubr.f32.gmra.mxu0 %v88
    %v205 = vpop.f32.mrf.mxu0
    %v206 = vadd.f32 %v56, %v205
    %v207 = vpop.f32.mrf.mxu0
    %v208 = vadd.f32 %v60, %v207
    %209 = vmatprep.mubr.f32.mxu0 0.0
    %210 = vmatmul.mubr.f32.gmra.mxu0 %v91
    %v211 = vpop.f32.mrf.mxu0
    %v212 = vadd.f32 %v56, %v211
    %v213 = vpop.f32.mrf.mxu0
    %v214 = vadd.f32 %v60, %v213
    %215 = vdwg.mxu0
    %216 = vmatprep.subr.mxu0 0.0
    %217 = vmatpush1.msra.mxu0 0.0
    %218 = vmatprep.subr.mxu0 0.0
    %219 = vmatpush1.msra.mxu0 0.0
    %220 = vmatprep.subr.mxu0 0.0
    %221 = vmatpush1.msra.mxu0 0.0
    %222 = vmatprep.subr.mxu0 0.0
    %223 = vmatpush1.msra.mxu0 0.0
    %224 = vmatprep.subr.mxu0 0.0
    %225 = vmatpush1.msra.mxu0 0.0
    %226 = vmatprep.subr.mxu0 0.0
    %227 = vmatpush1.msra.mxu0 0.0
    %228 = vmatprep.subr.mxu0 0.0
    %229 = vmatpush1.msra.mxu0 0.0
    %230 = vmatprep.subr.mxu0 0.0
    %231 = vmatpush1.msra.mxu0 0.0
    %232 = vmatprep.subr.mxu0 0.0
    %233 = vmatpush1.msra.mxu0 0.0
    %234 = vmatprep.subr.mxu0 0.0
    %235 = vmatpush1.msra.mxu0 0.0
    %236 = vmatprep.subr.mxu0 0.0
    %237 = vmatpush1.msra.mxu0 0.0
    %238 = vmatprep.subr.mxu0 0.0
    %239 = vmatpush1.msra.mxu0 %v101
    %240 = vmatprep.subr.mxu0 0.0
    %241 = vmatpush1.msra.mxu0 %v47
    %242 = vmatprep.subr.mxu0 0.0
    %243 = vmatpush1.msra.mxu0 %v44
    %244 = vmatprep.subr.mxu0 0.0
    %245 = vmatpush1.msra.mxu0 %v41
    %246 = vmatprep.subr.mxu0 0.0
    %247 = vmatpush1.msra.mxu0 %v38
    %248 = vmatprep.subr.mxu0 0.0
    %249 = vmatpush2.msra.mxu0 0.0
    %250 = vmatprep.subr.mxu0 0.0
    %251 = vmatpush2.msra.mxu0 0.0
    %252 = vmatprep.subr.mxu0 0.0
    %253 = vmatpush2.msra.mxu0 0.0
    %254 = vmatprep.subr.mxu0 0.0
    %255 = vmatpush2.msra.mxu0 0.0
    %256 = vmatprep.subr.mxu0 0.0
    %257 = vmatpush2.msra.mxu0 0.0
    %258 = vmatprep.subr.mxu0 0.0
    %259 = vmatpush2.msra.mxu0 0.0
    %260 = vmatprep.subr.mxu0 0.0
    %261 = vmatpush2.msra.mxu0 0.0
    %262 = vmatprep.subr.mxu0 0.0
    %263 = vmatpush2.msra.mxu0 0.0
    %264 = vmatprep.subr.mxu0 0.0
    %265 = vmatpush2.msra.mxu0 0.0
    %266 = vmatprep.subr.mxu0 0.0
    %267 = vmatpush2.msra.mxu0 0.0
    %268 = vmatprep.subr.mxu0 0.0
    %269 = vmatpush2.msra.mxu0 0.0
    %270 = vmatprep.subr.mxu0 0.0
    %271 = vmatpush2.msra.mxu0 0.0
    %272 = vmatprep.subr.mxu0 0.0
    %273 = vmatpush2.msra.mxu0 0.0
    %274 = vmatprep.subr.mxu0 0.0
    %275 = vmatpush2.msra.mxu0 0.0
    %276 = vmatprep.subr.mxu0 0.0
    %277 = vmatpush2.msra.mxu0 0.0
    %278 = vmatprep.subr.mxu0 0.0
    %279 = vmatpush2.msra.mxu0 0.0
    %280 = vmatprep.mubr.f32.mxu0 0.0
    %281 = vmatmul.mubr.f32.gmra.mxu0 %v70
    %v282 = vpop.f32.mrf.mxu0
    %v283 = vadd.f32 %v64, %v282
    %v284 = vpop.f32.mrf.mxu0
    %285 = vmatprep.mubr.f32.mxu0 0.0
    %286 = vmatmul.mubr.f32.gmra.mxu0 %v73
    %v287 = vpop.f32.mrf.mxu0
    %v288 = vadd.f32 %v64, %v287
    %v289 = vpop.f32.mrf.mxu0
    %290 = vmatprep.mubr.f32.mxu0 0.0
    %291 = vmatmul.mubr.f32.gmra.mxu0 %v76
    %v292 = vpop.f32.mrf.mxu0
    %v293 = vadd.f32 %v64, %v292
    %v294 = vpop.f32.mrf.mxu0
    %295 = vmatprep.mubr.f32.mxu0 0.0
    %296 = vmatmul.mubr.f32.gmra.mxu0 %v79
    %v297 = vpop.f32.mrf.mxu0
    %v298 = vadd.f32 %v64, %v297
    %v299 = vpop.f32.mrf.mxu0
    %300 = vmatprep.mubr.f32.mxu0 0.0
    %301 = vmatmul.mubr.f32.gmra.mxu0 %v82
    %v302 = vpop.f32.mrf.mxu0
    %v303 = vadd.f32 %v64, %v302
    %v304 = vpop.f32.mrf.mxu0
    %305 = vmatprep.mubr.f32.mxu0 0.0
    %306 = vmatmul.mubr.f32.gmra.mxu0 %v85
    %v307 = vpop.f32.mrf.mxu0
    %v308 = vadd.f32 %v64, %v307
    %v309 = vpop.f32.mrf.mxu0
    %310 = vmatprep.mubr.f32.mxu0 0.0
    %311 = vmatmul.mubr.f32.gmra.mxu0 %v88
    %v312 = vpop.f32.mrf.mxu0
    %v313 = vadd.f32 %v64, %v312
    %v314 = vpop.f32.mrf.mxu0
    %315 = vmatprep.mubr.f32.mxu0 0.0
    %316 = vmatmul.mubr.f32.gmra.mxu0 %v91
    %v317 = vpop.f32.mrf.mxu0
    %v318 = vadd.f32 %v64, %v317
    %v319 = vpop.f32.mrf.mxu0
    %320 = vdwg.mxu0
    %321 = vst [vmem:[%s3] sm:$0xff] %v170
    %322 = vst [vmem:[%s3 + $0x8] sm:$0xff] %v172
    %323 = vst [vmem:[%s3 + $0x10] sm:$0xff] %v283
    %324 = vst [vmem:[%s3 + $0x18] sm:$0xff] %v176
    %325 = vst [vmem:[%s3 + $0x20] sm:$0xff] %v178
    %326 = vst [vmem:[%s3 + $0x28] sm:$0xff] %v288
    %327 = vst [vmem:[%s3 + $0x30] sm:$0xff] %v182
    %328 = vst [vmem:[%s3 + $0x38] sm:$0xff] %v184
    %329 = vst [vmem:[%s3 + $0x40] sm:$0xff] %v293
    %330 = vst [vmem:[%s3 + $0x48] sm:$0xff] %v188
    %331 = vst [vmem:[%s3 + $0x50] sm:$0xff] %v190
    %332 = vst [vmem:[%s3 + $0x58] sm:$0xff] %v298
    %333 = vst [vmem:[%s3 + $0x60] sm:$0xff] %v194
    %334 = vst [vmem:[%s3 + $0x68] sm:$0xff] %v196
    %335 = vst [vmem:[%s3 + $0x70] sm:$0xff] %v303
    %336 = vst [vmem:[%s3 + $0x78] sm:$0xff] %v200
    %337 = vst [vmem:[%s3 + $0x80] sm:$0xff] %v202
    %338 = vst [vmem:[%s3 + $0x88] sm:$0xff] %v308
    %339 = vst [vmem:[%s3 + $0x90] sm:$0xff] %v206
    %340 = vst [vmem:[%s3 + $0x98] sm:$0xff] %v208
    %341 = vst [vmem:[%s3 + $0xa0] sm:$0xff] %v313
    %342 = vst [vmem:[%s3 + $0xa8] sm:$0xff] %v212
    %343 = vst [vmem:[%s3 + $0xb0] sm:$0xff] %v214
    %344 = vst [vmem:[%s3 + $0xb8] sm:$0xff] %v318
    // Predicated region
    $region18: #{encoder_forward.2} parent=1 // pred_check
      _
    $region19: #{encoder_forward.2} parent=1 // pred_check_branch
      %346 = sbr.rel (0) target = $region21
    $region20: #{encoder_forward.2} parent=1 // pred_region
      _
    $region21: #{encoder_forward.2} parent=1 // pred_fallthru
      _
    // Predicated region
    $region22: #{encoder_forward.2} parent=1 // pred_check
      _
    $region23: #{encoder_forward.2} parent=1 // pred_check_branch
      %348 = sbr.rel (0) target = $region25
    $region24: #{encoder_forward.2} parent=1 // pred_region
      _
    $region25: #{encoder_forward.2} parent=1 // pred_fallthru
      _
    %349 = vsyncpa [#allocation3], 1

// kernel: encoder_forward.3
$region0: #{encoder_forward.3}
  #allocation0 [shape = 'u32[]', space=smem, size = 0x4, offset = 0x4, fixed_abs, tag = 'smem constant byte address 0x4 - core index']
  #allocation1 [shape = 'u32[144,128]{1,0:T(1,128)}', space=vmem, size = 0x12000, scoped, tag = 'internal scratch']
  #allocation2 [shape = 'f32[8,128]{1,0:T(8,128)}', space=vmem, size = 0x1000, scoped, tag = 'scratch operand']
  #allocation3 [shape = 'f32[8,128]{1,0:T(8,128)}', space=vmem, size = 0x1000, scoped, tag = 'scratch operand']
  %s0 = inlined_call_operand.vmem [shape: f32[8,8,384], index: 0, kind: input, shape index: {}]
  %s1 = inlined_call_operand.vmem [shape: f32[128,384], index: 1, kind: input, shape index: {}]
  %s2 = inlined_call_operand.vmem [shape: f32[1,128], index: 2, kind: input, shape index: {}]
  %s3 = inlined_call_operand.vmem [shape: f32[128,384], index: 3, kind: input, shape index: {}]
  %s4 = inlined_call_operand.vmem [shape: f32[128,384], index: 4, kind: input, shape index: {}]
  %s5 = inlined_call_operand.vmem [shape: f32[1,384], index: 5, kind: input, shape index: {}]
  %s6 = inlined_call_operand.vmem [shape: f32[1,128], index: 6, kind: input, shape index: {}]
  %s7 = inlined_call_operand.vmem [shape: f32[8,128], index: 7, kind: output, shape index: {}]
  %s8 = sld [smem:[#allocation0]]
  $region46: #{encoder_forward.3} parent=0
    _
  %s10 = ssub.s32 1, %s8
  %s11 = scalar_select 0, %s10, %s8
  // Predicated region
  $region2: #{encoder_forward.3} parent=0 // pred_check
    _
  $region3: #{encoder_forward.3} parent=0 // pred_check_branch
    %13 = sbr.rel (0) target = $region5
  $region4: #{encoder_forward.3} parent=0 // pred_region
    _
  $region5: #{encoder_forward.3} parent=0 // pred_fallthru
    _
  // Predicated region
  $region6: #{encoder_forward.3} parent=0 // pred_check
    _
  $region7: #{encoder_forward.3} parent=0 // pred_check_branch
    %15 = sbr.rel (0) target = $region9
  $region8: #{encoder_forward.3} parent=0 // pred_region
    _
  $region9: #{encoder_forward.3} parent=0 // pred_fallthru
    _
  // Predicated region
  $region10: #{encoder_forward.3} parent=0 // pred_check
    _
  $region11: #{encoder_forward.3} parent=0 // pred_check_branch
    %17 = sbr.rel (0) target = $region13
  $region12: #{encoder_forward.3} parent=0 // pred_region
    _
  $region13: #{encoder_forward.3} parent=0 // pred_fallthru
    _
  // Predicated region
  $region14: #{encoder_forward.3} parent=0 // pred_check
    _
  $region15: #{encoder_forward.3} parent=0 // pred_check_branch
    %19 = sbr.rel (0) target = $region17
  $region16: #{encoder_forward.3} parent=0 // pred_region
    _
  $region17: #{encoder_forward.3} parent=0 // pred_fallthru
    _
  // Predicated region
  $region18: #{encoder_forward.3} parent=0 // pred_check
    _
  $region19: #{encoder_forward.3} parent=0 // pred_check_branch
    %21 = sbr.rel (0) target = $region21
  $region20: #{encoder_forward.3} parent=0 // pred_region
    _
  $region21: #{encoder_forward.3} parent=0 // pred_fallthru
    _
  // Predicated region
  $region22: #{encoder_forward.3} parent=0 // pred_check
    _
  $region23: #{encoder_forward.3} parent=0 // pred_check_branch
    %23 = sbr.rel (0) target = $region25
  $region24: #{encoder_forward.3} parent=0 // pred_region
    _
  $region25: #{encoder_forward.3} parent=0 // pred_fallthru
    _
  // Predicated region
  $region26: #{encoder_forward.3} parent=0 // pred_check
    _
  $region27: #{encoder_forward.3} parent=0 // pred_check_branch
    %25 = sbr.rel (0) target = $region29
  $region28: #{encoder_forward.3} parent=0 // pred_region
    _
  $region29: #{encoder_forward.3} parent=0 // pred_fallthru
    _
  %p26 = scmp.eq.s32.totalorder 0, 0
  // Predicated region
  $region30: #{encoder_forward.3} parent=0 // pred_check
    %p27 = pneg %p26
  $region31: #{encoder_forward.3} parent=0 // pred_check_branch
    %29 = sbr.rel (%p27) target = $region33
  $region32: #{encoder_forward.3} parent=0 // pred_region
    %30 = vst [vmem:[#allocation2] sm:$0xff] 0.0
    %31 = vst [vmem:[#allocation3] sm:$0xff] 0.0
  $region33: #{encoder_forward.3} parent=0 // pred_fallthru
    _
  %v32 = vld [vmem:[%s1] sm:$0xff]
  %v33 = vld [vmem:[%s1 + $0x8] sm:$0xff]
  %v34 = vld [vmem:[%s1 + $0x10] sm:$0xff]
  %v35 = vld [vmem:[%s1 + $0x18] sm:$0xff]
  %v36 = vld [vmem:[%s1 + $0x20] sm:$0xff]
  %v37 = vld [vmem:[%s1 + $0x28] sm:$0xff]
  %v38 = vld [vmem:[%s1 + $0x30] sm:$0xff]
  %v39 = vld [vmem:[%s1 + $0x38] sm:$0xff]
  %v40 = vld [vmem:[%s1 + $0x40] sm:$0xff]
  %v41 = vld [vmem:[%s1 + $0x48] sm:$0xff]
  %v42 = vld [vmem:[%s1 + $0x50] sm:$0xff]
  %v43 = vld [vmem:[%s1 + $0x58] sm:$0xff]
  %v44 = vld [vmem:[%s1 + $0x60] sm:$0xff]
  %v45 = vld [vmem:[%s1 + $0x68] sm:$0xff]
  %v46 = vld [vmem:[%s1 + $0x70] sm:$0xff]
  %v47 = vld [vmem:[%s1 + $0x78] sm:$0xff]
  %v48 = vld [vmem:[%s1 + $0x80] sm:$0xff]
  %v49 = vld [vmem:[%s1 + $0x88] sm:$0xff]
  %v50 = vld [vmem:[%s1 + $0x90] sm:$0xff]
  %v51 = vld [vmem:[%s1 + $0x98] sm:$0xff]
  %v52 = vld [vmem:[%s1 + $0xa0] sm:$0xff]
  %v53 = vld [vmem:[%s1 + $0xa8] sm:$0xff]
  %v54 = vld [vmem:[%s1 + $0xb0] sm:$0xff]
  %v55 = vld [vmem:[%s1 + $0xb8] sm:$0xff]
  %v56 = vld [vmem:[%s1 + $0xc0] sm:$0xff]
  %v57 = vld [vmem:[%s1 + $0xc8] sm:$0xff]
  %v58 = vld [vmem:[%s1 + $0xd0] sm:$0xff]
  %v59 = vld [vmem:[%s1 + $0xd8] sm:$0xff]
  %v60 = vld [vmem:[%s1 + $0xe0] sm:$0xff]
  %v61 = vld [vmem:[%s1 + $0xe8] sm:$0xff]
  %v62 = vld [vmem:[%s1 + $0xf0] sm:$0xff]
  %v63 = vld [vmem:[%s1 + $0xf8] sm:$0xff]
  %v64 = vld [vmem:[%s1 + $0x100] sm:$0xff]
  %v65 = vld [vmem:[%s1 + $0x108] sm:$0xff]
  %v66 = vld [vmem:[%s1 + $0x110] sm:$0xff]
  %v67 = vld [vmem:[%s1 + $0x118] sm:$0xff]
  %v68 = vld [vmem:[%s1 + $0x120] sm:$0xff]
  %v69 = vld [vmem:[%s1 + $0x128] sm:$0xff]
  %v70 = vld [vmem:[%s1 + $0x130] sm:$0xff]
  %v71 = vld [vmem:[%s1 + $0x138] sm:$0xff]
  %v72 = vld [vmem:[%s1 + $0x140] sm:$0xff]
  %v73 = vld [vmem:[%s1 + $0x148] sm:$0xff]
  %v74 = vld [vmem:[%s1 + $0x150] sm:$0xff]
  %v75 = vld [vmem:[%s1 + $0x158] sm:$0xff]
  %v76 = vld [vmem:[%s1 + $0x160] sm:$0xff]
  %v77 = vld [vmem:[%s1 + $0x168] sm:$0xff]
  %v78 = vld [vmem:[%s1 + $0x170] sm:$0xff]
  %v79 = vld [vmem:[%s1 + $0x178] sm:$0xff]
  %v80 = vld [vmem:[%s3] sm:$0xff]
  %v81 = vld [vmem:[%s3 + $0x8] sm:$0xff]
  %v82 = vld [vmem:[%s3 + $0x10] sm:$0xff]
  %v83 = vld [vmem:[%s3 + $0x18] sm:$0xff]
  %v84 = vld [vmem:[%s3 + $0x20] sm:$0xff]
  %v85 = vld [vmem:[%s3 + $0x28] sm:$0xff]
  %v86 = vld [vmem:[%s3 + $0x30] sm:$0xff]
  %v87 = vld [vmem:[%s3 + $0x38] sm:$0xff]
  %v88 = vld [vmem:[%s3 + $0x40] sm:$0xff]
  %v89 = vld [vmem:[%s3 + $0x48] sm:$0xff]
  %v90 = vld [vmem:[%s3 + $0x50] sm:$0xff]
  %v91 = vld [vmem:[%s3 + $0x58] sm:$0xff]
  %v92 = vld [vmem:[%s3 + $0x60] sm:$0xff]
  %v93 = vld [vmem:[%s3 + $0x68] sm:$0xff]
  %v94 = vld [vmem:[%s3 + $0x70] sm:$0xff]
  %v95 = vld [vmem:[%s3 + $0x78] sm:$0xff]
  %v96 = vld [vmem:[%s3 + $0x80] sm:$0xff]
  %v97 = vld [vmem:[%s3 + $0x88] sm:$0xff]
  %v98 = vld [vmem:[%s3 + $0x90] sm:$0xff]
  %v99 = vld [vmem:[%s3 + $0x98] sm:$0xff]
  %v100 = vld [vmem:[%s3 + $0xa0] sm:$0xff]
  %v101 = vld [vmem:[%s3 + $0xa8] sm:$0xff]
  %v102 = vld [vmem:[%s3 + $0xb0] sm:$0xff]
  %v103 = vld [vmem:[%s3 + $0xb8] sm:$0xff]
  %v104 = vld [vmem:[%s3 + $0xc0] sm:$0xff]
  %v105 = vld [vmem:[%s3 + $0xc8] sm:$0xff]
  %v106 = vld [vmem:[%s3 + $0xd0] sm:$0xff]
  %v107 = vld [vmem:[%s3 + $0xd8] sm:$0xff]
  %v108 = vld [vmem:[%s3 + $0xe0] sm:$0xff]
  %v109 = vld [vmem:[%s3 + $0xe8] sm:$0xff]
  %v110 = vld [vmem:[%s3 + $0xf0] sm:$0xff]
  %v111 = vld [vmem:[%s3 + $0xf8] sm:$0xff]
  %v112 = vld [vmem:[%s3 + $0x100] sm:$0xff]
  %v113 = vld [vmem:[%s3 + $0x108] sm:$0xff]
  %v114 = vld [vmem:[%s3 + $0x110] sm:$0xff]
  %v115 = vld [vmem:[%s3 + $0x118] sm:$0xff]
  %v116 = vld [vmem:[%s3 + $0x120] sm:$0xff]
  %v117 = vld [vmem:[%s3 + $0x128] sm:$0xff]
  %v118 = vld [vmem:[%s3 + $0x130] sm:$0xff]
  %v119 = vld [vmem:[%s3 + $0x138] sm:$0xff]
  %v120 = vld [vmem:[%s3 + $0x140] sm:$0xff]
  %v121 = vld [vmem:[%s3 + $0x148] sm:$0xff]
  %v122 = vld [vmem:[%s3 + $0x150] sm:$0xff]
  %v123 = vld [vmem:[%s3 + $0x158] sm:$0xff]
  %v124 = vld [vmem:[%s3 + $0x160] sm:$0xff]
  %v125 = vld [vmem:[%s3 + $0x168] sm:$0xff]
  %v126 = vld [vmem:[%s3 + $0x170] sm:$0xff]
  %v127 = vld [vmem:[%s3 + $0x178] sm:$0xff]
  %v128 = vld [vmem:[%s4] sm:$0xff]
  %v129 = vld [vmem:[%s4 + $0x8] sm:$0xff]
  %v130 = vld [vmem:[%s4 + $0x10] sm:$0xff]
  %v131 = vld [vmem:[%s4 + $0x18] sm:$0xff]
  %v132 = vld [vmem:[%s4 + $0x20] sm:$0xff]
  %v133 = vld [vmem:[%s4 + $0x28] sm:$0xff]
  %v134 = vld [vmem:[%s4 + $0x30] sm:$0xff]
  %v135 = vld [vmem:[%s4 + $0x38] sm:$0xff]
  %v136 = vld [vmem:[%s4 + $0x40] sm:$0xff]
  %v137 = vld [vmem:[%s4 + $0x48] sm:$0xff]
  %v138 = vld [vmem:[%s4 + $0x50] sm:$0xff]
  %v139 = vld [vmem:[%s4 + $0x58] sm:$0xff]
  %v140 = vld [vmem:[%s4 + $0x60] sm:$0xff]
  %v141 = vld [vmem:[%s4 + $0x68] sm:$0xff]
  %v142 = vld [vmem:[%s4 + $0x70] sm:$0xff]
  %v143 = vld [vmem:[%s4 + $0x78] sm:$0xff]
  %v144 = vld [vmem:[%s4 + $0x80] sm:$0xff]
  %v145 = vld [vmem:[%s4 + $0x88] sm:$0xff]
  %v146 = vld [vmem:[%s4 + $0x90] sm:$0xff]
  %v147 = vld [vmem:[%s4 + $0x98] sm:$0xff]
  %v148 = vld [vmem:[%s4 + $0xa0] sm:$0xff]
  %v149 = vld [vmem:[%s4 + $0xa8] sm:$0xff]
  %v150 = vld [vmem:[%s4 + $0xb0] sm:$0xff]
  %v151 = vld [vmem:[%s4 + $0xb8] sm:$0xff]
  %v152 = vld [vmem:[%s4 + $0xc0] sm:$0xff]
  %v153 = vld [vmem:[%s4 + $0xc8] sm:$0xff]
  %v154 = vld [vmem:[%s4 + $0xd0] sm:$0xff]
  %v155 = vld [vmem:[%s4 + $0xd8] sm:$0xff]
  %v156 = vld [vmem:[%s4 + $0xe0] sm:$0xff]
  %v157 = vld [vmem:[%s4 + $0xe8] sm:$0xff]
  %v158 = vld [vmem:[%s4 + $0xf0] sm:$0xff]
  %v159 = vld [vmem:[%s4 + $0xf8] sm:$0xff]
  %v160 = vld [vmem:[%s4 + $0x100] sm:$0xff]
  %v161 = vld [vmem:[%s4 + $0x108] sm:$0xff]
  %v162 = vld [vmem:[%s4 + $0x110] sm:$0xff]
  %v163 = vld [vmem:[%s4 + $0x118] sm:$0xff]
  %v164 = vld [vmem:[%s4 + $0x120] sm:$0xff]
  %v165 = vld [vmem:[%s4 + $0x128] sm:$0xff]
  %v166 = vld [vmem:[%s4 + $0x130] sm:$0xff]
  %v167 = vld [vmem:[%s4 + $0x138] sm:$0xff]
  %v168 = vld [vmem:[%s4 + $0x140] sm:$0xff]
  %v169 = vld [vmem:[%s4 + $0x148] sm:$0xff]
  %v170 = vld [vmem:[%s4 + $0x150] sm:$0xff]
  %v171 = vld [vmem:[%s4 + $0x158] sm:$0xff]
  %v172 = vld [vmem:[%s4 + $0x160] sm:$0xff]
  %v173 = vld [vmem:[%s4 + $0x168] sm:$0xff]
  %v174 = vld [vmem:[%s4 + $0x170] sm:$0xff]
  %v175 = vld [vmem:[%s4 + $0x178] sm:$0xff]
  %v176 = vld [vmem:[%s2] sm:$0x1]
  %v178 = vlaneseq
  %v179 = vshrl.u32 %v178, 7
  %v180 = vsub.s32 0, %v179
  %v181 = vrot.slane %v176, %v180
  %v183 = vld [vmem:[%s6] sm:$0x1]
  %v185 = vlaneseq
  %v186 = vshrl.u32 %v185, 7
  %v187 = vsub.s32 0, %v186
  %v188 = vrot.slane %v183, %v187
  %v190 = vld [vmem:[%s5] sm:$0x7]
  %v192 = vlaneseq
  %v193 = vshrl.u32 %v192, 7
  %v194 = vsub.s32 0, %v193
  %v195 = vrot.slane %v190, %v194
  %v196 = vlaneseq
  %v197 = vshrl.u32 %v196, 7
  %v198 = vsub.s32 1, %v197
  %v199 = vrot.slane %v190, %v198
  %v200 = vlaneseq
  %v201 = vshrl.u32 %v200, 7
  %v202 = vsub.s32 2, %v201
  %v203 = vrot.slane %v190, %v202
  %v207 = vld [vmem:[#allocation2] sm:$0xff]
  %v208 = vld [vmem:[#allocation3] sm:$0xff]
  %v209 = vld [vmem:[%s0] sm:$0xff]
  %v210 = vld [vmem:[%s0 + $0x8] sm:$0xff]
  %v211 = vld [vmem:[%s0 + $0x10] sm:$0xff]
  %212 = vmatprep.subr.mxu0 %v78
  %213 = vmatpush1.msra.mxu0 %v77
  %214 = vmatprep.subr.mxu0 %v75
  %215 = vmatpush1.msra.mxu0 %v74
  %216 = vmatprep.subr.mxu0 %v72
  %217 = vmatpush1.msra.mxu0 %v71
  %218 = vmatprep.subr.mxu0 %v69
  %219 = vmatpush1.msra.mxu0 %v68
  %220 = vmatprep.subr.mxu0 %v66
  %221 = vmatpush1.msra.mxu0 %v65
  %222 = vmatprep.subr.mxu0 %v63
  %223 = vmatpush1.msra.mxu0 %v62
  %224 = vmatprep.subr.mxu0 %v60
  %225 = vmatpush1.msra.mxu0 %v59
  %226 = vmatprep.subr.mxu0 %v57
  %227 = vmatpush1.msra.mxu0 %v56
  %228 = vmatprep.subr.mxu0 %v54
  %229 = vmatpush1.msra.mxu0 %v53
  %230 = vmatprep.subr.mxu0 %v51
  %231 = vmatpush1.msra.mxu0 %v50
  %232 = vmatprep.subr.mxu0 %v48
  %233 = vmatpush1.msra.mxu0 %v47
  %234 = vmatprep.subr.mxu0 %v45
  %235 = vmatpush1.msra.mxu0 %v44
  %236 = vmatprep.subr.mxu0 %v42
  %237 = vmatpush1.msra.mxu0 %v41
  %238 = vmatprep.subr.mxu0 %v39
  %239 = vmatpush1.msra.mxu0 %v38
  %240 = vmatprep.subr.mxu0 %v36
  %241 = vmatpush1.msra.mxu0 %v35
  %242 = vmatprep.subr.mxu0 %v33
  %243 = vmatpush1.msra.mxu0 %v32
  %244 = vmatprep.subr.mxu0 0.0
  %245 = vmatpush2.msra.mxu0 0.0
  %246 = vmatprep.subr.mxu0 0.0
  %247 = vmatpush2.msra.mxu0 0.0
  %248 = vmatprep.subr.mxu0 0.0
  %249 = vmatpush2.msra.mxu0 0.0
  %250 = vmatprep.subr.mxu0 0.0
  %251 = vmatpush2.msra.mxu0 0.0
  %252 = vmatprep.subr.mxu0 0.0
  %253 = vmatpush2.msra.mxu0 0.0
  %254 = vmatprep.subr.mxu0 0.0
  %255 = vmatpush2.msra.mxu0 0.0
  %256 = vmatprep.subr.mxu0 0.0
  %257 = vmatpush2.msra.mxu0 0.0
  %258 = vmatprep.subr.mxu0 0.0
  %259 = vmatpush2.msra.mxu0 0.0
  %260 = vmatprep.subr.mxu0 0.0
  %261 = vmatpush2.msra.mxu0 0.0
  %262 = vmatprep.subr.mxu0 0.0
  %263 = vmatpush2.msra.mxu0 0.0
  %264 = vmatprep.subr.mxu0 0.0
  %265 = vmatpush2.msra.mxu0 0.0
  %266 = vmatprep.subr.mxu0 0.0
  %267 = vmatpush2.msra.mxu0 0.0
  %268 = vmatprep.subr.mxu0 0.0
  %269 = vmatpush2.msra.mxu0 0.0
  %270 = vmatprep.subr.mxu0 0.0
  %271 = vmatpush2.msra.mxu0 0.0
  %272 = vmatprep.subr.mxu0 0.0
  %273 = vmatpush2.msra.mxu0 0.0
  %274 = vmatprep.subr.mxu0 0.0
  %275 = vmatpush2.msra.mxu0 0.0
  %276 = vmatprep.mubr.f32.mxu0 0.0
  %277 = vmatmul.mubr.f32.gmra.mxu0 %v207
  %v278 = vpop.f32.mrf.mxu0
  %v279 = vadd.f32 0.0, %v278
  %v280 = vpop.f32.mrf.mxu0
  %v281 = vadd.f32 0.0, %v280
  %282 = vdwg.mxu0
  %283 = vmatprep.subr.mxu0 0.0
  %284 = vmatpush1.msra.mxu0 %v79
  %285 = vmatprep.subr.mxu0 0.0
  %286 = vmatpush1.msra.mxu0 %v76
  %287 = vmatprep.subr.mxu0 0.0
  %288 = vmatpush1.msra.mxu0 %v73
  %289 = vmatprep.subr.mxu0 0.0
  %290 = vmatpush1.msra.mxu0 %v70
  %291 = vmatprep.subr.mxu0 0.0
  %292 = vmatpush1.msra.mxu0 %v67
  %293 = vmatprep.subr.mxu0 0.0
  %294 = vmatpush1.msra.mxu0 %v64
  %295 = vmatprep.subr.mxu0 0.0
  %296 = vmatpush1.msra.mxu0 %v61
  %297 = vmatprep.subr.mxu0 0.0
  %298 = vmatpush1.msra.mxu0 %v58
  %299 = vmatprep.subr.mxu0 0.0
  %300 = vmatpush1.msra.mxu0 %v55
  %301 = vmatprep.subr.mxu0 0.0
  %302 = vmatpush1.msra.mxu0 %v52
  %303 = vmatprep.subr.mxu0 0.0
  %304 = vmatpush1.msra.mxu0 %v49
  %305 = vmatprep.subr.mxu0 0.0
  %306 = vmatpush1.msra.mxu0 %v46
  %307 = vmatprep.subr.mxu0 0.0
  %308 = vmatpush1.msra.mxu0 %v43
  %309 = vmatprep.subr.mxu0 0.0
  %310 = vmatpush1.msra.mxu0 %v40
  %311 = vmatprep.subr.mxu0 0.0
  %312 = vmatpush1.msra.mxu0 %v37
  %313 = vmatprep.subr.mxu0 0.0
  %314 = vmatpush1.msra.mxu0 %v34
  %315 = vmatprep.subr.mxu0 0.0
  %316 = vmatpush2.msra.mxu0 0.0
  %317 = vmatprep.subr.mxu0 0.0
  %318 = vmatpush2.msra.mxu0 0.0
  %319 = vmatprep.subr.mxu0 0.0
  %320 = vmatpush2.msra.mxu0 0.0
  %321 = vmatprep.subr.mxu0 0.0
  %322 = vmatpush2.msra.mxu0 0.0
  %323 = vmatprep.subr.mxu0 0.0
  %324 = vmatpush2.msra.mxu0 0.0
  %325 = vmatprep.subr.mxu0 0.0
  %326 = vmatpush2.msra.mxu0 0.0
  %327 = vmatprep.subr.mxu0 0.0
  %328 = vmatpush2.msra.mxu0 0.0
  %329 = vmatprep.subr.mxu0 0.0
  %330 = vmatpush2.msra.mxu0 0.0
  %331 = vmatprep.subr.mxu0 0.0
  %332 = vmatpush2.msra.mxu0 0.0
  %333 = vmatprep.subr.mxu0 0.0
  %334 = vmatpush2.msra.mxu0 0.0
  %335 = vmatprep.subr.mxu0 0.0
  %336 = vmatpush2.msra.mxu0 0.0
  %337 = vmatprep.subr.mxu0 0.0
  %338 = vmatpush2.msra.mxu0 0.0
  %339 = vmatprep.subr.mxu0 0.0
  %340 = vmatpush2.msra.mxu0 0.0
  %341 = vmatprep.subr.mxu0 0.0
  %342 = vmatpush2.msra.mxu0 0.0
  %343 = vmatprep.subr.mxu0 0.0
  %344 = vmatpush2.msra.mxu0 0.0
  %345 = vmatprep.subr.mxu0 0.0
  %346 = vmatpush2.msra.mxu0 0.0
  %347 = vmatprep.mubr.f32.mxu0 0.0
  %348 = vmatmul.mubr.f32.gmra.mxu0 %v207
  %v349 = vpop.f32.mrf.mxu0
  %v350 = vadd.f32 0.0, %v349
  %v351 = vpop.f32.mrf.mxu0
  %352 = vdwg.mxu0
  %v353 = vadd.f32 %v209, %v279
  %v354 = vxor.u32 %v353, 2147483648
  %v355 = vmul.f32 %v354, 1.442695
  %v356 = vpow.pop %v355
  %v357 = vadd.f32 %v356, 1.0
  %v358 = vrcp.pop %v357
  %v359 = vmul.f32 1.0, %v358
  %v360 = vadd.f32 %v210, %v281
  %v361 = vxor.u32 %v360, 2147483648
  %v362 = vmul.f32 %v361, 1.442695
  %v363 = vpow.pop %v362
  %v364 = vadd.f32 %v363, 1.0
  %v365 = vrcp.pop %v364
  %v366 = vmul.f32 1.0, %v365
  %v367 = vadd.f32 %v350, %v181
  %v368 = vmul.f32 %v359, %v367
  %v369 = vadd.f32 %v211, %v368
  %v370 = vtanh.pop %v369
  %v371 = vsub.f32 1.0, %v366
  %v372 = vmul.f32 %v371, %v370
  %v373 = vmul.f32 %v366, %v207
  %v374 = vadd.f32 %v372, %v373
  %375 = vmatprep.subr.mxu0 %v126
  %376 = vmatpush1.msra.mxu0 %v125
  %377 = vmatprep.subr.mxu0 %v123
  %378 = vmatpush1.msra.mxu0 %v122
  %379 = vmatprep.subr.mxu0 %v120
  %380 = vmatpush1.msra.mxu0 %v119
  %381 = vmatprep.subr.mxu0 %v117
  %382 = vmatpush1.msra.mxu0 %v116
  %383 = vmatprep.subr.mxu0 %v114
  %384 = vmatpush1.msra.mxu0 %v113
  %385 = vmatprep.subr.mxu0 %v111
  %386 = vmatpush1.msra.mxu0 %v110
  %387 = vmatprep.subr.mxu0 %v108
  %388 = vmatpush1.msra.mxu0 %v107
  %389 = vmatprep.subr.mxu0 %v105
  %390 = vmatpush1.msra.mxu0 %v104
  %391 = vmatprep.subr.mxu0 %v102
  %392 = vmatpush1.msra.mxu0 %v101
  %393 = vmatprep.subr.mxu0 %v99
  %394 = vmatpush1.msra.mxu0 %v98
  %395 = vmatprep.subr.mxu0 %v96
  %396 = vmatpush1.msra.mxu0 %v95
  %397 = vmatprep.subr.mxu0 %v93
  %398 = vmatpush1.msra.mxu0 %v92
  %399 = vmatprep.subr.mxu0 %v90
  %400 = vmatpush1.msra.mxu0 %v89
  %401 = vmatprep.subr.mxu0 %v87
  %402 = vmatpush1.msra.mxu0 %v86
  %403 = vmatprep.subr.mxu0 %v84
  %404 = vmatpush1.msra.mxu0 %v83
  %405 = vmatprep.subr.mxu0 %v81
  %406 = vmatpush1.msra.mxu0 %v80
  %407 = vmatprep.subr.mxu0 0.0
  %408 = vmatpush2.msra.mxu0 0.0
  %409 = vmatprep.subr.mxu0 0.0
  %410 = vmatpush2.msra.mxu0 0.0
  %411 = vmatprep.subr.mxu0 0.0
  %412 = vmatpush2.msra.mxu0 0.0
  %413 = vmatprep.subr.mxu0 0.0
  %414 = vmatpush2.msra.mxu0 0.0
  %415 = vmatprep.subr.mxu0 0.0
  %416 = vmatpush2.msra.mxu0 0.0
  %417 = vmatprep.subr.mxu0 0.0
  %418 = vmatpush2.msra.mxu0 0.0
  %419 = vmatprep.subr.mxu0 0.0
  %420 = vmatpush2.msra.mxu0 0.0
  %421 = vmatprep.subr.mxu0 0.0
  %422 = vmatpush2.msra.mxu0 0.0
  %423 = vmatprep.subr.mxu0 0.0
  %424 = vmatpush2.msra.mxu0 0.0
  %425 = vmatprep.subr.mxu0 0.0
  %426 = vmatpush2.msra.mxu0 0.0
  %427 = vmatprep.subr.mxu0 0.0
  %428 = vmatpush2.msra.mxu0 0.0
  %429 = vmatprep.subr.mxu0 0.0
  %430 = vmatpush2.msra.mxu0 0.0
  %431 = vmatprep.subr.mxu0 0.0
  %432 = vmatpush2.msra.mxu0 0.0
  %433 = vmatprep.subr.mxu0 0.0
  %434 = vmatpush2.msra.mxu0 0.0
  %435 = vmatprep.subr.mxu0 0.0
  %436 = vmatpush2.msra.mxu0 0.0
  %437 = vmatprep.subr.mxu0 0.0
  %438 = vmatpush2.msra.mxu0 0.0
  %439 = vmatprep.mubr.f32.mxu0 0.0
  %440 = vmatmul.mubr.f32.gmra.mxu0 %v374
  %v441 = vpop.f32.mrf.mxu0
  %v442 = vadd.f32 %v195, %v441
  %v443 = vpop.f32.mrf.mxu0
  %v444 = vadd.f32 %v199, %v443
  %445 = vdwg.mxu0
  %446 = vmatprep.subr.mxu0 0.0
  %447 = vmatpush1.msra.mxu0 %v127
  %448 = vmatprep.subr.mxu0 0.0
  %449 = vmatpush1.msra.mxu0 %v124
  %450 = vmatprep.subr.mxu0 0.0
  %451 = vmatpush1.msra.mxu0 %v121
  %452 = vmatprep.subr.mxu0 0.0
  %453 = vmatpush1.msra.mxu0 %v118
  %454 = vmatprep.subr.mxu0 0.0
  %455 = vmatpush1.msra.mxu0 %v115
  %456 = vmatprep.subr.mxu0 0.0
  %457 = vmatpush1.msra.mxu0 %v112
  %458 = vmatprep.subr.mxu0 0.0
  %459 = vmatpush1.msra.mxu0 %v109
  %460 = vmatprep.subr.mxu0 0.0
  %461 = vmatpush1.msra.mxu0 %v106
  %462 = vmatprep.subr.mxu0 0.0
  %463 = vmatpush1.msra.mxu0 %v103
  %464 = vmatprep.subr.mxu0 0.0
  %465 = vmatpush1.msra.mxu0 %v100
  %466 = vmatprep.subr.mxu0 0.0
  %467 = vmatpush1.msra.mxu0 %v97
  %468 = vmatprep.subr.mxu0 0.0
  %469 = vmatpush1.msra.mxu0 %v94
  %470 = vmatprep.subr.mxu0 0.0
  %471 = vmatpush1.msra.mxu0 %v91
  %472 = vmatprep.subr.mxu0 0.0
  %473 = vmatpush1.msra.mxu0 %v88
  %474 = vmatprep.subr.mxu0 0.0
  %475 = vmatpush1.msra.mxu0 %v85
  %476 = vmatprep.subr.mxu0 0.0
  %477 = vmatpush1.msra.mxu0 %v82
  %478 = vmatprep.subr.mxu0 0.0
  %479 = vmatpush2.msra.mxu0 0.0
  %480 = vmatprep.subr.mxu0 0.0
  %481 = vmatpush2.msra.mxu0 0.0
  %482 = vmatprep.subr.mxu0 0.0
  %483 = vmatpush2.msra.mxu0 0.0
  %484 = vmatprep.subr.mxu0 0.0
  %485 = vmatpush2.msra.mxu0 0.0
  %486 = vmatprep.subr.mxu0 0.0
  %487 = vmatpush2.msra.mxu0 0.0
  %488 = vmatprep.subr.mxu0 0.0
  %489 = vmatpush2.msra.mxu0 0.0
  %490 = vmatprep.subr.mxu0 0.0
  %491 = vmatpush2.msra.mxu0 0.0
  %492 = vmatprep.subr.mxu0 0.0
  %493 = vmatpush2.msra.mxu0 0.0
  %494 = vmatprep.subr.mxu0 0.0
  %495 = vmatpush2.msra.mxu0 0.0
  %496 = vmatprep.subr.mxu0 0.0
  %497 = vmatpush2.msra.mxu0 0.0
  %498 = vmatprep.subr.mxu0 0.0
  %499 = vmatpush2.msra.mxu0 0.0
  %500 = vmatprep.subr.mxu0 0.0
  %501 = vmatpush2.msra.mxu0 0.0
  %502 = vmatprep.subr.mxu0 0.0
  %503 = vmatpush2.msra.mxu0 0.0
  %504 = vmatprep.subr.mxu0 0.0
  %505 = vmatpush2.msra.mxu0 0.0
  %506 = vmatprep.subr.mxu0 0.0
  %507 = vmatpush2.msra.mxu0 0.0
  %508 = vmatprep.subr.mxu0 0.0
  %509 = vmatpush2.msra.mxu0 0.0
  %510 = vmatprep.mubr.f32.mxu0 0.0
  %511 = vmatmul.mubr.f32.gmra.mxu0 %v374
  %v512 = vpop.f32.mrf.mxu0
  %v513 = vadd.f32 %v203, %v512
  %v514 = vpop.f32.mrf.mxu0
  %515 = vdwg.mxu0
  %516 = vmatprep.subr.mxu0 %v174
  %517 = vmatpush1.msra.mxu0 %v173
  %518 = vmatprep.subr.mxu0 %v171
  %519 = vmatpush1.msra.mxu0 %v170
  %520 = vmatprep.subr.mxu0 %v168
  %521 = vmatpush1.msra.mxu0 %v167
  %522 = vmatprep.subr.mxu0 %v165
  %523 = vmatpush1.msra.mxu0 %v164
  %524 = vmatprep.subr.mxu0 %v162
  %525 = vmatpush1.msra.mxu0 %v161
  %526 = vmatprep.subr.mxu0 %v159
  %527 = vmatpush1.msra.mxu0 %v158
  %528 = vmatprep.subr.mxu0 %v156
  %529 = vmatpush1.msra.mxu0 %v155
  %530 = vmatprep.subr.mxu0 %v153
  %531 = vmatpush1.msra.mxu0 %v152
  %532 = vmatprep.subr.mxu0 %v150
  %533 = vmatpush1.msra.mxu0 %v149
  %534 = vmatprep.subr.mxu0 %v147
  %535 = vmatpush1.msra.mxu0 %v146
  %536 = vmatprep.subr.mxu0 %v144
  %537 = vmatpush1.msra.mxu0 %v143
  %538 = vmatprep.subr.mxu0 %v141
  %539 = vmatpush1.msra.mxu0 %v140
  %540 = vmatprep.subr.mxu0 %v138
  %541 = vmatpush1.msra.mxu0 %v137
  %542 = vmatprep.subr.mxu0 %v135
  %543 = vmatpush1.msra.mxu0 %v134
  %544 = vmatprep.subr.mxu0 %v132
  %545 = vmatpush1.msra.mxu0 %v131
  %546 = vmatprep.subr.mxu0 %v129
  %547 = vmatpush1.msra.mxu0 %v128
  %548 = vmatprep.subr.mxu0 0.0
  %549 = vmatpush2.msra.mxu0 0.0
  %550 = vmatprep.subr.mxu0 0.0
  %551 = vmatpush2.msra.mxu0 0.0
  %552 = vmatprep.subr.mxu0 0.0
  %553 = vmatpush2.msra.mxu0 0.0
  %554 = vmatprep.subr.mxu0 0.0
  %555 = vmatpush2.msra.mxu0 0.0
  %556 = vmatprep.subr.mxu0 0.0
  %557 = vmatpush2.msra.mxu0 0.0
  %558 = vmatprep.subr.mxu0 0.0
  %559 = vmatpush2.msra.mxu0 0.0
  %560 = vmatprep.subr.mxu0 0.0
  %561 = vmatpush2.msra.mxu0 0.0
  %562 = vmatprep.subr.mxu0 0.0
  %563 = vmatpush2.msra.mxu0 0.0
  %564 = vmatprep.subr.mxu0 0.0
  %565 = vmatpush2.msra.mxu0 0.0
  %566 = vmatprep.subr.mxu0 0.0
  %567 = vmatpush2.msra.mxu0 0.0
  %568 = vmatprep.subr.mxu0 0.0
  %569 = vmatpush2.msra.mxu0 0.0
  %570 = vmatprep.subr.mxu0 0.0
  %571 = vmatpush2.msra.mxu0 0.0
  %572 = vmatprep.subr.mxu0 0.0
  %573 = vmatpush2.msra.mxu0 0.0
  %574 = vmatprep.subr.mxu0 0.0
  %575 = vmatpush2.msra.mxu0 0.0
  %576 = vmatprep.subr.mxu0 0.0
  %577 = vmatpush2.msra.mxu0 0.0
  %578 = vmatprep.subr.mxu0 0.0
  %579 = vmatpush2.msra.mxu0 0.0
  %580 = vmatprep.mubr.f32.mxu0 0.0
  %581 = vmatmul.mubr.f32.gmra.mxu0 %v208
  %v582 = vpop.f32.mrf.mxu0
  %v583 = vadd.f32 0.0, %v582
  %v584 = vpop.f32.mrf.mxu0
  %v585 = vadd.f32 0.0, %v584
  %586 = vdwg.mxu0
  %587 = vmatprep.subr.mxu0 0.0
  %588 = vmatpush1.msra.mxu0 %v175
  %589 = vmatprep.subr.mxu0 0.0
  %590 = vmatpush1.msra.mxu0 %v172
  %591 = vmatprep.subr.mxu0 0.0
  %592 = vmatpush1.msra.mxu0 %v169
  %593 = vmatprep.subr.mxu0 0.0
  %594 = vmatpush1.msra.mxu0 %v166
  %595 = vmatprep.subr.mxu0 0.0
  %596 = vmatpush1.msra.mxu0 %v163
  %597 = vmatprep.subr.mxu0 0.0
  %598 = vmatpush1.msra.mxu0 %v160
  %599 = vmatprep.subr.mxu0 0.0
  %600 = vmatpush1.msra.mxu0 %v157
  %601 = vmatprep.subr.mxu0 0.0
  %602 = vmatpush1.msra.mxu0 %v154
  %603 = vmatprep.subr.mxu0 0.0
  %604 = vmatpush1.msra.mxu0 %v151
  %605 = vmatprep.subr.mxu0 0.0
  %606 = vmatpush1.msra.mxu0 %v148
  %607 = vmatprep.subr.mxu0 0.0
  %608 = vmatpush1.msra.mxu0 %v145
  %609 = vmatprep.subr.mxu0 0.0
  %610 = vmatpush1.msra.mxu0 %v142
  %611 = vmatprep.subr.mxu0 0.0
  %612 = vmatpush1.msra.mxu0 %v139
  %613 = vmatprep.subr.mxu0 0.0
  %614 = vmatpush1.msra.mxu0 %v136
  %615 = vmatprep.subr.mxu0 0.0
  %616 = vmatpush1.msra.mxu0 %v133
  %617 = vmatprep.subr.mxu0 0.0
  %618 = vmatpush1.msra.mxu0 %v130
  %619 = vmatprep.subr.mxu0 0.0
  %620 = vmatpush2.msra.mxu0 0.0
  %621 = vmatprep.subr.mxu0 0.0
  %622 = vmatpush2.msra.mxu0 0.0
  %623 = vmatprep.subr.mxu0 0.0
  %624 = vmatpush2.msra.mxu0 0.0
  %625 = vmatprep.subr.mxu0 0.0
  %626 = vmatpush2.msra.mxu0 0.0
  %627 = vmatprep.subr.mxu0 0.0
  %628 = vmatpush2.msra.mxu0 0.0
  %629 = vmatprep.subr.mxu0 0.0
  %630 = vmatpush2.msra.mxu0 0.0
  %631 = vmatprep.subr.mxu0 0.0
  %632 = vmatpush2.msra.mxu0 0.0
  %633 = vmatprep.subr.mxu0 0.0
  %634 = vmatpush2.msra.mxu0 0.0
  %635 = vmatprep.subr.mxu0 0.0
  %636 = vmatpush2.msra.mxu0 0.0
  %637 = vmatprep.subr.mxu0 0.0
  %638 = vmatpush2.msra.mxu0 0.0
  %639 = vmatprep.subr.mxu0 0.0
  %640 = vmatpush2.msra.mxu0 0.0
  %641 = vmatprep.subr.mxu0 0.0
  %642 = vmatpush2.msra.mxu0 0.0
  %643 = vmatprep.subr.mxu0 0.0
  %644 = vmatpush2.msra.mxu0 0.0
  %645 = vmatprep.subr.mxu0 0.0
  %646 = vmatpush2.msra.mxu0 0.0
  %647 = vmatprep.subr.mxu0 0.0
  %648 = vmatpush2.msra.mxu0 0.0
  %649 = vmatprep.subr.mxu0 0.0
  %650 = vmatpush2.msra.mxu0 0.0
  %651 = vmatprep.mubr.f32.mxu0 0.0
  %652 = vmatmul.mubr.f32.gmra.mxu0 %v208
  %v653 = vpop.f32.mrf.mxu0
  %v654 = vadd.f32 0.0, %v653
  %v655 = vpop.f32.mrf.mxu0
  %656 = vdwg.mxu0
  %v657 = vadd.f32 %v442, %v583
  %v658 = vxor.u32 %v657, 2147483648
  %v659 = vmul.f32 %v658, 1.442695
  %v660 = vpow.pop %v659
  %v661 = vadd.f32 %v660, 1.0
  %v662 = vrcp.pop %v661
  %v663 = vmul.f32 1.0, %v662
  %v664 = vadd.f32 %v444, %v585
  %v665 = vxor.u32 %v664, 2147483648
  %v666 = vmul.f32 %v665, 1.442695
  %v667 = vpow.pop %v666
  %v668 = vadd.f32 %v667, 1.0
  %v669 = vrcp.pop %v668
  %v670 = vmul.f32 1.0, %v669
  %v671 = vadd.f32 %v654, %v188
  %v672 = vmul.f32 %v663, %v671
  %v673 = vadd.f32 %v513, %v672
  %v674 = vtanh.pop %v673
  %v675 = vsub.f32 1.0, %v670
  %v676 = vmul.f32 %v675, %v674
  %v677 = vmul.f32 %v670, %v208
  %v678 = vadd.f32 %v676, %v677
  %s679 = scalar_lea.vmem %s0, 24
  %v680 = vld [vmem:[%s679] sm:$0xff]
  %v681 = vld [vmem:[%s679 + $0x8] sm:$0xff]
  %v682 = vld [vmem:[%s679 + $0x10] sm:$0xff]
  %683 = vmatprep.subr.mxu0 %v78
  %684 = vmatpush1.msra.mxu0 %v77
  %685 = vmatprep.subr.mxu0 %v75
  %686 = vmatpush1.msra.mxu0 %v74
  %687 = vmatprep.subr.mxu0 %v72
  %688 = vmatpush1.msra.mxu0 %v71
  %689 = vmatprep.subr.mxu0 %v69
  %690 = vmatpush1.msra.mxu0 %v68
  %691 = vmatprep.subr.mxu0 %v66
  %692 = vmatpush1.msra.mxu0 %v65
  %693 = vmatprep.subr.mxu0 %v63
  %694 = vmatpush1.msra.mxu0 %v62
  %695 = vmatprep.subr.mxu0 %v60
  %696 = vmatpush1.msra.mxu0 %v59
  %697 = vmatprep.subr.mxu0 %v57
  %698 = vmatpush1.msra.mxu0 %v56
  %699 = vmatprep.subr.mxu0 %v54
  %700 = vmatpush1.msra.mxu0 %v53
  %701 = vmatprep.subr.mxu0 %v51
  %702 = vmatpush1.msra.mxu0 %v50
  %703 = vmatprep.subr.mxu0 %v48
  %704 = vmatpush1.msra.mxu0 %v47
  %705 = vmatprep.subr.mxu0 %v45
  %706 = vmatpush1.msra.mxu0 %v44
  %707 = vmatprep.subr.mxu0 %v42
  %708 = vmatpush1.msra.mxu0 %v41
  %709 = vmatprep.subr.mxu0 %v39
  %710 = vmatpush1.msra.mxu0 %v38
  %711 = vmatprep.subr.mxu0 %v36
  %712 = vmatpush1.msra.mxu0 %v35
  %713 = vmatprep.subr.mxu0 %v33
  %714 = vmatpush1.msra.mxu0 %v32
  %715 = vmatprep.subr.mxu0 0.0
  %716 = vmatpush2.msra.mxu0 0.0
  %717 = vmatprep.subr.mxu0 0.0
  %718 = vmatpush2.msra.mxu0 0.0
  %719 = vmatprep.subr.mxu0 0.0
  %720 = vmatpush2.msra.mxu0 0.0
  %721 = vmatprep.subr.mxu0 0.0
  %722 = vmatpush2.msra.mxu0 0.0
  %723 = vmatprep.subr.mxu0 0.0
  %724 = vmatpush2.msra.mxu0 0.0
  %725 = vmatprep.subr.mxu0 0.0
  %726 = vmatpush2.msra.mxu0 0.0
  %727 = vmatprep.subr.mxu0 0.0
  %728 = vmatpush2.msra.mxu0 0.0
  %729 = vmatprep.subr.mxu0 0.0
  %730 = vmatpush2.msra.mxu0 0.0
  %731 = vmatprep.subr.mxu0 0.0
  %732 = vmatpush2.msra.mxu0 0.0
  %733 = vmatprep.subr.mxu0 0.0
  %734 = vmatpush2.msra.mxu0 0.0
  %735 = vmatprep.subr.mxu0 0.0
  %736 = vmatpush2.msra.mxu0 0.0
  %737 = vmatprep.subr.mxu0 0.0
  %738 = vmatpush2.msra.mxu0 0.0
  %739 = vmatprep.subr.mxu0 0.0
  %740 = vmatpush2.msra.mxu0 0.0
  %741 = vmatprep.subr.mxu0 0.0
  %742 = vmatpush2.msra.mxu0 0.0
  %743 = vmatprep.subr.mxu0 0.0
  %744 = vmatpush2.msra.mxu0 0.0
  %745 = vmatprep.subr.mxu0 0.0
  %746 = vmatpush2.msra.mxu0 0.0
  %747 = vmatprep.mubr.f32.mxu0 0.0
  %748 = vmatmul.mubr.f32.gmra.mxu0 %v374
  %v749 = vpop.f32.mrf.mxu0
  %v750 = vadd.f32 0.0, %v749
  %v751 = vpop.f32.mrf.mxu0
  %v752 = vadd.f32 0.0, %v751
  %753 = vdwg.mxu0
  %754 = vmatprep.subr.mxu0 0.0
  %755 = vmatpush1.msra.mxu0 %v79
  %756 = vmatprep.subr.mxu0 0.0
  %757 = vmatpush1.msra.mxu0 %v76
  %758 = vmatprep.subr.mxu0 0.0
  %759 = vmatpush1.msra.mxu0 %v73
  %760 = vmatprep.subr.mxu0 0.0
  %761 = vmatpush1.msra.mxu0 %v70
  %762 = vmatprep.subr.mxu0 0.0
  %763 = vmatpush1.msra.mxu0 %v67
  %764 = vmatprep.subr.mxu0 0.0
  %765 = vmatpush1.msra.mxu0 %v64
  %766 = vmatprep.subr.mxu0 0.0
  %767 = vmatpush1.msra.mxu0 %v61
  %768 = vmatprep.subr.mxu0 0.0
  %769 = vmatpush1.msra.mxu0 %v58
  %770 = vmatprep.subr.mxu0 0.0
  %771 = vmatpush1.msra.mxu0 %v55
  %772 = vmatprep.subr.mxu0 0.0
  %773 = vmatpush1.msra.mxu0 %v52
  %774 = vmatprep.subr.mxu0 0.0
  %775 = vmatpush1.msra.mxu0 %v49
  %776 = vmatprep.subr.mxu0 0.0
  %777 = vmatpush1.msra.mxu0 %v46
  %778 = vmatprep.subr.mxu0 0.0
  %779 = vmatpush1.msra.mxu0 %v43
  %780 = vmatprep.subr.mxu0 0.0
  %781 = vmatpush1.msra.mxu0 %v40
  %782 = vmatprep.subr.mxu0 0.0
  %783 = vmatpush1.msra.mxu0 %v37
  %784 = vmatprep.subr.mxu0 0.0
  %785 = vmatpush1.msra.mxu0 %v34
  %786 = vmatprep.subr.mxu0 0.0
  %787 = vmatpush2.msra.mxu0 0.0
  %788 = vmatprep.subr.mxu0 0.0
  %789 = vmatpush2.msra.mxu0 0.0
  %790 = vmatprep.subr.mxu0 0.0
  %791 = vmatpush2.msra.mxu0 0.0
  %792 = vmatprep.subr.mxu0 0.0
  %793 = vmatpush2.msra.mxu0 0.0
  %794 = vmatprep.subr.mxu0 0.0
  %795 = vmatpush2.msra.mxu0 0.0
  %796 = vmatprep.subr.mxu0 0.0
  %797 = vmatpush2.msra.mxu0 0.0
  %798 = vmatprep.subr.mxu0 0.0
  %799 = vmatpush2.msra.mxu0 0.0
  %800 = vmatprep.subr.mxu0 0.0
  %801 = vmatpush2.msra.mxu0 0.0
  %802 = vmatprep.subr.mxu0 0.0
  %803 = vmatpush2.msra.mxu0 0.0
  %804 = vmatprep.subr.mxu0 0.0
  %805 = vmatpush2.msra.mxu0 0.0
  %806 = vmatprep.subr.mxu0 0.0
  %807 = vmatpush2.msra.mxu0 0.0
  %808 = vmatprep.subr.mxu0 0.0
  %809 = vmatpush2.msra.mxu0 0.0
  %810 = vmatprep.subr.mxu0 0.0
  %811 = vmatpush2.msra.mxu0 0.0
  %812 = vmatprep.subr.mxu0 0.0
  %813 = vmatpush2.msra.mxu0 0.0
  %814 = vmatprep.subr.mxu0 0.0
  %815 = vmatpush2.msra.mxu0 0.0
  %816 = vmatprep.subr.mxu0 0.0
  %817 = vmatpush2.msra.mxu0 0.0
  %818 = vmatprep.mubr.f32.mxu0 0.0
  %819 = vmatmul.mubr.f32.gmra.mxu0 %v374
  %v820 = vpop.f32.mrf.mxu0
  %v821 = vadd.f32 0.0, %v820
  %v822 = vpop.f32.mrf.mxu0
  %823 = vdwg.mxu0
  %v824 = vadd.f32 %v680, %v750
  %v825 = vxor.u32 %v824, 2147483648
  %v826 = vmul.f32 %v825, 1.442695
  %v827 = vpow.pop %v826
  %v828 = vadd.f32 %v827, 1.0
  %v829 = vrcp.pop %v828
  %v830 = vmul.f32 1.0, %v829
  %v831 = vadd.f32 %v681, %v752
  %v832 = vxor.u32 %v831, 2147483648
  %v833 = vmul.f32 %v832, 1.442695
  %v834 = vpow.pop %v833
  %v835 = vadd.f32 %v834, 1.0
  %v836 = vrcp.pop %v835
  %v837 = vmul.f32 1.0, %v836
  %v838 = vadd.f32 %v821, %v181
  %v839 = vmul.f32 %v830, %v838
  %v840 = vadd.f32 %v682, %v839
  %v841 = vtanh.pop %v840
  %v842 = vsub.f32 1.0, %v837
  %v843 = vmul.f32 %v842, %v841
  %v844 = vmul.f32 %v837, %v374
  %v845 = vadd.f32 %v843, %v844
  %846 = vmatprep.subr.mxu0 %v126
  %847 = vmatpush1.msra.mxu0 %v125
  %848 = vmatprep.subr.mxu0 %v123
  %849 = vmatpush1.msra.mxu0 %v122
  %850 = vmatprep.subr.mxu0 %v120
  %851 = vmatpush1.msra.mxu0 %v119
  %852 = vmatprep.subr.mxu0 %v117
  %853 = vmatpush1.msra.mxu0 %v116
  %854 = vmatprep.subr.mxu0 %v114
  %855 = vmatpush1.msra.mxu0 %v113
  %856 = vmatprep.subr.mxu0 %v111
  %857 = vmatpush1.msra.mxu0 %v110
  %858 = vmatprep.subr.mxu0 %v108
  %859 = vmatpush1.msra.mxu0 %v107
  %860 = vmatprep.subr.mxu0 %v105
  %861 = vmatpush1.msra.mxu0 %v104
  %862 = vmatprep.subr.mxu0 %v102
  %863 = vmatpush1.msra.mxu0 %v101
  %864 = vmatprep.subr.mxu0 %v99
  %865 = vmatpush1.msra.mxu0 %v98
  %866 = vmatprep.subr.mxu0 %v96
  %867 = vmatpush1.msra.mxu0 %v95
  %868 = vmatprep.subr.mxu0 %v93
  %869 = vmatpush1.msra.mxu0 %v92
  %870 = vmatprep.subr.mxu0 %v90
  %871 = vmatpush1.msra.mxu0 %v89
  %872 = vmatprep.subr.mxu0 %v87
  %873 = vmatpush1.msra.mxu0 %v86
  %874 = vmatprep.subr.mxu0 %v84
  %875 = vmatpush1.msra.mxu0 %v83
  %876 = vmatprep.subr.mxu0 %v81
  %877 = vmatpush1.msra.mxu0 %v80
  %878 = vmatprep.subr.mxu0 0.0
  %879 = vmatpush2.msra.mxu0 0.0
  %880 = vmatprep.subr.mxu0 0.0
  %881 = vmatpush2.msra.mxu0 0.0
  %882 = vmatprep.subr.mxu0 0.0
  %883 = vmatpush2.msra.mxu0 0.0
  %884 = vmatprep.subr.mxu0 0.0
  %885 = vmatpush2.msra.mxu0 0.0
  %886 = vmatprep.subr.mxu0 0.0
  %887 = vmatpush2.msra.mxu0 0.0
  %888 = vmatprep.subr.mxu0 0.0
  %889 = vmatpush2.msra.mxu0 0.0
  %890 = vmatprep.subr.mxu0 0.0
  %891 = vmatpush2.msra.mxu0 0.0
  %892 = vmatprep.subr.mxu0 0.0
  %893 = vmatpush2.msra.mxu0 0.0
  %894 = vmatprep.subr.mxu0 0.0
  %895 = vmatpush2.msra.mxu0 0.0
  %896 = vmatprep.subr.mxu0 0.0
  %897 = vmatpush2.msra.mxu0 0.0
  %898 = vmatprep.subr.mxu0 0.0
  %899 = vmatpush2.msra.mxu0 0.0
  %900 = vmatprep.subr.mxu0 0.0
  %901 = vmatpush2.msra.mxu0 0.0
  %902 = vmatprep.subr.mxu0 0.0
  %903 = vmatpush2.msra.mxu0 0.0
  %904 = vmatprep.subr.mxu0 0.0
  %905 = vmatpush2.msra.mxu0 0.0
  %906 = vmatprep.subr.mxu0 0.0
  %907 = vmatpush2.msra.mxu0 0.0
  %908 = vmatprep.subr.mxu0 0.0
  %909 = vmatpush2.msra.mxu0 0.0
  %910 = vmatprep.mubr.f32.mxu0 0.0
  %911 = vmatmul.mubr.f32.gmra.mxu0 %v845
  %v912 = vpop.f32.mrf.mxu0
  %v913 = vadd.f32 %v195, %v912
  %v914 = vpop.f32.mrf.mxu0
  %v915 = vadd.f32 %v199, %v914
  %916 = vdwg.mxu0
  %917 = vmatprep.subr.mxu0 0.0
  %918 = vmatpush1.msra.mxu0 %v127
  %919 = vmatprep.subr.mxu0 0.0
  %920 = vmatpush1.msra.mxu0 %v124
  %921 = vmatprep.subr.mxu0 0.0
  %922 = vmatpush1.msra.mxu0 %v121
  %923 = vmatprep.subr.mxu0 0.0
  %924 = vmatpush1.msra.mxu0 %v118
  %925 = vmatprep.subr.mxu0 0.0
  %926 = vmatpush1.msra.mxu0 %v115
  %927 = vmatprep.subr.mxu0 0.0
  %928 = vmatpush1.msra.mxu0 %v112
  %929 = vmatprep.subr.mxu0 0.0
  %930 = vmatpush1.msra.mxu0 %v109
  %931 = vmatprep.subr.mxu0 0.0
  %932 = vmatpush1.msra.mxu0 %v106
  %933 = vmatprep.subr.mxu0 0.0
  %934 = vmatpush1.msra.mxu0 %v103
  %935 = vmatprep.subr.mxu0 0.0
  %936 = vmatpush1.msra.mxu0 %v100
  %937 = vmatprep.subr.mxu0 0.0
  %938 = vmatpush1.msra.mxu0 %v97
  %939 = vmatprep.subr.mxu0 0.0
  %940 = vmatpush1.msra.mxu0 %v94
  %941 = vmatprep.subr.mxu0 0.0
  %942 = vmatpush1.msra.mxu0 %v91
  %943 = vmatprep.subr.mxu0 0.0
  %944 = vmatpush1.msra.mxu0 %v88
  %945 = vmatprep.subr.mxu0 0.0
  %946 = vmatpush1.msra.mxu0 %v85
  %947 = vmatprep.subr.mxu0 0.0
  %948 = vmatpush1.msra.mxu0 %v82
  %949 = vmatprep.subr.mxu0 0.0
  %950 = vmatpush2.msra.mxu0 0.0
  %951 = vmatprep.subr.mxu0 0.0
  %952 = vmatpush2.msra.mxu0 0.0
  %953 = vmatprep.subr.mxu0 0.0
  %954 = vmatpush2.msra.mxu0 0.0
  %955 = vmatprep.subr.mxu0 0.0
  %956 = vmatpush2.msra.mxu0 0.0
  %957 = vmatprep.subr.mxu0 0.0
  %958 = vmatpush2.msra.mxu0 0.0
  %959 = vmatprep.subr.mxu0 0.0
  %960 = vmatpush2.msra.mxu0 0.0
  %961 = vmatprep.subr.mxu0 0.0
  %962 = vmatpush2.msra.mxu0 0.0
  %963 = vmatprep.subr.mxu0 0.0
  %964 = vmatpush2.msra.mxu0 0.0
  %965 = vmatprep.subr.mxu0 0.0
  %966 = vmatpush2.msra.mxu0 0.0
  %967 = vmatprep.subr.mxu0 0.0
  %968 = vmatpush2.msra.mxu0 0.0
  %969 = vmatprep.subr.mxu0 0.0
  %970 = vmatpush2.msra.mxu0 0.0
  %971 = vmatprep.subr.mxu0 0.0
  %972 = vmatpush2.msra.mxu0 0.0
  %973 = vmatprep.subr.mxu0 0.0
  %974 = vmatpush2.msra.mxu0 0.0
  %975 = vmatprep.subr.mxu0 0.0
  %976 = vmatpush2.msra.mxu0 0.0
  %977 = vmatprep.subr.mxu0 0.0
  %978 = vmatpush2.msra.mxu0 0.0
  %979 = vmatprep.subr.mxu0 0.0
  %980 = vmatpush2.msra.mxu0 0.0
  %981 = vmatprep.mubr.f32.mxu0 0.0
  %982 = vmatmul.mubr.f32.gmra.mxu0 %v845
  %v983 = vpop.f32.mrf.mxu0
  %v984 = vadd.f32 %v203, %v983
  %v985 = vpop.f32.mrf.mxu0
  %986 = vdwg.mxu0
  %987 = vmatprep.subr.mxu0 %v174
  %988 = vmatpush1.msra.mxu0 %v173
  %989 = vmatprep.subr.mxu0 %v171
  %990 = vmatpush1.msra.mxu0 %v170
  %991 = vmatprep.subr.mxu0 %v168
  %992 = vmatpush1.msra.mxu0 %v167
  %993 = vmatprep.subr.mxu0 %v165
  %994 = vmatpush1.msra.mxu0 %v164
  %995 = vmatprep.subr.mxu0 %v162
  %996 = vmatpush1.msra.mxu0 %v161
  %997 = vmatprep.subr.mxu0 %v159
  %998 = vmatpush1.msra.mxu0 %v158
  %999 = vmatprep.subr.mxu0 %v156
  %1000 = vmatpush1.msra.mxu0 %v155
  %1001 = vmatprep.subr.mxu0 %v153
  %1002 = vmatpush1.msra.mxu0 %v152
  %1003 = vmatprep.subr.mxu0 %v150
  %1004 = vmatpush1.msra.mxu0 %v149
  %1005 = vmatprep.subr.mxu0 %v147
  %1006 = vmatpush1.msra.mxu0 %v146
  %1007 = vmatprep.subr.mxu0 %v144
  %1008 = vmatpush1.msra.mxu0 %v143
  %1009 = vmatprep.subr.mxu0 %v141
  %1010 = vmatpush1.msra.mxu0 %v140
  %1011 = vmatprep.subr.mxu0 %v138
  %1012 = vmatpush1.msra.mxu0 %v137
  %1013 = vmatprep.subr.mxu0 %v135
  %1014 = vmatpush1.msra.mxu0 %v134
  %1015 = vmatprep.subr.mxu0 %v132
  %1016 = vmatpush1.msra.mxu0 %v131
  %1017 = vmatprep.subr.mxu0 %v129
  %1018 = vmatpush1.msra.mxu0 %v128
  %1019 = vmatprep.subr.mxu0 0.0
  %1020 = vmatpush2.msra.mxu0 0.0
  %1021 = vmatprep.subr.mxu0 0.0
  %1022 = vmatpush2.msra.mxu0 0.0
  %1023 = vmatprep.subr.mxu0 0.0
  %1024 = vmatpush2.msra.mxu0 0.0
  %1025 = vmatprep.subr.mxu0 0.0
  %1026 = vmatpush2.msra.mxu0 0.0
  %1027 = vmatprep.subr.mxu0 0.0
  %1028 = vmatpush2.msra.mxu0 0.0
  %1029 = vmatprep.subr.mxu0 0.0
  %1030 = vmatpush2.msra.mxu0 0.0
  %1031 = vmatprep.subr.mxu0 0.0
  %1032 = vmatpush2.msra.mxu0 0.0
  %1033 = vmatprep.subr.mxu0 0.0
  %1034 = vmatpush2.msra.mxu0 0.0
  %1035 = vmatprep.subr.mxu0 0.0
  %1036 = vmatpush2.msra.mxu0 0.0
  %1037 = vmatprep.subr.mxu0 0.0
  %1038 = vmatpush2.msra.mxu0 0.0
  %1039 = vmatprep.subr.mxu0 0.0
  %1040 = vmatpush2.msra.mxu0 0.0
  %1041 = vmatprep.subr.mxu0 0.0
  %1042 = vmatpush2.msra.mxu0 0.0
  %1043 = vmatprep.subr.mxu0 0.0
  %1044 = vmatpush2.msra.mxu0 0.0
  %1045 = vmatprep.subr.mxu0 0.0
  %1046 = vmatpush2.msra.mxu0 0.0
  %1047 = vmatprep.subr.mxu0 0.0
  %1048 = vmatpush2.msra.mxu0 0.0
  %1049 = vmatprep.subr.mxu0 0.0
  %1050 = vmatpush2.msra.mxu0 0.0
  %1051 = vmatprep.mubr.f32.mxu0 0.0
  %1052 = vmatmul.mubr.f32.gmra.mxu0 %v678
  %v1053 = vpop.f32.mrf.mxu0
  %v1054 = vadd.f32 0.0, %v1053
  %v1055 = vpop.f32.mrf.mxu0
  %v1056 = vadd.f32 0.0, %v1055
  %1057 = vdwg.mxu0
  %1058 = vmatprep.subr.mxu0 0.0
  %1059 = vmatpush1.msra.mxu0 %v175
  %1060 = vmatprep.subr.mxu0 0.0
  %1061 = vmatpush1.msra.mxu0 %v172
  %1062 = vmatprep.subr.mxu0 0.0
  %1063 = vmatpush1.msra.mxu0 %v169
  %1064 = vmatprep.subr.mxu0 0.0
  %1065 = vmatpush1.msra.mxu0 %v166
  %1066 = vmatprep.subr.mxu0 0.0
  %1067 = vmatpush1.msra.mxu0 %v163
  %1068 = vmatprep.subr.mxu0 0.0
  %1069 = vmatpush1.msra.mxu0 %v160
  %1070 = vmatprep.subr.mxu0 0.0
  %1071 = vmatpush1.msra.mxu0 %v157
  %1072 = vmatprep.subr.mxu0 0.0
  %1073 = vmatpush1.msra.mxu0 %v154
  %1074 = vmatprep.subr.mxu0 0.0
  %1075 = vmatpush1.msra.mxu0 %v151
  %1076 = vmatprep.subr.mxu0 0.0
  %1077 = vmatpush1.msra.mxu0 %v148
  %1078 = vmatprep.subr.mxu0 0.0
  %1079 = vmatpush1.msra.mxu0 %v145
  %1080 = vmatprep.subr.mxu0 0.0
  %1081 = vmatpush1.msra.mxu0 %v142
  %1082 = vmatprep.subr.mxu0 0.0
  %1083 = vmatpush1.msra.mxu0 %v139
  %1084 = vmatprep.subr.mxu0 0.0
  %1085 = vmatpush1.msra.mxu0 %v136
  %1086 = vmatprep.subr.mxu0 0.0
  %1087 = vmatpush1.msra.mxu0 %v133
  %1088 = vmatprep.subr.mxu0 0.0
  %1089 = vmatpush1.msra.mxu0 %v130
  %1090 = vmatprep.subr.mxu0 0.0
  %1091 = vmatpush2.msra.mxu0 0.0
  %1092 = vmatprep.subr.mxu0 0.0
  %1093 = vmatpush2.msra.mxu0 0.0
  %1094 = vmatprep.subr.mxu0 0.0
  %1095 = vmatpush2.msra.mxu0 0.0
  %1096 = vmatprep.subr.mxu0 0.0
  %1097 = vmatpush2.msra.mxu0 0.0
  %1098 = vmatprep.subr.mxu0 0.0
  %1099 = vmatpush2.msra.mxu0 0.0
  %1100 = vmatprep.subr.mxu0 0.0
  %1101 = vmatpush2.msra.mxu0 0.0
  %1102 = vmatprep.subr.mxu0 0.0
  %1103 = vmatpush2.msra.mxu0 0.0
  %1104 = vmatprep.subr.mxu0 0.0
  %1105 = vmatpush2.msra.mxu0 0.0
  %1106 = vmatprep.subr.mxu0 0.0
  %1107 = vmatpush2.msra.mxu0 0.0
  %1108 = vmatprep.subr.mxu0 0.0
  %1109 = vmatpush2.msra.mxu0 0.0
  %1110 = vmatprep.subr.mxu0 0.0
  %1111 = vmatpush2.msra.mxu0 0.0
  %1112 = vmatprep.subr.mxu0 0.0
  %1113 = vmatpush2.msra.mxu0 0.0
  %1114 = vmatprep.subr.mxu0 0.0
  %1115 = vmatpush2.msra.mxu0 0.0
  %1116 = vmatprep.subr.mxu0 0.0
  %1117 = vmatpush2.msra.mxu0 0.0
  %1118 = vmatprep.subr.mxu0 0.0
  %1119 = vmatpush2.msra.mxu0 0.0
  %1120 = vmatprep.subr.mxu0 0.0
  %1121 = vmatpush2.msra.mxu0 0.0
  %1122 = vmatprep.mubr.f32.mxu0 0.0
  %1123 = vmatmul.mubr.f32.gmra.mxu0 %v678
  %v1124 = vpop.f32.mrf.mxu0
  %v1125 = vadd.f32 0.0, %v1124
  %v1126 = vpop.f32.mrf.mxu0
  %1127 = vdwg.mxu0
  %v1128 = vadd.f32 %v913, %v1054
  %v1129 = vxor.u32 %v1128, 2147483648
  %v1130 = vmul.f32 %v1129, 1.442695
  %v1131 = vpow.pop %v1130
  %v1132 = vadd.f32 %v1131, 1.0
  %v1133 = vrcp.pop %v1132
  %v1134 = vmul.f32 1.0, %v1133
  %v1135 = vadd.f32 %v915, %v1056
  %v1136 = vxor.u32 %v1135, 2147483648
  %v1137 = vmul.f32 %v1136, 1.442695
  %v1138 = vpow.pop %v1137
  %v1139 = vadd.f32 %v1138, 1.0
  %v1140 = vrcp.pop %v1139
  %v1141 = vmul.f32 1.0, %v1140
  %v1142 = vadd.f32 %v1125, %v188
  %v1143 = vmul.f32 %v1134, %v1142
  %v1144 = vadd.f32 %v984, %v1143
  %v1145 = vtanh.pop %v1144
  %v1146 = vsub.f32 1.0, %v1141
  %v1147 = vmul.f32 %v1146, %v1145
  %v1148 = vmul.f32 %v1141, %v678
  %v1149 = vadd.f32 %v1147, %v1148
  %s1150 = scalar_lea.vmem %s0, 48
  %v1151 = vld [vmem:[%s1150] sm:$0xff]
  %v1152 = vld [vmem:[%s1150 + $0x8] sm:$0xff]
  %v1153 = vld [vmem:[%s1150 + $0x10] sm:$0xff]
  %1154 = vmatprep.subr.mxu0 %v78
  %1155 = vmatpush1.msra.mxu0 %v77
  %1156 = vmatprep.subr.mxu0 %v75
  %1157 = vmatpush1.msra.mxu0 %v74
  %1158 = vmatprep.subr.mxu0 %v72
  %1159 = vmatpush1.msra.mxu0 %v71
  %1160 = vmatprep.subr.mxu0 %v69
  %1161 = vmatpush1.msra.mxu0 %v68
  %1162 = vmatprep.subr.mxu0 %v66
  %1163 = vmatpush1.msra.mxu0 %v65
  %1164 = vmatprep.subr.mxu0 %v63
  %1165 = vmatpush1.msra.mxu0 %v62
  %1166 = vmatprep.subr.mxu0 %v60
  %1167 = vmatpush1.msra.mxu0 %v59
  %1168 = vmatprep.subr.mxu0 %v57
  %1169 = vmatpush1.msra.mxu0 %v56
  %1170 = vmatprep.subr.mxu0 %v54
  %1171 = vmatpush1.msra.mxu0 %v53
  %1172 = vmatprep.subr.mxu0 %v51
  %1173 = vmatpush1.msra.mxu0 %v50
  %1174 = vmatprep.subr.mxu0 %v48
  %1175 = vmatpush1.msra.mxu0 %v47
  %1176 = vmatprep.subr.mxu0 %v45
  %1177 = vmatpush1.msra.mxu0 %v44
  %1178 = vmatprep.subr.mxu0 %v42
  %1179 = vmatpush1.msra.mxu0 %v41
  %1180 = vmatprep.subr.mxu0 %v39
  %1181 = vmatpush1.msra.mxu0 %v38
  %1182 = vmatprep.subr.mxu0 %v36
  %1183 = vmatpush1.msra.mxu0 %v35
  %1184 = vmatprep.subr.mxu0 %v33
  %1185 = vmatpush1.msra.mxu0 %v32
  %1186 = vmatprep.subr.mxu0 0.0
  %1187 = vmatpush2.msra.mxu0 0.0
  %1188 = vmatprep.subr.mxu0 0.0
  %1189 = vmatpush2.msra.mxu0 0.0
  %1190 = vmatprep.subr.mxu0 0.0
  %1191 = vmatpush2.msra.mxu0 0.0
  %1192 = vmatprep.subr.mxu0 0.0
  %1193 = vmatpush2.msra.mxu0 0.0
  %1194 = vmatprep.subr.mxu0 0.0
  %1195 = vmatpush2.msra.mxu0 0.0
  %1196 = vmatprep.subr.mxu0 0.0
  %1197 = vmatpush2.msra.mxu0 0.0
  %1198 = vmatprep.subr.mxu0 0.0
  %1199 = vmatpush2.msra.mxu0 0.0
  %1200 = vmatprep.subr.mxu0 0.0
  %1201 = vmatpush2.msra.mxu0 0.0
  %1202 = vmatprep.subr.mxu0 0.0
  %1203 = vmatpush2.msra.mxu0 0.0
  %1204 = vmatprep.subr.mxu0 0.0
  %1205 = vmatpush2.msra.mxu0 0.0
  %1206 = vmatprep.subr.mxu0 0.0
  %1207 = vmatpush2.msra.mxu0 0.0
  %1208 = vmatprep.subr.mxu0 0.0
  %1209 = vmatpush2.msra.mxu0 0.0
  %1210 = vmatprep.subr.mxu0 0.0
  %1211 = vmatpush2.msra.mxu0 0.0
  %1212 = vmatprep.subr.mxu0 0.0
  %1213 = vmatpush2.msra.mxu0 0.0
  %1214 = vmatprep.subr.mxu0 0.0
  %1215 = vmatpush2.msra.mxu0 0.0
  %1216 = vmatprep.subr.mxu0 0.0
  %1217 = vmatpush2.msra.mxu0 0.0
  %1218 = vmatprep.mubr.f32.mxu0 0.0
  %1219 = vmatmul.mubr.f32.gmra.mxu0 %v845
  %v1220 = vpop.f32.mrf.mxu0
  %v1221 = vadd.f32 0.0, %v1220
  %v1222 = vpop.f32.mrf.mxu0
  %v1223 = vadd.f32 0.0, %v1222
  %1224 = vdwg.mxu0
  %1225 = vmatprep.subr.mxu0 0.0
  %1226 = vmatpush1.msra.mxu0 %v79
  %1227 = vmatprep.subr.mxu0 0.0
  %1228 = vmatpush1.msra.mxu0 %v76
  %1229 = vmatprep.subr.mxu0 0.0
  %1230 = vmatpush1.msra.mxu0 %v73
  %1231 = vmatprep.subr.mxu0 0.0
  %1232 = vmatpush1.msra.mxu0 %v70
  %1233 = vmatprep.subr.mxu0 0.0
  %1234 = vmatpush1.msra.mxu0 %v67
  %1235 = vmatprep.subr.mxu0 0.0
  %1236 = vmatpush1.msra.mxu0 %v64
  %1237 = vmatprep.subr.mxu0 0.0
  %1238 = vmatpush1.msra.mxu0 %v61
  %1239 = vmatprep.subr.mxu0 0.0
  %1240 = vmatpush1.msra.mxu0 %v58
  %1241 = vmatprep.subr.mxu0 0.0
  %1242 = vmatpush1.msra.mxu0 %v55
  %1243 = vmatprep.subr.mxu0 0.0
  %1244 = vmatpush1.msra.mxu0 %v52
  %1245 = vmatprep.subr.mxu0 0.0
  %1246 = vmatpush1.msra.mxu0 %v49
  %1247 = vmatprep.subr.mxu0 0.0
  %1248 = vmatpush1.msra.mxu0 %v46
  %1249 = vmatprep.subr.mxu0 0.0
  %1250 = vmatpush1.msra.mxu0 %v43
  %1251 = vmatprep.subr.mxu0 0.0
  %1252 = vmatpush1.msra.mxu0 %v40
  %1253 = vmatprep.subr.mxu0 0.0
  %1254 = vmatpush1.msra.mxu0 %v37
  %1255 = vmatprep.subr.mxu0 0.0
  %1256 = vmatpush1.msra.mxu0 %v34
  %1257 = vmatprep.subr.mxu0 0.0
  %1258 = vmatpush2.msra.mxu0 0.0
  %1259 = vmatprep.subr.mxu0 0.0
  %1260 = vmatpush2.msra.mxu0 0.0
  %1261 = vmatprep.subr.mxu0 0.0
  %1262 = vmatpush2.msra.mxu0 0.0
  %1263 = vmatprep.subr.mxu0 0.0
  %1264 = vmatpush2.msra.mxu0 0.0
  %1265 = vmatprep.subr.mxu0 0.0
  %1266 = vmatpush2.msra.mxu0 0.0
  %1267 = vmatprep.subr.mxu0 0.0
  %1268 = vmatpush2.msra.mxu0 0.0
  %1269 = vmatprep.subr.mxu0 0.0
  %1270 = vmatpush2.msra.mxu0 0.0
  %1271 = vmatprep.subr.mxu0 0.0
  %1272 = vmatpush2.msra.mxu0 0.0
  %1273 = vmatprep.subr.mxu0 0.0
  %1274 = vmatpush2.msra.mxu0 0.0
  %1275 = vmatprep.subr.mxu0 0.0
  %1276 = vmatpush2.msra.mxu0 0.0
  %1277 = vmatprep.subr.mxu0 0.0
  %1278 = vmatpush2.msra.mxu0 0.0
  %1279 = vmatprep.subr.mxu0 0.0
  %1280 = vmatpush2.msra.mxu0 0.0
  %1281 = vmatprep.subr.mxu0 0.0
  %1282 = vmatpush2.msra.mxu0 0.0
  %1283 = vmatprep.subr.mxu0 0.0
  %1284 = vmatpush2.msra.mxu0 0.0
  %1285 = vmatprep.subr.mxu0 0.0
  %1286 = vmatpush2.msra.mxu0 0.0
  %1287 = vmatprep.subr.mxu0 0.0
  %1288 = vmatpush2.msra.mxu0 0.0
  %1289 = vmatprep.mubr.f32.mxu0 0.0
  %1290 = vmatmul.mubr.f32.gmra.mxu0 %v845
  %v1291 = vpop.f32.mrf.mxu0
  %v1292 = vadd.f32 0.0, %v1291
  %v1293 = vpop.f32.mrf.mxu0
  %1294 = vdwg.mxu0
  %v1295 = vadd.f32 %v1151, %v1221
  %v1296 = vxor.u32 %v1295, 2147483648
  %v1297 = vmul.f32 %v1296, 1.442695
  %v1298 = vpow.pop %v1297
  %v1299 = vadd.f32 %v1298, 1.0
  %v1300 = vrcp.pop %v1299
  %v1301 = vmul.f32 1.0, %v1300
  %v1302 = vadd.f32 %v1152, %v1223
  %v1303 = vxor.u32 %v1302, 2147483648
  %v1304 = vmul.f32 %v1303, 1.442695
  %v1305 = vpow.pop %v1304
  %v1306 = vadd.f32 %v1305, 1.0
  %v1307 = vrcp.pop %v1306
  %v1308 = vmul.f32 1.0, %v1307
  %v1309 = vadd.f32 %v1292, %v181
  %v1310 = vmul.f32 %v1301, %v1309
  %v1311 = vadd.f32 %v1153, %v1310
  %v1312 = vtanh.pop %v1311
  %v1313 = vsub.f32 1.0, %v1308
  %v1314 = vmul.f32 %v1313, %v1312
  %v1315 = vmul.f32 %v1308, %v845
  %v1316 = vadd.f32 %v1314, %v1315
  %1317 = vmatprep.subr.mxu0 %v126
  %1318 = vmatpush1.msra.mxu0 %v125
  %1319 = vmatprep.subr.mxu0 %v123
  %1320 = vmatpush1.msra.mxu0 %v122
  %1321 = vmatprep.subr.mxu0 %v120
  %1322 = vmatpush1.msra.mxu0 %v119
  %1323 = vmatprep.subr.mxu0 %v117
  %1324 = vmatpush1.msra.mxu0 %v116
  %1325 = vmatprep.subr.mxu0 %v114
  %1326 = vmatpush1.msra.mxu0 %v113
  %1327 = vmatprep.subr.mxu0 %v111
  %1328 = vmatpush1.msra.mxu0 %v110
  %1329 = vmatprep.subr.mxu0 %v108
  %1330 = vmatpush1.msra.mxu0 %v107
  %1331 = vmatprep.subr.mxu0 %v105
  %1332 = vmatpush1.msra.mxu0 %v104
  %1333 = vmatprep.subr.mxu0 %v102
  %1334 = vmatpush1.msra.mxu0 %v101
  %1335 = vmatprep.subr.mxu0 %v99
  %1336 = vmatpush1.msra.mxu0 %v98
  %1337 = vmatprep.subr.mxu0 %v96
  %1338 = vmatpush1.msra.mxu0 %v95
  %1339 = vmatprep.subr.mxu0 %v93
  %1340 = vmatpush1.msra.mxu0 %v92
  %1341 = vmatprep.subr.mxu0 %v90
  %1342 = vmatpush1.msra.mxu0 %v89
  %1343 = vmatprep.subr.mxu0 %v87
  %1344 = vmatpush1.msra.mxu0 %v86
  %1345 = vmatprep.subr.mxu0 %v84
  %1346 = vmatpush1.msra.mxu0 %v83
  %1347 = vmatprep.subr.mxu0 %v81
  %1348 = vmatpush1.msra.mxu0 %v80
  %1349 = vmatprep.subr.mxu0 0.0
  %1350 = vmatpush2.msra.mxu0 0.0
  %1351 = vmatprep.subr.mxu0 0.0
  %1352 = vmatpush2.msra.mxu0 0.0
  %1353 = vmatprep.subr.mxu0 0.0
  %1354 = vmatpush2.msra.mxu0 0.0
  %1355 = vmatprep.subr.mxu0 0.0
  %1356 = vmatpush2.msra.mxu0 0.0
  %1357 = vmatprep.subr.mxu0 0.0
  %1358 = vmatpush2.msra.mxu0 0.0
  %1359 = vmatprep.subr.mxu0 0.0
  %1360 = vmatpush2.msra.mxu0 0.0
  %1361 = vmatprep.subr.mxu0 0.0
  %1362 = vmatpush2.msra.mxu0 0.0
  %1363 = vmatprep.subr.mxu0 0.0
  %1364 = vmatpush2.msra.mxu0 0.0
  %1365 = vmatprep.subr.mxu0 0.0
  %1366 = vmatpush2.msra.mxu0 0.0
  %1367 = vmatprep.subr.mxu0 0.0
  %1368 = vmatpush2.msra.mxu0 0.0
  %1369 = vmatprep.subr.mxu0 0.0
  %1370 = vmatpush2.msra.mxu0 0.0
  %1371 = vmatprep.subr.mxu0 0.0
  %1372 = vmatpush2.msra.mxu0 0.0
  %1373 = vmatprep.subr.mxu0 0.0
  %1374 = vmatpush2.msra.mxu0 0.0
  %1375 = vmatprep.subr.mxu0 0.0
  %1376 = vmatpush2.msra.mxu0 0.0
  %1377 = vmatprep.subr.mxu0 0.0
  %1378 = vmatpush2.msra.mxu0 0.0
  %1379 = vmatprep.subr.mxu0 0.0
  %1380 = vmatpush2.msra.mxu0 0.0
  %1381 = vmatprep.mubr.f32.mxu0 0.0
  %1382 = vmatmul.mubr.f32.gmra.mxu0 %v1316
  %v1383 = vpop.f32.mrf.mxu0
  %v1384 = vadd.f32 %v195, %v1383
  %v1385 = vpop.f32.mrf.mxu0
  %v1386 = vadd.f32 %v199, %v1385
  %1387 = vdwg.mxu0
  %1388 = vmatprep.subr.mxu0 0.0
  %1389 = vmatpush1.msra.mxu0 %v127
  %1390 = vmatprep.subr.mxu0 0.0
  %1391 = vmatpush1.msra.mxu0 %v124
  %1392 = vmatprep.subr.mxu0 0.0
  %1393 = vmatpush1.msra.mxu0 %v121
  %1394 = vmatprep.subr.mxu0 0.0
  %1395 = vmatpush1.msra.mxu0 %v118
  %1396 = vmatprep.subr.mxu0 0.0
  %1397 = vmatpush1.msra.mxu0 %v115
  %1398 = vmatprep.subr.mxu0 0.0
  %1399 = vmatpush1.msra.mxu0 %v112
  %1400 = vmatprep.subr.mxu0 0.0
  %1401 = vmatpush1.msra.mxu0 %v109
  %1402 = vmatprep.subr.mxu0 0.0
  %1403 = vmatpush1.msra.mxu0 %v106
  %1404 = vmatprep.subr.mxu0 0.0
  %1405 = vmatpush1.msra.mxu0 %v103
  %1406 = vmatprep.subr.mxu0 0.0
  %1407 = vmatpush1.msra.mxu0 %v100
  %1408 = vmatprep.subr.mxu0 0.0
  %1409 = vmatpush1.msra.mxu0 %v97
  %1410 = vmatprep.subr.mxu0 0.0
  %1411 = vmatpush1.msra.mxu0 %v94
  %1412 = vmatprep.subr.mxu0 0.0
  %1413 = vmatpush1.msra.mxu0 %v91
  %1414 = vmatprep.subr.mxu0 0.0
  %1415 = vmatpush1.msra.mxu0 %v88
  %1416 = vmatprep.subr.mxu0 0.0
  %1417 = vmatpush1.msra.mxu0 %v85
  %1418 = vmatprep.subr.mxu0 0.0
  %1419 = vmatpush1.msra.mxu0 %v82
  %1420 = vmatprep.subr.mxu0 0.0
  %1421 = vmatpush2.msra.mxu0 0.0
  %1422 = vmatprep.subr.mxu0 0.0
  %1423 = vmatpush2.msra.mxu0 0.0
  %1424 = vmatprep.subr.mxu0 0.0
  %1425 = vmatpush2.msra.mxu0 0.0
  %1426 = vmatprep.subr.mxu0 0.0
  %1427 = vmatpush2.msra.mxu0 0.0
  %1428 = vmatprep.subr.mxu0 0.0
  %1429 = vmatpush2.msra.mxu0 0.0
  %1430 = vmatprep.subr.mxu0 0.0
  %1431 = vmatpush2.msra.mxu0 0.0
  %1432 = vmatprep.subr.mxu0 0.0
  %1433 = vmatpush2.msra.mxu0 0.0
  %1434 = vmatprep.subr.mxu0 0.0
  %1435 = vmatpush2.msra.mxu0 0.0
  %1436 = vmatprep.subr.mxu0 0.0
  %1437 = vmatpush2.msra.mxu0 0.0
  %1438 = vmatprep.subr.mxu0 0.0
  %1439 = vmatpush2.msra.mxu0 0.0
  %1440 = vmatprep.subr.mxu0 0.0
  %1441 = vmatpush2.msra.mxu0 0.0
  %1442 = vmatprep.subr.mxu0 0.0
  %1443 = vmatpush2.msra.mxu0 0.0
  %1444 = vmatprep.subr.mxu0 0.0
  %1445 = vmatpush2.msra.mxu0 0.0
  %1446 = vmatprep.subr.mxu0 0.0
  %1447 = vmatpush2.msra.mxu0 0.0
  %1448 = vmatprep.subr.mxu0 0.0
  %1449 = vmatpush2.msra.mxu0 0.0
  %1450 = vmatprep.subr.mxu0 0.0
  %1451 = vmatpush2.msra.mxu0 0.0
  %1452 = vmatprep.mubr.f32.mxu0 0.0
  %1453 = vmatmul.mubr.f32.gmra.mxu0 %v1316
  %v1454 = vpop.f32.mrf.mxu0
  %v1455 = vadd.f32 %v203, %v1454
  %v1456 = vpop.f32.mrf.mxu0
  %1457 = vdwg.mxu0
  %1458 = vmatprep.subr.mxu0 %v174
  %1459 = vmatpush1.msra.mxu0 %v173
  %1460 = vmatprep.subr.mxu0 %v171
  %1461 = vmatpush1.msra.mxu0 %v170
  %1462 = vmatprep.subr.mxu0 %v168
  %1463 = vmatpush1.msra.mxu0 %v167
  %1464 = vmatprep.subr.mxu0 %v165
  %1465 = vmatpush1.msra.mxu0 %v164
  %1466 = vmatprep.subr.mxu0 %v162
  %1467 = vmatpush1.msra.mxu0 %v161
  %1468 = vmatprep.subr.mxu0 %v159
  %1469 = vmatpush1.msra.mxu0 %v158
  %1470 = vmatprep.subr.mxu0 %v156
  %1471 = vmatpush1.msra.mxu0 %v155
  %1472 = vmatprep.subr.mxu0 %v153
  %1473 = vmatpush1.msra.mxu0 %v152
  %1474 = vmatprep.subr.mxu0 %v150
  %1475 = vmatpush1.msra.mxu0 %v149
  %1476 = vmatprep.subr.mxu0 %v147
  %1477 = vmatpush1.msra.mxu0 %v146
  %1478 = vmatprep.subr.mxu0 %v144
  %1479 = vmatpush1.msra.mxu0 %v143
  %1480 = vmatprep.subr.mxu0 %v141
  %1481 = vmatpush1.msra.mxu0 %v140
  %1482 = vmatprep.subr.mxu0 %v138
  %1483 = vmatpush1.msra.mxu0 %v137
  %1484 = vmatprep.subr.mxu0 %v135
  %1485 = vmatpush1.msra.mxu0 %v134
  %1486 = vmatprep.subr.mxu0 %v132
  %1487 = vmatpush1.msra.mxu0 %v131
  %1488 = vmatprep.subr.mxu0 %v129
  %1489 = vmatpush1.msra.mxu0 %v128
  %1490 = vmatprep.subr.mxu0 0.0
  %1491 = vmatpush2.msra.mxu0 0.0
  %1492 = vmatprep.subr.mxu0 0.0
  %1493 = vmatpush2.msra.mxu0 0.0
  %1494 = vmatprep.subr.mxu0 0.0
  %1495 = vmatpush2.msra.mxu0 0.0
  %1496 = vmatprep.subr.mxu0 0.0
  %1497 = vmatpush2.msra.mxu0 0.0
  %1498 = vmatprep.subr.mxu0 0.0
  %1499 = vmatpush2.msra.mxu0 0.0
  %1500 = vmatprep.subr.mxu0 0.0
  %1501 = vmatpush2.msra.mxu0 0.0
  %1502 = vmatprep.subr.mxu0 0.0
  %1503 = vmatpush2.msra.mxu0 0.0
  %1504 = vmatprep.subr.mxu0 0.0
  %1505 = vmatpush2.msra.mxu0 0.0
  %1506 = vmatprep.subr.mxu0 0.0
  %1507 = vmatpush2.msra.mxu0 0.0
  %1508 = vmatprep.subr.mxu0 0.0
  %1509 = vmatpush2.msra.mxu0 0.0
  %1510 = vmatprep.subr.mxu0 0.0
  %1511 = vmatpush2.msra.mxu0 0.0
  %1512 = vmatprep.subr.mxu0 0.0
  %1513 = vmatpush2.msra.mxu0 0.0
  %1514 = vmatprep.subr.mxu0 0.0
  %1515 = vmatpush2.msra.mxu0 0.0
  %1516 = vmatprep.subr.mxu0 0.0
  %1517 = vmatpush2.msra.mxu0 0.0
  %1518 = vmatprep.subr.mxu0 0.0
  %1519 = vmatpush2.msra.mxu0 0.0
  %1520 = vmatprep.subr.mxu0 0.0
  %1521 = vmatpush2.msra.mxu0 0.0
  %1522 = vmatprep.mubr.f32.mxu0 0.0
  %1523 = vmatmul.mubr.f32.gmra.mxu0 %v1149
  %v1524 = vpop.f32.mrf.mxu0
  %v1525 = vadd.f32 0.0, %v1524
  %v1526 = vpop.f32.mrf.mxu0
  %v1527 = vadd.f32 0.0, %v1526
  %1528 = vdwg.mxu0
  %1529 = vmatprep.subr.mxu0 0.0
  %1530 = vmatpush1.msra.mxu0 %v175
  %1531 = vmatprep.subr.mxu0 0.0
  %1532 = vmatpush1.msra.mxu0 %v172
  %1533 = vmatprep.subr.mxu0 0.0
  %1534 = vmatpush1.msra.mxu0 %v169
  %1535 = vmatprep.subr.mxu0 0.0
  %1536 = vmatpush1.msra.mxu0 %v166
  %1537 = vmatprep.subr.mxu0 0.0
  %1538 = vmatpush1.msra.mxu0 %v163
  %1539 = vmatprep.subr.mxu0 0.0
  %1540 = vmatpush1.msra.mxu0 %v160
  %1541 = vmatprep.subr.mxu0 0.0
  %1542 = vmatpush1.msra.mxu0 %v157
  %1543 = vmatprep.subr.mxu0 0.0
  %1544 = vmatpush1.msra.mxu0 %v154
  %1545 = vmatprep.subr.mxu0 0.0
  %1546 = vmatpush1.msra.mxu0 %v151
  %1547 = vmatprep.subr.mxu0 0.0
  %1548 = vmatpush1.msra.mxu0 %v148
  %1549 = vmatprep.subr.mxu0 0.0
  %1550 = vmatpush1.msra.mxu0 %v145
  %1551 = vmatprep.subr.mxu0 0.0
  %1552 = vmatpush1.msra.mxu0 %v142
  %1553 = vmatprep.subr.mxu0 0.0
  %1554 = vmatpush1.msra.mxu0 %v139
  %1555 = vmatprep.subr.mxu0 0.0
  %1556 = vmatpush1.msra.mxu0 %v136
  %1557 = vmatprep.subr.mxu0 0.0
  %1558 = vmatpush1.msra.mxu0 %v133
  %1559 = vmatprep.subr.mxu0 0.0
  %1560 = vmatpush1.msra.mxu0 %v130
  %1561 = vmatprep.subr.mxu0 0.0
  %1562 = vmatpush2.msra.mxu0 0.0
  %1563 = vmatprep.subr.mxu0 0.0
  %1564 = vmatpush2.msra.mxu0 0.0
  %1565 = vmatprep.subr.mxu0 0.0
  %1566 = vmatpush2.msra.mxu0 0.0
  %1567 = vmatprep.subr.mxu0 0.0
  %1568 = vmatpush2.msra.mxu0 0.0
  %1569 = vmatprep.subr.mxu0 0.0
  %1570 = vmatpush2.msra.mxu0 0.0
  %1571 = vmatprep.subr.mxu0 0.0
  %1572 = vmatpush2.msra.mxu0 0.0
  %1573 = vmatprep.subr.mxu0 0.0
  %1574 = vmatpush2.msra.mxu0 0.0
  %1575 = vmatprep.subr.mxu0 0.0
  %1576 = vmatpush2.msra.mxu0 0.0
  %1577 = vmatprep.subr.mxu0 0.0
  %1578 = vmatpush2.msra.mxu0 0.0
  %1579 = vmatprep.subr.mxu0 0.0
  %1580 = vmatpush2.msra.mxu0 0.0
  %1581 = vmatprep.subr.mxu0 0.0
  %1582 = vmatpush2.msra.mxu0 0.0
  %1583 = vmatprep.subr.mxu0 0.0
  %1584 = vmatpush2.msra.mxu0 0.0
  %1585 = vmatprep.subr.mxu0 0.0
  %1586 = vmatpush2.msra.mxu0 0.0
  %1587 = vmatprep.subr.mxu0 0.0
  %1588 = vmatpush2.msra.mxu0 0.0
  %1589 = vmatprep.subr.mxu0 0.0
  %1590 = vmatpush2.msra.mxu0 0.0
  %1591 = vmatprep.subr.mxu0 0.0
  %1592 = vmatpush2.msra.mxu0 0.0
  %1593 = vmatprep.mubr.f32.mxu0 0.0
  %1594 = vmatmul.mubr.f32.gmra.mxu0 %v1149
  %v1595 = vpop.f32.mrf.mxu0
  %v1596 = vadd.f32 0.0, %v1595
  %v1597 = vpop.f32.mrf.mxu0
  %1598 = vdwg.mxu0
  %v1599 = vadd.f32 %v1384, %v1525
  %v1600 = vxor.u32 %v1599, 2147483648
  %v1601 = vmul.f32 %v1600, 1.442695
  %v1602 = vpow.pop %v1601
  %v1603 = vadd.f32 %v1602, 1.0
  %v1604 = vrcp.pop %v1603
  %v1605 = vmul.f32 1.0, %v1604
  %v1606 = vadd.f32 %v1386, %v1527
  %v1607 = vxor.u32 %v1606, 2147483648
  %v1608 = vmul.f32 %v1607, 1.442695
  %v1609 = vpow.pop %v1608
  %v1610 = vadd.f32 %v1609, 1.0
  %v1611 = vrcp.pop %v1610
  %v1612 = vmul.f32 1.0, %v1611
  %v1613 = vadd.f32 %v1596, %v188
  %v1614 = vmul.f32 %v1605, %v1613
  %v1615 = vadd.f32 %v1455, %v1614
  %v1616 = vtanh.pop %v1615
  %v1617 = vsub.f32 1.0, %v1612
  %v1618 = vmul.f32 %v1617, %v1616
  %v1619 = vmul.f32 %v1612, %v1149
  %v1620 = vadd.f32 %v1618, %v1619
  %s1621 = scalar_lea.vmem %s0, 72
  %v1622 = vld [vmem:[%s1621] sm:$0xff]
  %v1623 = vld [vmem:[%s1621 + $0x8] sm:$0xff]
  %v1624 = vld [vmem:[%s1621 + $0x10] sm:$0xff]
  %1625 = vmatprep.subr.mxu0 %v78
  %1626 = vmatpush1.msra.mxu0 %v77
  %1627 = vmatprep.subr.mxu0 %v75
  %1628 = vmatpush1.msra.mxu0 %v74
  %1629 = vmatprep.subr.mxu0 %v72
  %1630 = vmatpush1.msra.mxu0 %v71
  %1631 = vmatprep.subr.mxu0 %v69
  %1632 = vmatpush1.msra.mxu0 %v68
  %1633 = vmatprep.subr.mxu0 %v66
  %1634 = vmatpush1.msra.mxu0 %v65
  %1635 = vmatprep.subr.mxu0 %v63
  %1636 = vmatpush1.msra.mxu0 %v62
  %1637 = vmatprep.subr.mxu0 %v60
  %1638 = vmatpush1.msra.mxu0 %v59
  %1639 = vmatprep.subr.mxu0 %v57
  %1640 = vmatpush1.msra.mxu0 %v56
  %1641 = vmatprep.subr.mxu0 %v54
  %1642 = vmatpush1.msra.mxu0 %v53
  %1643 = vmatprep.subr.mxu0 %v51
  %1644 = vmatpush1.msra.mxu0 %v50
  %1645 = vmatprep.subr.mxu0 %v48
  %1646 = vmatpush1.msra.mxu0 %v47
  %1647 = vmatprep.subr.mxu0 %v45
  %1648 = vmatpush1.msra.mxu0 %v44
  %1649 = vmatprep.subr.mxu0 %v42
  %1650 = vmatpush1.msra.mxu0 %v41
  %1651 = vmatprep.subr.mxu0 %v39
  %1652 = vmatpush1.msra.mxu0 %v38
  %1653 = vmatprep.subr.mxu0 %v36
  %1654 = vmatpush1.msra.mxu0 %v35
  %1655 = vmatprep.subr.mxu0 %v33
  %1656 = vmatpush1.msra.mxu0 %v32
  %1657 = vmatprep.subr.mxu0 0.0
  %1658 = vmatpush2.msra.mxu0 0.0
  %1659 = vmatprep.subr.mxu0 0.0
  %1660 = vmatpush2.msra.mxu0 0.0
  %1661 = vmatprep.subr.mxu0 0.0
  %1662 = vmatpush2.msra.mxu0 0.0
  %1663 = vmatprep.subr.mxu0 0.0
  %1664 = vmatpush2.msra.mxu0 0.0
  %1665 = vmatprep.subr.mxu0 0.0
  %1666 = vmatpush2.msra.mxu0 0.0
  %1667 = vmatprep.subr.mxu0 0.0
  %1668 = vmatpush2.msra.mxu0 0.0
  %1669 = vmatprep.subr.mxu0 0.0
  %1670 = vmatpush2.msra.mxu0 0.0
  %1671 = vmatprep.subr.mxu0 0.0
  %1672 = vmatpush2.msra.mxu0 0.0
  %1673 = vmatprep.subr.mxu0 0.0
  %1674 = vmatpush2.msra.mxu0 0.0
  %1675 = vmatprep.subr.mxu0 0.0
  %1676 = vmatpush2.msra.mxu0 0.0
  %1677 = vmatprep.subr.mxu0 0.0
  %1678 = vmatpush2.msra.mxu0 0.0
  %1679 = vmatprep.subr.mxu0 0.0
  %1680 = vmatpush2.msra.mxu0 0.0
  %1681 = vmatprep.subr.mxu0 0.0
  %1682 = vmatpush2.msra.mxu0 0.0
  %1683 = vmatprep.subr.mxu0 0.0
  %1684 = vmatpush2.msra.mxu0 0.0
  %1685 = vmatprep.subr.mxu0 0.0
  %1686 = vmatpush2.msra.mxu0 0.0
  %1687 = vmatprep.subr.mxu0 0.0
  %1688 = vmatpush2.msra.mxu0 0.0
  %1689 = vmatprep.mubr.f32.mxu0 0.0
  %1690 = vmatmul.mubr.f32.gmra.mxu0 %v1316
  %v1691 = vpop.f32.mrf.mxu0
  %v1692 = vadd.f32 0.0, %v1691
  %v1693 = vpop.f32.mrf.mxu0
  %v1694 = vadd.f32 0.0, %v1693
  %1695 = vdwg.mxu0
  %1696 = vmatprep.subr.mxu0 0.0
  %1697 = vmatpush1.msra.mxu0 %v79
  %1698 = vmatprep.subr.mxu0 0.0
  %1699 = vmatpush1.msra.mxu0 %v76
  %1700 = vmatprep.subr.mxu0 0.0
  %1701 = vmatpush1.msra.mxu0 %v73
  %1702 = vmatprep.subr.mxu0 0.0
  %1703 = vmatpush1.msra.mxu0 %v70
  %1704 = vmatprep.subr.mxu0 0.0
  %1705 = vmatpush1.msra.mxu0 %v67
  %1706 = vmatprep.subr.mxu0 0.0
  %1707 = vmatpush1.msra.mxu0 %v64
  %1708 = vmatprep.subr.mxu0 0.0
  %1709 = vmatpush1.msra.mxu0 %v61
  %1710 = vmatprep.subr.mxu0 0.0
  %1711 = vmatpush1.msra.mxu0 %v58
  %1712 = vmatprep.subr.mxu0 0.0
  %1713 = vmatpush1.msra.mxu0 %v55
  %1714 = vmatprep.subr.mxu0 0.0
  %1715 = vmatpush1.msra.mxu0 %v52
  %1716 = vmatprep.subr.mxu0 0.0
  %1717 = vmatpush1.msra.mxu0 %v49
  %1718 = vmatprep.subr.mxu0 0.0
  %1719 = vmatpush1.msra.mxu0 %v46
  %1720 = vmatprep.subr.mxu0 0.0
  %1721 = vmatpush1.msra.mxu0 %v43
  %1722 = vmatprep.subr.mxu0 0.0
  %1723 = vmatpush1.msra.mxu0 %v40
  %1724 = vmatprep.subr.mxu0 0.0
  %1725 = vmatpush1.msra.mxu0 %v37
  %1726 = vmatprep.subr.mxu0 0.0
  %1727 = vmatpush1.msra.mxu0 %v34
  %1728 = vmatprep.subr.mxu0 0.0
  %1729 = vmatpush2.msra.mxu0 0.0
  %1730 = vmatprep.subr.mxu0 0.0
  %1731 = vmatpush2.msra.mxu0 0.0
  %1732 = vmatprep.subr.mxu0 0.0
  %1733 = vmatpush2.msra.mxu0 0.0
  %1734 = vmatprep.subr.mxu0 0.0
  %1735 = vmatpush2.msra.mxu0 0.0
  %1736 = vmatprep.subr.mxu0 0.0
  %1737 = vmatpush2.msra.mxu0 0.0
  %1738 = vmatprep.subr.mxu0 0.0
  %1739 = vmatpush2.msra.mxu0 0.0
  %1740 = vmatprep.subr.mxu0 0.0
  %1741 = vmatpush2.msra.mxu0 0.0
  %1742 = vmatprep.subr.mxu0 0.0
  %1743 = vmatpush2.msra.mxu0 0.0
  %1744 = vmatprep.subr.mxu0 0.0
  %1745 = vmatpush2.msra.mxu0 0.0
  %1746 = vmatprep.subr.mxu0 0.0
  %1747 = vmatpush2.msra.mxu0 0.0
  %1748 = vmatprep.subr.mxu0 0.0
  %1749 = vmatpush2.msra.mxu0 0.0
  %1750 = vmatprep.subr.mxu0 0.0
  %1751 = vmatpush2.msra.mxu0 0.0
  %1752 = vmatprep.subr.mxu0 0.0
  %1753 = vmatpush2.msra.mxu0 0.0
  %1754 = vmatprep.subr.mxu0 0.0
  %1755 = vmatpush2.msra.mxu0 0.0
  %1756 = vmatprep.subr.mxu0 0.0
  %1757 = vmatpush2.msra.mxu0 0.0
  %1758 = vmatprep.subr.mxu0 0.0
  %1759 = vmatpush2.msra.mxu0 0.0
  %1760 = vmatprep.mubr.f32.mxu0 0.0
  %1761 = vmatmul.mubr.f32.gmra.mxu0 %v1316
  %v1762 = vpop.f32.mrf.mxu0
  %v1763 = vadd.f32 0.0, %v1762
  %v1764 = vpop.f32.mrf.mxu0
  %1765 = vdwg.mxu0
  %v1766 = vadd.f32 %v1622, %v1692
  %v1767 = vxor.u32 %v1766, 2147483648
  %v1768 = vmul.f32 %v1767, 1.442695
  %v1769 = vpow.pop %v1768
  %v1770 = vadd.f32 %v1769, 1.0
  %v1771 = vrcp.pop %v1770
  %v1772 = vmul.f32 1.0, %v1771
  %v1773 = vadd.f32 %v1623, %v1694
  %v1774 = vxor.u32 %v1773, 2147483648
  %v1775 = vmul.f32 %v1774, 1.442695
  %v1776 = vpow.pop %v1775
  %v1777 = vadd.f32 %v1776, 1.0
  %v1778 = vrcp.pop %v1777
  %v1779 = vmul.f32 1.0, %v1778
  %v1780 = vadd.f32 %v1763, %v181
  %v1781 = vmul.f32 %v1772, %v1780
  %v1782 = vadd.f32 %v1624, %v1781
  %v1783 = vtanh.pop %v1782
  %v1784 = vsub.f32 1.0, %v1779
  %v1785 = vmul.f32 %v1784, %v1783
  %v1786 = vmul.f32 %v1779, %v1316
  %v1787 = vadd.f32 %v1785, %v1786
  %1788 = vmatprep.subr.mxu0 %v126
  %1789 = vmatpush1.msra.mxu0 %v125
  %1790 = vmatprep.subr.mxu0 %v123
  %1791 = vmatpush1.msra.mxu0 %v122
  %1792 = vmatprep.subr.mxu0 %v120
  %1793 = vmatpush1.msra.mxu0 %v119
  %1794 = vmatprep.subr.mxu0 %v117
  %1795 = vmatpush1.msra.mxu0 %v116
  %1796 = vmatprep.subr.mxu0 %v114
  %1797 = vmatpush1.msra.mxu0 %v113
  %1798 = vmatprep.subr.mxu0 %v111
  %1799 = vmatpush1.msra.mxu0 %v110
  %1800 = vmatprep.subr.mxu0 %v108
  %1801 = vmatpush1.msra.mxu0 %v107
  %1802 = vmatprep.subr.mxu0 %v105
  %1803 = vmatpush1.msra.mxu0 %v104
  %1804 = vmatprep.subr.mxu0 %v102
  %1805 = vmatpush1.msra.mxu0 %v101
  %1806 = vmatprep.subr.mxu0 %v99
  %1807 = vmatpush1.msra.mxu0 %v98
  %1808 = vmatprep.subr.mxu0 %v96
  %1809 = vmatpush1.msra.mxu0 %v95
  %1810 = vmatprep.subr.mxu0 %v93
  %1811 = vmatpush1.msra.mxu0 %v92
  %1812 = vmatprep.subr.mxu0 %v90
  %1813 = vmatpush1.msra.mxu0 %v89
  %1814 = vmatprep.subr.mxu0 %v87
  %1815 = vmatpush1.msra.mxu0 %v86
  %1816 = vmatprep.subr.mxu0 %v84
  %1817 = vmatpush1.msra.mxu0 %v83
  %1818 = vmatprep.subr.mxu0 %v81
  %1819 = vmatpush1.msra.mxu0 %v80
  %1820 = vmatprep.subr.mxu0 0.0
  %1821 = vmatpush2.msra.mxu0 0.0
  %1822 = vmatprep.subr.mxu0 0.0
  %1823 = vmatpush2.msra.mxu0 0.0
  %1824 = vmatprep.subr.mxu0 0.0
  %1825 = vmatpush2.msra.mxu0 0.0
  %1826 = vmatprep.subr.mxu0 0.0
  %1827 = vmatpush2.msra.mxu0 0.0
  %1828 = vmatprep.subr.mxu0 0.0
  %1829 = vmatpush2.msra.mxu0 0.0
  %1830 = vmatprep.subr.mxu0 0.0
  %1831 = vmatpush2.msra.mxu0 0.0
  %1832 = vmatprep.subr.mxu0 0.0
  %1833 = vmatpush2.msra.mxu0 0.0
  %1834 = vmatprep.subr.mxu0 0.0
  %1835 = vmatpush2.msra.mxu0 0.0
  %1836 = vmatprep.subr.mxu0 0.0
  %1837 = vmatpush2.msra.mxu0 0.0
  %1838 = vmatprep.subr.mxu0 0.0
  %1839 = vmatpush2.msra.mxu0 0.0
  %1840 = vmatprep.subr.mxu0 0.0
  %1841 = vmatpush2.msra.mxu0 0.0
  %1842 = vmatprep.subr.mxu0 0.0
  %1843 = vmatpush2.msra.mxu0 0.0
  %1844 = vmatprep.subr.mxu0 0.0
  %1845 = vmatpush2.msra.mxu0 0.0
  %1846 = vmatprep.subr.mxu0 0.0
  %1847 = vmatpush2.msra.mxu0 0.0
  %1848 = vmatprep.subr.mxu0 0.0
  %1849 = vmatpush2.msra.mxu0 0.0
  %1850 = vmatprep.subr.mxu0 0.0
  %1851 = vmatpush2.msra.mxu0 0.0
  %1852 = vmatprep.mubr.f32.mxu0 0.0
  %1853 = vmatmul.mubr.f32.gmra.mxu0 %v1787
  %v1854 = vpop.f32.mrf.mxu0
  %v1855 = vadd.f32 %v195, %v1854
  %v1856 = vpop.f32.mrf.mxu0
  %v1857 = vadd.f32 %v199, %v1856
  %1858 = vdwg.mxu0
  %1859 = vmatprep.subr.mxu0 0.0
  %1860 = vmatpush1.msra.mxu0 %v127
  %1861 = vmatprep.subr.mxu0 0.0
  %1862 = vmatpush1.msra.mxu0 %v124
  %1863 = vmatprep.subr.mxu0 0.0
  %1864 = vmatpush1.msra.mxu0 %v121
  %1865 = vmatprep.subr.mxu0 0.0
  %1866 = vmatpush1.msra.mxu0 %v118
  %1867 = vmatprep.subr.mxu0 0.0
  %1868 = vmatpush1.msra.mxu0 %v115
  %1869 = vmatprep.subr.mxu0 0.0
  %1870 = vmatpush1.msra.mxu0 %v112
  %1871 = vmatprep.subr.mxu0 0.0
  %1872 = vmatpush1.msra.mxu0 %v109
  %1873 = vmatprep.subr.mxu0 0.0
  %1874 = vmatpush1.msra.mxu0 %v106
  %1875 = vmatprep.subr.mxu0 0.0
  %1876 = vmatpush1.msra.mxu0 %v103
  %1877 = vmatprep.subr.mxu0 0.0
  %1878 = vmatpush1.msra.mxu0 %v100
  %1879 = vmatprep.subr.mxu0 0.0
  %1880 = vmatpush1.msra.mxu0 %v97
  %1881 = vmatprep.subr.mxu0 0.0
  %1882 = vmatpush1.msra.mxu0 %v94
  %1883 = vmatprep.subr.mxu0 0.0
  %1884 = vmatpush1.msra.mxu0 %v91
  %1885 = vmatprep.subr.mxu0 0.0
  %1886 = vmatpush1.msra.mxu0 %v88
  %1887 = vmatprep.subr.mxu0 0.0
  %1888 = vmatpush1.msra.mxu0 %v85
  %1889 = vmatprep.subr.mxu0 0.0
  %1890 = vmatpush1.msra.mxu0 %v82
  %1891 = vmatprep.subr.mxu0 0.0
  %1892 = vmatpush2.msra.mxu0 0.0
  %1893 = vmatprep.subr.mxu0 0.0
  %1894 = vmatpush2.msra.mxu0 0.0
  %1895 = vmatprep.subr.mxu0 0.0
  %1896 = vmatpush2.msra.mxu0 0.0
  %1897 = vmatprep.subr.mxu0 0.0
  %1898 = vmatpush2.msra.mxu0 0.0
  %1899 = vmatprep.subr.mxu0 0.0
  %1900 = vmatpush2.msra.mxu0 0.0
  %1901 = vmatprep.subr.mxu0 0.0
  %1902 = vmatpush2.msra.mxu0 0.0
  %1903 = vmatprep.subr.mxu0 0.0
  %1904 = vmatpush2.msra.mxu0 0.0
  %1905 = vmatprep.subr.mxu0 0.0
  %1906 = vmatpush2.msra.mxu0 0.0
  %1907 = vmatprep.subr.mxu0 0.0
  %1908 = vmatpush2.msra.mxu0 0.0
  %1909 = vmatprep.subr.mxu0 0.0
  %1910 = vmatpush2.msra.mxu0 0.0
  %1911 = vmatprep.subr.mxu0 0.0
  %1912 = vmatpush2.msra.mxu0 0.0
  %1913 = vmatprep.subr.mxu0 0.0
  %1914 = vmatpush2.msra.mxu0 0.0
  %1915 = vmatprep.subr.mxu0 0.0
  %1916 = vmatpush2.msra.mxu0 0.0
  %1917 = vmatprep.subr.mxu0 0.0
  %1918 = vmatpush2.msra.mxu0 0.0
  %1919 = vmatprep.subr.mxu0 0.0
  %1920 = vmatpush2.msra.mxu0 0.0
  %1921 = vmatprep.subr.mxu0 0.0
  %1922 = vmatpush2.msra.mxu0 0.0
  %1923 = vmatprep.mubr.f32.mxu0 0.0
  %1924 = vmatmul.mubr.f32.gmra.mxu0 %v1787
  %v1925 = vpop.f32.mrf.mxu0
  %v1926 = vadd.f32 %v203, %v1925
  %v1927 = vpop.f32.mrf.mxu0
  %1928 = vdwg.mxu0
  %1929 = vmatprep.subr.mxu0 %v174
  %1930 = vmatpush1.msra.mxu0 %v173
  %1931 = vmatprep.subr.mxu0 %v171
  %1932 = vmatpush1.msra.mxu0 %v170
  %1933 = vmatprep.subr.mxu0 %v168
  %1934 = vmatpush1.msra.mxu0 %v167
  %1935 = vmatprep.subr.mxu0 %v165
  %1936 = vmatpush1.msra.mxu0 %v164
  %1937 = vmatprep.subr.mxu0 %v162
  %1938 = vmatpush1.msra.mxu0 %v161
  %1939 = vmatprep.subr.mxu0 %v159
  %1940 = vmatpush1.msra.mxu0 %v158
  %1941 = vmatprep.subr.mxu0 %v156
  %1942 = vmatpush1.msra.mxu0 %v155
  %1943 = vmatprep.subr.mxu0 %v153
  %1944 = vmatpush1.msra.mxu0 %v152
  %1945 = vmatprep.subr.mxu0 %v150
  %1946 = vmatpush1.msra.mxu0 %v149
  %1947 = vmatprep.subr.mxu0 %v147
  %1948 = vmatpush1.msra.mxu0 %v146
  %1949 = vmatprep.subr.mxu0 %v144
  %1950 = vmatpush1.msra.mxu0 %v143
  %1951 = vmatprep.subr.mxu0 %v141
  %1952 = vmatpush1.msra.mxu0 %v140
  %1953 = vmatprep.subr.mxu0 %v138
  %1954 = vmatpush1.msra.mxu0 %v137
  %1955 = vmatprep.subr.mxu0 %v135
  %1956 = vmatpush1.msra.mxu0 %v134
  %1957 = vmatprep.subr.mxu0 %v132
  %1958 = vmatpush1.msra.mxu0 %v131
  %1959 = vmatprep.subr.mxu0 %v129
  %1960 = vmatpush1.msra.mxu0 %v128
  %1961 = vmatprep.subr.mxu0 0.0
  %1962 = vmatpush2.msra.mxu0 0.0
  %1963 = vmatprep.subr.mxu0 0.0
  %1964 = vmatpush2.msra.mxu0 0.0
  %1965 = vmatprep.subr.mxu0 0.0
  %1966 = vmatpush2.msra.mxu0 0.0
  %1967 = vmatprep.subr.mxu0 0.0
  %1968 = vmatpush2.msra.mxu0 0.0
  %1969 = vmatprep.subr.mxu0 0.0
  %1970 = vmatpush2.msra.mxu0 0.0
  %1971 = vmatprep.subr.mxu0 0.0
  %1972 = vmatpush2.msra.mxu0 0.0
  %1973 = vmatprep.subr.mxu0 0.0
  %1974 = vmatpush2.msra.mxu0 0.0
  %1975 = vmatprep.subr.mxu0 0.0
  %1976 = vmatpush2.msra.mxu0 0.0
  %1977 = vmatprep.subr.mxu0 0.0
  %1978 = vmatpush2.msra.mxu0 0.0
  %1979 = vmatprep.subr.mxu0 0.0
  %1980 = vmatpush2.msra.mxu0 0.0
  %1981 = vmatprep.subr.mxu0 0.0
  %1982 = vmatpush2.msra.mxu0 0.0
  %1983 = vmatprep.subr.mxu0 0.0
  %1984 = vmatpush2.msra.mxu0 0.0
  %1985 = vmatprep.subr.mxu0 0.0
  %1986 = vmatpush2.msra.mxu0 0.0
  %1987 = vmatprep.subr.mxu0 0.0
  %1988 = vmatpush2.msra.mxu0 0.0
  %1989 = vmatprep.subr.mxu0 0.0
  %1990 = vmatpush2.msra.mxu0 0.0
  %1991 = vmatprep.subr.mxu0 0.0
  %1992 = vmatpush2.msra.mxu0 0.0
  %1993 = vmatprep.mubr.f32.mxu0 0.0
  %1994 = vmatmul.mubr.f32.gmra.mxu0 %v1620
  %v1995 = vpop.f32.mrf.mxu0
  %v1996 = vadd.f32 0.0, %v1995
  %v1997 = vpop.f32.mrf.mxu0
  %v1998 = vadd.f32 0.0, %v1997
  %1999 = vdwg.mxu0
  %2000 = vmatprep.subr.mxu0 0.0
  %2001 = vmatpush1.msra.mxu0 %v175
  %2002 = vmatprep.subr.mxu0 0.0
  %2003 = vmatpush1.msra.mxu0 %v172
  %2004 = vmatprep.subr.mxu0 0.0
  %2005 = vmatpush1.msra.mxu0 %v169
  %2006 = vmatprep.subr.mxu0 0.0
  %2007 = vmatpush1.msra.mxu0 %v166
  %2008 = vmatprep.subr.mxu0 0.0
  %2009 = vmatpush1.msra.mxu0 %v163
  %2010 = vmatprep.subr.mxu0 0.0
  %2011 = vmatpush1.msra.mxu0 %v160
  %2012 = vmatprep.subr.mxu0 0.0
  %2013 = vmatpush1.msra.mxu0 %v157
  %2014 = vmatprep.subr.mxu0 0.0
  %2015 = vmatpush1.msra.mxu0 %v154
  %2016 = vmatprep.subr.mxu0 0.0
  %2017 = vmatpush1.msra.mxu0 %v151
  %2018 = vmatprep.subr.mxu0 0.0
  %2019 = vmatpush1.msra.mxu0 %v148
  %2020 = vmatprep.subr.mxu0 0.0
  %2021 = vmatpush1.msra.mxu0 %v145
  %2022 = vmatprep.subr.mxu0 0.0
  %2023 = vmatpush1.msra.mxu0 %v142
  %2024 = vmatprep.subr.mxu0 0.0
  %2025 = vmatpush1.msra.mxu0 %v139
  %2026 = vmatprep.subr.mxu0 0.0
  %2027 = vmatpush1.msra.mxu0 %v136
  %2028 = vmatprep.subr.mxu0 0.0
  %2029 = vmatpush1.msra.mxu0 %v133
  %2030 = vmatprep.subr.mxu0 0.0
  %2031 = vmatpush1.msra.mxu0 %v130
  %2032 = vmatprep.subr.mxu0 0.0
  %2033 = vmatpush2.msra.mxu0 0.0
  %2034 = vmatprep.subr.mxu0 0.0
  %2035 = vmatpush2.msra.mxu0 0.0
  %2036 = vmatprep.subr.mxu0 0.0
  %2037 = vmatpush2.msra.mxu0 0.0
  %2038 = vmatprep.subr.mxu0 0.0
  %2039 = vmatpush2.msra.mxu0 0.0
  %2040 = vmatprep.subr.mxu0 0.0
  %2041 = vmatpush2.msra.mxu0 0.0
  %2042 = vmatprep.subr.mxu0 0.0
  %2043 = vmatpush2.msra.mxu0 0.0
  %2044 = vmatprep.subr.mxu0 0.0
  %2045 = vmatpush2.msra.mxu0 0.0
  %2046 = vmatprep.subr.mxu0 0.0
  %2047 = vmatpush2.msra.mxu0 0.0
  %2048 = vmatprep.subr.mxu0 0.0
  %2049 = vmatpush2.msra.mxu0 0.0
  %2050 = vmatprep.subr.mxu0 0.0
  %2051 = vmatpush2.msra.mxu0 0.0
  %2052 = vmatprep.subr.mxu0 0.0
  %2053 = vmatpush2.msra.mxu0 0.0
  %2054 = vmatprep.subr.mxu0 0.0
  %2055 = vmatpush2.msra.mxu0 0.0
  %2056 = vmatprep.subr.mxu0 0.0
  %2057 = vmatpush2.msra.mxu0 0.0
  %2058 = vmatprep.subr.mxu0 0.0
  %2059 = vmatpush2.msra.mxu0 0.0
  %2060 = vmatprep.subr.mxu0 0.0
  %2061 = vmatpush2.msra.mxu0 0.0
  %2062 = vmatprep.subr.mxu0 0.0
  %2063 = vmatpush2.msra.mxu0 0.0
  %2064 = vmatprep.mubr.f32.mxu0 0.0
  %2065 = vmatmul.mubr.f32.gmra.mxu0 %v1620
  %v2066 = vpop.f32.mrf.mxu0
  %v2067 = vadd.f32 0.0, %v2066
  %v2068 = vpop.f32.mrf.mxu0
  %2069 = vdwg.mxu0
  %v2070 = vadd.f32 %v1855, %v1996
  %v2071 = vxor.u32 %v2070, 2147483648
  %v2072 = vmul.f32 %v2071, 1.442695
  %v2073 = vpow.pop %v2072
  %v2074 = vadd.f32 %v2073, 1.0
  %v2075 = vrcp.pop %v2074
  %v2076 = vmul.f32 1.0, %v2075
  %v2077 = vadd.f32 %v1857, %v1998
  %v2078 = vxor.u32 %v2077, 2147483648
  %v2079 = vmul.f32 %v2078, 1.442695
  %v2080 = vpow.pop %v2079
  %v2081 = vadd.f32 %v2080, 1.0
  %v2082 = vrcp.pop %v2081
  %v2083 = vmul.f32 1.0, %v2082
  %v2084 = vadd.f32 %v2067, %v188
  %v2085 = vmul.f32 %v2076, %v2084
  %v2086 = vadd.f32 %v1926, %v2085
  %v2087 = vtanh.pop %v2086
  %v2088 = vsub.f32 1.0, %v2083
  %v2089 = vmul.f32 %v2088, %v2087
  %v2090 = vmul.f32 %v2083, %v1620
  %v2091 = vadd.f32 %v2089, %v2090
  %s2092 = scalar_lea.vmem %s0, 96
  %v2093 = vld [vmem:[%s2092] sm:$0xff]
  %v2094 = vld [vmem:[%s2092 + $0x8] sm:$0xff]
  %v2095 = vld [vmem:[%s2092 + $0x10] sm:$0xff]
  %2096 = vmatprep.subr.mxu0 %v78
  %2097 = vmatpush1.msra.mxu0 %v77
  %2098 = vmatprep.subr.mxu0 %v75
  %2099 = vmatpush1.msra.mxu0 %v74
  %2100 = vmatprep.subr.mxu0 %v72
  %2101 = vmatpush1.msra.mxu0 %v71
  %2102 = vmatprep.subr.mxu0 %v69
  %2103 = vmatpush1.msra.mxu0 %v68
  %2104 = vmatprep.subr.mxu0 %v66
  %2105 = vmatpush1.msra.mxu0 %v65
  %2106 = vmatprep.subr.mxu0 %v63
  %2107 = vmatpush1.msra.mxu0 %v62
  %2108 = vmatprep.subr.mxu0 %v60
  %2109 = vmatpush1.msra.mxu0 %v59
  %2110 = vmatprep.subr.mxu0 %v57
  %2111 = vmatpush1.msra.mxu0 %v56
  %2112 = vmatprep.subr.mxu0 %v54
  %2113 = vmatpush1.msra.mxu0 %v53
  %2114 = vmatprep.subr.mxu0 %v51
  %2115 = vmatpush1.msra.mxu0 %v50
  %2116 = vmatprep.subr.mxu0 %v48
  %2117 = vmatpush1.msra.mxu0 %v47
  %2118 = vmatprep.subr.mxu0 %v45
  %2119 = vmatpush1.msra.mxu0 %v44
  %2120 = vmatprep.subr.mxu0 %v42
  %2121 = vmatpush1.msra.mxu0 %v41
  %2122 = vmatprep.subr.mxu0 %v39
  %2123 = vmatpush1.msra.mxu0 %v38
  %2124 = vmatprep.subr.mxu0 %v36
  %2125 = vmatpush1.msra.mxu0 %v35
  %2126 = vmatprep.subr.mxu0 %v33
  %2127 = vmatpush1.msra.mxu0 %v32
  %2128 = vmatprep.subr.mxu0 0.0
  %2129 = vmatpush2.msra.mxu0 0.0
  %2130 = vmatprep.subr.mxu0 0.0
  %2131 = vmatpush2.msra.mxu0 0.0
  %2132 = vmatprep.subr.mxu0 0.0
  %2133 = vmatpush2.msra.mxu0 0.0
  %2134 = vmatprep.subr.mxu0 0.0
  %2135 = vmatpush2.msra.mxu0 0.0
  %2136 = vmatprep.subr.mxu0 0.0
  %2137 = vmatpush2.msra.mxu0 0.0
  %2138 = vmatprep.subr.mxu0 0.0
  %2139 = vmatpush2.msra.mxu0 0.0
  %2140 = vmatprep.subr.mxu0 0.0
  %2141 = vmatpush2.msra.mxu0 0.0
  %2142 = vmatprep.subr.mxu0 0.0
  %2143 = vmatpush2.msra.mxu0 0.0
  %2144 = vmatprep.subr.mxu0 0.0
  %2145 = vmatpush2.msra.mxu0 0.0
  %2146 = vmatprep.subr.mxu0 0.0
  %2147 = vmatpush2.msra.mxu0 0.0
  %2148 = vmatprep.subr.mxu0 0.0
  %2149 = vmatpush2.msra.mxu0 0.0
  %2150 = vmatprep.subr.mxu0 0.0
  %2151 = vmatpush2.msra.mxu0 0.0
  %2152 = vmatprep.subr.mxu0 0.0
  %2153 = vmatpush2.msra.mxu0 0.0
  %2154 = vmatprep.subr.mxu0 0.0
  %2155 = vmatpush2.msra.mxu0 0.0
  %2156 = vmatprep.subr.mxu0 0.0
  %2157 = vmatpush2.msra.mxu0 0.0
  %2158 = vmatprep.subr.mxu0 0.0
  %2159 = vmatpush2.msra.mxu0 0.0
  %2160 = vmatprep.mubr.f32.mxu0 0.0
  %2161 = vmatmul.mubr.f32.gmra.mxu0 %v1787
  %v2162 = vpop.f32.mrf.mxu0
  %v2163 = vadd.f32 0.0, %v2162
  %v2164 = vpop.f32.mrf.mxu0
  %v2165 = vadd.f32 0.0, %v2164
  %2166 = vdwg.mxu0
  %2167 = vmatprep.subr.mxu0 0.0
  %2168 = vmatpush1.msra.mxu0 %v79
  %2169 = vmatprep.subr.mxu0 0.0
  %2170 = vmatpush1.msra.mxu0 %v76
  %2171 = vmatprep.subr.mxu0 0.0
  %2172 = vmatpush1.msra.mxu0 %v73
  %2173 = vmatprep.subr.mxu0 0.0
  %2174 = vmatpush1.msra.mxu0 %v70
  %2175 = vmatprep.subr.mxu0 0.0
  %2176 = vmatpush1.msra.mxu0 %v67
  %2177 = vmatprep.subr.mxu0 0.0
  %2178 = vmatpush1.msra.mxu0 %v64
  %2179 = vmatprep.subr.mxu0 0.0
  %2180 = vmatpush1.msra.mxu0 %v61
  %2181 = vmatprep.subr.mxu0 0.0
  %2182 = vmatpush1.msra.mxu0 %v58
  %2183 = vmatprep.subr.mxu0 0.0
  %2184 = vmatpush1.msra.mxu0 %v55
  %2185 = vmatprep.subr.mxu0 0.0
  %2186 = vmatpush1.msra.mxu0 %v52
  %2187 = vmatprep.subr.mxu0 0.0
  %2188 = vmatpush1.msra.mxu0 %v49
  %2189 = vmatprep.subr.mxu0 0.0
  %2190 = vmatpush1.msra.mxu0 %v46
  %2191 = vmatprep.subr.mxu0 0.0
  %2192 = vmatpush1.msra.mxu0 %v43
  %2193 = vmatprep.subr.mxu0 0.0
  %2194 = vmatpush1.msra.mxu0 %v40
  %2195 = vmatprep.subr.mxu0 0.0
  %2196 = vmatpush1.msra.mxu0 %v37
  %2197 = vmatprep.subr.mxu0 0.0
  %2198 = vmatpush1.msra.mxu0 %v34
  %2199 = vmatprep.subr.mxu0 0.0
  %2200 = vmatpush2.msra.mxu0 0.0
  %2201 = vmatprep.subr.mxu0 0.0
  %2202 = vmatpush2.msra.mxu0 0.0
  %2203 = vmatprep.subr.mxu0 0.0
  %2204 = vmatpush2.msra.mxu0 0.0
  %2205 = vmatprep.subr.mxu0 0.0
  %2206 = vmatpush2.msra.mxu0 0.0
  %2207 = vmatprep.subr.mxu0 0.0
  %2208 = vmatpush2.msra.mxu0 0.0
  %2209 = vmatprep.subr.mxu0 0.0
  %2210 = vmatpush2.msra.mxu0 0.0
  %2211 = vmatprep.subr.mxu0 0.0
  %2212 = vmatpush2.msra.mxu0 0.0
  %2213 = vmatprep.subr.mxu0 0.0
  %2214 = vmatpush2.msra.mxu0 0.0
  %2215 = vmatprep.subr.mxu0 0.0
  %2216 = vmatpush2.msra.mxu0 0.0
  %2217 = vmatprep.subr.mxu0 0.0
  %2218 = vmatpush2.msra.mxu0 0.0
  %2219 = vmatprep.subr.mxu0 0.0
  %2220 = vmatpush2.msra.mxu0 0.0
  %2221 = vmatprep.subr.mxu0 0.0
  %2222 = vmatpush2.msra.mxu0 0.0
  %2223 = vmatprep.subr.mxu0 0.0
  %2224 = vmatpush2.msra.mxu0 0.0
  %2225 = vmatprep.subr.mxu0 0.0
  %2226 = vmatpush2.msra.mxu0 0.0
  %2227 = vmatprep.subr.mxu0 0.0
  %2228 = vmatpush2.msra.mxu0 0.0
  %2229 = vmatprep.subr.mxu0 0.0
  %2230 = vmatpush2.msra.mxu0 0.0
  %2231 = vmatprep.mubr.f32.mxu0 0.0
  %2232 = vmatmul.mubr.f32.gmra.mxu0 %v1787
  %v2233 = vpop.f32.mrf.mxu0
  %v2234 = vadd.f32 0.0, %v2233
  %v2235 = vpop.f32.mrf.mxu0
  %2236 = vdwg.mxu0
  %v2237 = vadd.f32 %v2093, %v2163
  %v2238 = vxor.u32 %v2237, 2147483648
  %v2239 = vmul.f32 %v2238, 1.442695
  %v2240 = vpow.pop %v2239
  %v2241 = vadd.f32 %v2240, 1.0
  %v2242 = vrcp.pop %v2241
  %v2243 = vmul.f32 1.0, %v2242
  %v2244 = vadd.f32 %v2094, %v2165
  %v2245 = vxor.u32 %v2244, 2147483648
  %v2246 = vmul.f32 %v2245, 1.442695
  %v2247 = vpow.pop %v2246
  %v2248 = vadd.f32 %v2247, 1.0
  %v2249 = vrcp.pop %v2248
  %v2250 = vmul.f32 1.0, %v2249
  %v2251 = vadd.f32 %v2234, %v181
  %v2252 = vmul.f32 %v2243, %v2251
  %v2253 = vadd.f32 %v2095, %v2252
  %v2254 = vtanh.pop %v2253
  %v2255 = vsub.f32 1.0, %v2250
  %v2256 = vmul.f32 %v2255, %v2254
  %v2257 = vmul.f32 %v2250, %v1787
  %v2258 = vadd.f32 %v2256, %v2257
  %2259 = vmatprep.subr.mxu0 %v126
  %2260 = vmatpush1.msra.mxu0 %v125
  %2261 = vmatprep.subr.mxu0 %v123
  %2262 = vmatpush1.msra.mxu0 %v122
  %2263 = vmatprep.subr.mxu0 %v120
  %2264 = vmatpush1.msra.mxu0 %v119
  %2265 = vmatprep.subr.mxu0 %v117
  %2266 = vmatpush1.msra.mxu0 %v116
  %2267 = vmatprep.subr.mxu0 %v114
  %2268 = vmatpush1.msra.mxu0 %v113
  %2269 = vmatprep.subr.mxu0 %v111
  %2270 = vmatpush1.msra.mxu0 %v110
  %2271 = vmatprep.subr.mxu0 %v108
  %2272 = vmatpush1.msra.mxu0 %v107
  %2273 = vmatprep.subr.mxu0 %v105
  %2274 = vmatpush1.msra.mxu0 %v104
  %2275 = vmatprep.subr.mxu0 %v102
  %2276 = vmatpush1.msra.mxu0 %v101
  %2277 = vmatprep.subr.mxu0 %v99
  %2278 = vmatpush1.msra.mxu0 %v98
  %2279 = vmatprep.subr.mxu0 %v96
  %2280 = vmatpush1.msra.mxu0 %v95
  %2281 = vmatprep.subr.mxu0 %v93
  %2282 = vmatpush1.msra.mxu0 %v92
  %2283 = vmatprep.subr.mxu0 %v90
  %2284 = vmatpush1.msra.mxu0 %v89
  %2285 = vmatprep.subr.mxu0 %v87
  %2286 = vmatpush1.msra.mxu0 %v86
  %2287 = vmatprep.subr.mxu0 %v84
  %2288 = vmatpush1.msra.mxu0 %v83
  %2289 = vmatprep.subr.mxu0 %v81
  %2290 = vmatpush1.msra.mxu0 %v80
  %2291 = vmatprep.subr.mxu0 0.0
  %2292 = vmatpush2.msra.mxu0 0.0
  %2293 = vmatprep.subr.mxu0 0.0
  %2294 = vmatpush2.msra.mxu0 0.0
  %2295 = vmatprep.subr.mxu0 0.0
  %2296 = vmatpush2.msra.mxu0 0.0
  %2297 = vmatprep.subr.mxu0 0.0
  %2298 = vmatpush2.msra.mxu0 0.0
  %2299 = vmatprep.subr.mxu0 0.0
  %2300 = vmatpush2.msra.mxu0 0.0
  %2301 = vmatprep.subr.mxu0 0.0
  %2302 = vmatpush2.msra.mxu0 0.0
  %2303 = vmatprep.subr.mxu0 0.0
  %2304 = vmatpush2.msra.mxu0 0.0
  %2305 = vmatprep.subr.mxu0 0.0
  %2306 = vmatpush2.msra.mxu0 0.0
  %2307 = vmatprep.subr.mxu0 0.0
  %2308 = vmatpush2.msra.mxu0 0.0
  %2309 = vmatprep.subr.mxu0 0.0
  %2310 = vmatpush2.msra.mxu0 0.0
  %2311 = vmatprep.subr.mxu0 0.0
  %2312 = vmatpush2.msra.mxu0 0.0
  %2313 = vmatprep.subr.mxu0 0.0
  %2314 = vmatpush2.msra.mxu0 0.0
  %2315 = vmatprep.subr.mxu0 0.0
  %2316 = vmatpush2.msra.mxu0 0.0
  %2317 = vmatprep.subr.mxu0 0.0
  %2318 = vmatpush2.msra.mxu0 0.0
  %2319 = vmatprep.subr.mxu0 0.0
  %2320 = vmatpush2.msra.mxu0 0.0
  %2321 = vmatprep.subr.mxu0 0.0
  %2322 = vmatpush2.msra.mxu0 0.0
  %2323 = vmatprep.mubr.f32.mxu0 0.0
  %2324 = vmatmul.mubr.f32.gmra.mxu0 %v2258
  %v2325 = vpop.f32.mrf.mxu0
  %v2326 = vadd.f32 %v195, %v2325
  %v2327 = vpop.f32.mrf.mxu0
  %v2328 = vadd.f32 %v199, %v2327
  %2329 = vdwg.mxu0
  %2330 = vmatprep.subr.mxu0 0.0
  %2331 = vmatpush1.msra.mxu0 %v127
  %2332 = vmatprep.subr.mxu0 0.0
  %2333 = vmatpush1.msra.mxu0 %v124
  %2334 = vmatprep.subr.mxu0 0.0
  %2335 = vmatpush1.msra.mxu0 %v121
  %2336 = vmatprep.subr.mxu0 0.0
  %2337 = vmatpush1.msra.mxu0 %v118
  %2338 = vmatprep.subr.mxu0 0.0
  %2339 = vmatpush1.msra.mxu0 %v115
  %2340 = vmatprep.subr.mxu0 0.0
  %2341 = vmatpush1.msra.mxu0 %v112
  %2342 = vmatprep.subr.mxu0 0.0
  %2343 = vmatpush1.msra.mxu0 %v109
  %2344 = vmatprep.subr.mxu0 0.0
  %2345 = vmatpush1.msra.mxu0 %v106
  %2346 = vmatprep.subr.mxu0 0.0
  %2347 = vmatpush1.msra.mxu0 %v103
  %2348 = vmatprep.subr.mxu0 0.0
  %2349 = vmatpush1.msra.mxu0 %v100
  %2350 = vmatprep.subr.mxu0 0.0
  %2351 = vmatpush1.msra.mxu0 %v97
  %2352 = vmatprep.subr.mxu0 0.0
  %2353 = vmatpush1.msra.mxu0 %v94
  %2354 = vmatprep.subr.mxu0 0.0
  %2355 = vmatpush1.msra.mxu0 %v91
  %2356 = vmatprep.subr.mxu0 0.0
  %2357 = vmatpush1.msra.mxu0 %v88
  %2358 = vmatprep.subr.mxu0 0.0
  %2359 = vmatpush1.msra.mxu0 %v85
  %2360 = vmatprep.subr.mxu0 0.0
  %2361 = vmatpush1.msra.mxu0 %v82
  %2362 = vmatprep.subr.mxu0 0.0
  %2363 = vmatpush2.msra.mxu0 0.0
  %2364 = vmatprep.subr.mxu0 0.0
  %2365 = vmatpush2.msra.mxu0 0.0
  %2366 = vmatprep.subr.mxu0 0.0
  %2367 = vmatpush2.msra.mxu0 0.0
  %2368 = vmatprep.subr.mxu0 0.0
  %2369 = vmatpush2.msra.mxu0 0.0
  %2370 = vmatprep.subr.mxu0 0.0
  %2371 = vmatpush2.msra.mxu0 0.0
  %2372 = vmatprep.subr.mxu0 0.0
  %2373 = vmatpush2.msra.mxu0 0.0
  %2374 = vmatprep.subr.mxu0 0.0
  %2375 = vmatpush2.msra.mxu0 0.0
  %2376 = vmatprep.subr.mxu0 0.0
  %2377 = vmatpush2.msra.mxu0 0.0
  %2378 = vmatprep.subr.mxu0 0.0
  %2379 = vmatpush2.msra.mxu0 0.0
  %2380 = vmatprep.subr.mxu0 0.0
  %2381 = vmatpush2.msra.mxu0 0.0
  %2382 = vmatprep.subr.mxu0 0.0
  %2383 = vmatpush2.msra.mxu0 0.0
  %2384 = vmatprep.subr.mxu0 0.0
  %2385 = vmatpush2.msra.mxu0 0.0
  %2386 = vmatprep.subr.mxu0 0.0
  %2387 = vmatpush2.msra.mxu0 0.0
  %2388 = vmatprep.subr.mxu0 0.0
  %2389 = vmatpush2.msra.mxu0 0.0
  %2390 = vmatprep.subr.mxu0 0.0
  %2391 = vmatpush2.msra.mxu0 0.0
  %2392 = vmatprep.subr.mxu0 0.0
  %2393 = vmatpush2.msra.mxu0 0.0
  %2394 = vmatprep.mubr.f32.mxu0 0.0
  %2395 = vmatmul.mubr.f32.gmra.mxu0 %v2258
  %v2396 = vpop.f32.mrf.mxu0
  %v2397 = vadd.f32 %v203, %v2396
  %v2398 = vpop.f32.mrf.mxu0
  %2399 = vdwg.mxu0
  %2400 = vmatprep.subr.mxu0 %v174
  %2401 = vmatpush1.msra.mxu0 %v173
  %2402 = vmatprep.subr.mxu0 %v171
  %2403 = vmatpush1.msra.mxu0 %v170
  %2404 = vmatprep.subr.mxu0 %v168
  %2405 = vmatpush1.msra.mxu0 %v167
  %2406 = vmatprep.subr.mxu0 %v165
  %2407 = vmatpush1.msra.mxu0 %v164
  %2408 = vmatprep.subr.mxu0 %v162
  %2409 = vmatpush1.msra.mxu0 %v161
  %2410 = vmatprep.subr.mxu0 %v159
  %2411 = vmatpush1.msra.mxu0 %v158
  %2412 = vmatprep.subr.mxu0 %v156
  %2413 = vmatpush1.msra.mxu0 %v155
  %2414 = vmatprep.subr.mxu0 %v153
  %2415 = vmatpush1.msra.mxu0 %v152
  %2416 = vmatprep.subr.mxu0 %v150
  %2417 = vmatpush1.msra.mxu0 %v149
  %2418 = vmatprep.subr.mxu0 %v147
  %2419 = vmatpush1.msra.mxu0 %v146
  %2420 = vmatprep.subr.mxu0 %v144
  %2421 = vmatpush1.msra.mxu0 %v143
  %2422 = vmatprep.subr.mxu0 %v141
  %2423 = vmatpush1.msra.mxu0 %v140
  %2424 = vmatprep.subr.mxu0 %v138
  %2425 = vmatpush1.msra.mxu0 %v137
  %2426 = vmatprep.subr.mxu0 %v135
  %2427 = vmatpush1.msra.mxu0 %v134
  %2428 = vmatprep.subr.mxu0 %v132
  %2429 = vmatpush1.msra.mxu0 %v131
  %2430 = vmatprep.subr.mxu0 %v129
  %2431 = vmatpush1.msra.mxu0 %v128
  %2432 = vmatprep.subr.mxu0 0.0
  %2433 = vmatpush2.msra.mxu0 0.0
  %2434 = vmatprep.subr.mxu0 0.0
  %2435 = vmatpush2.msra.mxu0 0.0
  %2436 = vmatprep.subr.mxu0 0.0
  %2437 = vmatpush2.msra.mxu0 0.0
  %2438 = vmatprep.subr.mxu0 0.0
  %2439 = vmatpush2.msra.mxu0 0.0
  %2440 = vmatprep.subr.mxu0 0.0
  %2441 = vmatpush2.msra.mxu0 0.0
  %2442 = vmatprep.subr.mxu0 0.0
  %2443 = vmatpush2.msra.mxu0 0.0
  %2444 = vmatprep.subr.mxu0 0.0
  %2445 = vmatpush2.msra.mxu0 0.0
  %2446 = vmatprep.subr.mxu0 0.0
  %2447 = vmatpush2.msra.mxu0 0.0
  %2448 = vmatprep.subr.mxu0 0.0
  %2449 = vmatpush2.msra.mxu0 0.0
  %2450 = vmatprep.subr.mxu0 0.0
  %2451 = vmatpush2.msra.mxu0 0.0
  %2452 = vmatprep.subr.mxu0 0.0
  %2453 = vmatpush2.msra.mxu0 0.0
  %2454 = vmatprep.subr.mxu0 0.0
  %2455 = vmatpush2.msra.mxu0 0.0
  %2456 = vmatprep.subr.mxu0 0.0
  %2457 = vmatpush2.msra.mxu0 0.0
  %2458 = vmatprep.subr.mxu0 0.0
  %2459 = vmatpush2.msra.mxu0 0.0
  %2460 = vmatprep.subr.mxu0 0.0
  %2461 = vmatpush2.msra.mxu0 0.0
  %2462 = vmatprep.subr.mxu0 0.0
  %2463 = vmatpush2.msra.mxu0 0.0
  %2464 = vmatprep.mubr.f32.mxu0 0.0
  %2465 = vmatmul.mubr.f32.gmra.mxu0 %v2091
  %v2466 = vpop.f32.mrf.mxu0
  %v2467 = vadd.f32 0.0, %v2466
  %v2468 = vpop.f32.mrf.mxu0
  %v2469 = vadd.f32 0.0, %v2468
  %2470 = vdwg.mxu0
  %2471 = vmatprep.subr.mxu0 0.0
  %2472 = vmatpush1.msra.mxu0 %v175
  %2473 = vmatprep.subr.mxu0 0.0
  %2474 = vmatpush1.msra.mxu0 %v172
  %2475 = vmatprep.subr.mxu0 0.0
  %2476 = vmatpush1.msra.mxu0 %v169
  %2477 = vmatprep.subr.mxu0 0.0
  %2478 = vmatpush1.msra.mxu0 %v166
  %2479 = vmatprep.subr.mxu0 0.0
  %2480 = vmatpush1.msra.mxu0 %v163
  %2481 = vmatprep.subr.mxu0 0.0
  %2482 = vmatpush1.msra.mxu0 %v160
  %2483 = vmatprep.subr.mxu0 0.0
  %2484 = vmatpush1.msra.mxu0 %v157
  %2485 = vmatprep.subr.mxu0 0.0
  %2486 = vmatpush1.msra.mxu0 %v154
  %2487 = vmatprep.subr.mxu0 0.0
  %2488 = vmatpush1.msra.mxu0 %v151
  %2489 = vmatprep.subr.mxu0 0.0
  %2490 = vmatpush1.msra.mxu0 %v148
  %2491 = vmatprep.subr.mxu0 0.0
  %2492 = vmatpush1.msra.mxu0 %v145
  %2493 = vmatprep.subr.mxu0 0.0
  %2494 = vmatpush1.msra.mxu0 %v142
  %2495 = vmatprep.subr.mxu0 0.0
  %2496 = vmatpush1.msra.mxu0 %v139
  %2497 = vmatprep.subr.mxu0 0.0
  %2498 = vmatpush1.msra.mxu0 %v136
  %2499 = vmatprep.subr.mxu0 0.0
  %2500 = vmatpush1.msra.mxu0 %v133
  %2501 = vmatprep.subr.mxu0 0.0
  %2502 = vmatpush1.msra.mxu0 %v130
  %2503 = vmatprep.subr.mxu0 0.0
  %2504 = vmatpush2.msra.mxu0 0.0
  %2505 = vmatprep.subr.mxu0 0.0
  %2506 = vmatpush2.msra.mxu0 0.0
  %2507 = vmatprep.subr.mxu0 0.0
  %2508 = vmatpush2.msra.mxu0 0.0
  %2509 = vmatprep.subr.mxu0 0.0
  %2510 = vmatpush2.msra.mxu0 0.0
  %2511 = vmatprep.subr.mxu0 0.0
  %2512 = vmatpush2.msra.mxu0 0.0
  %2513 = vmatprep.subr.mxu0 0.0
  %2514 = vmatpush2.msra.mxu0 0.0
  %2515 = vmatprep.subr.mxu0 0.0
  %2516 = vmatpush2.msra.mxu0 0.0
  %2517 = vmatprep.subr.mxu0 0.0
  %2518 = vmatpush2.msra.mxu0 0.0
  %2519 = vmatprep.subr.mxu0 0.0
  %2520 = vmatpush2.msra.mxu0 0.0
  %2521 = vmatprep.subr.mxu0 0.0
  %2522 = vmatpush2.msra.mxu0 0.0
  %2523 = vmatprep.subr.mxu0 0.0
  %2524 = vmatpush2.msra.mxu0 0.0
  %2525 = vmatprep.subr.mxu0 0.0
  %2526 = vmatpush2.msra.mxu0 0.0
  %2527 = vmatprep.subr.mxu0 0.0
  %2528 = vmatpush2.msra.mxu0 0.0
  %2529 = vmatprep.subr.mxu0 0.0
  %2530 = vmatpush2.msra.mxu0 0.0
  %2531 = vmatprep.subr.mxu0 0.0
  %2532 = vmatpush2.msra.mxu0 0.0
  %2533 = vmatprep.subr.mxu0 0.0
  %2534 = vmatpush2.msra.mxu0 0.0
  %2535 = vmatprep.mubr.f32.mxu0 0.0
  %2536 = vmatmul.mubr.f32.gmra.mxu0 %v2091
  %v2537 = vpop.f32.mrf.mxu0
  %v2538 = vadd.f32 0.0, %v2537
  %v2539 = vpop.f32.mrf.mxu0
  %2540 = vdwg.mxu0
  %v2541 = vadd.f32 %v2326, %v2467
  %v2542 = vxor.u32 %v2541, 2147483648
  %v2543 = vmul.f32 %v2542, 1.442695
  %v2544 = vpow.pop %v2543
  %v2545 = vadd.f32 %v2544, 1.0
  %v2546 = vrcp.pop %v2545
  %v2547 = vmul.f32 1.0, %v2546
  %v2548 = vadd.f32 %v2328, %v2469
  %v2549 = vxor.u32 %v2548, 2147483648
  %v2550 = vmul.f32 %v2549, 1.442695
  %v2551 = vpow.pop %v2550
  %v2552 = vadd.f32 %v2551, 1.0
  %v2553 = vrcp.pop %v2552
  %v2554 = vmul.f32 1.0, %v2553
  %v2555 = vadd.f32 %v2538, %v188
  %v2556 = vmul.f32 %v2547, %v2555
  %v2557 = vadd.f32 %v2397, %v2556
  %v2558 = vtanh.pop %v2557
  %v2559 = vsub.f32 1.0, %v2554
  %v2560 = vmul.f32 %v2559, %v2558
  %v2561 = vmul.f32 %v2554, %v2091
  %v2562 = vadd.f32 %v2560, %v2561
  %s2563 = scalar_lea.vmem %s0, 120
  %v2564 = vld [vmem:[%s2563] sm:$0xff]
  %v2565 = vld [vmem:[%s2563 + $0x8] sm:$0xff]
  %v2566 = vld [vmem:[%s2563 + $0x10] sm:$0xff]
  %2567 = vmatprep.subr.mxu0 %v78
  %2568 = vmatpush1.msra.mxu0 %v77
  %2569 = vmatprep.subr.mxu0 %v75
  %2570 = vmatpush1.msra.mxu0 %v74
  %2571 = vmatprep.subr.mxu0 %v72
  %2572 = vmatpush1.msra.mxu0 %v71
  %2573 = vmatprep.subr.mxu0 %v69
  %2574 = vmatpush1.msra.mxu0 %v68
  %2575 = vmatprep.subr.mxu0 %v66
  %2576 = vmatpush1.msra.mxu0 %v65
  %2577 = vmatprep.subr.mxu0 %v63
  %2578 = vmatpush1.msra.mxu0 %v62
  %2579 = vmatprep.subr.mxu0 %v60
  %2580 = vmatpush1.msra.mxu0 %v59
  %2581 = vmatprep.subr.mxu0 %v57
  %2582 = vmatpush1.msra.mxu0 %v56
  %2583 = vmatprep.subr.mxu0 %v54
  %2584 = vmatpush1.msra.mxu0 %v53
  %2585 = vmatprep.subr.mxu0 %v51
  %2586 = vmatpush1.msra.mxu0 %v50
  %2587 = vmatprep.subr.mxu0 %v48
  %2588 = vmatpush1.msra.mxu0 %v47
  %2589 = vmatprep.subr.mxu0 %v45
  %2590 = vmatpush1.msra.mxu0 %v44
  %2591 = vmatprep.subr.mxu0 %v42
  %2592 = vmatpush1.msra.mxu0 %v41
  %2593 = vmatprep.subr.mxu0 %v39
  %2594 = vmatpush1.msra.mxu0 %v38
  %2595 = vmatprep.subr.mxu0 %v36
  %2596 = vmatpush1.msra.mxu0 %v35
  %2597 = vmatprep.subr.mxu0 %v33
  %2598 = vmatpush1.msra.mxu0 %v32
  %2599 = vmatprep.subr.mxu0 0.0
  %2600 = vmatpush2.msra.mxu0 0.0
  %2601 = vmatprep.subr.mxu0 0.0
  %2602 = vmatpush2.msra.mxu0 0.0
  %2603 = vmatprep.subr.mxu0 0.0
  %2604 = vmatpush2.msra.mxu0 0.0
  %2605 = vmatprep.subr.mxu0 0.0
  %2606 = vmatpush2.msra.mxu0 0.0
  %2607 = vmatprep.subr.mxu0 0.0
  %2608 = vmatpush2.msra.mxu0 0.0
  %2609 = vmatprep.subr.mxu0 0.0
  %2610 = vmatpush2.msra.mxu0 0.0
  %2611 = vmatprep.subr.mxu0 0.0
  %2612 = vmatpush2.msra.mxu0 0.0
  %2613 = vmatprep.subr.mxu0 0.0
  %2614 = vmatpush2.msra.mxu0 0.0
  %2615 = vmatprep.subr.mxu0 0.0
  %2616 = vmatpush2.msra.mxu0 0.0
  %2617 = vmatprep.subr.mxu0 0.0
  %2618 = vmatpush2.msra.mxu0 0.0
  %2619 = vmatprep.subr.mxu0 0.0
  %2620 = vmatpush2.msra.mxu0 0.0
  %2621 = vmatprep.subr.mxu0 0.0
  %2622 = vmatpush2.msra.mxu0 0.0
  %2623 = vmatprep.subr.mxu0 0.0
  %2624 = vmatpush2.msra.mxu0 0.0
  %2625 = vmatprep.subr.mxu0 0.0
  %2626 = vmatpush2.msra.mxu0 0.0
  %2627 = vmatprep.subr.mxu0 0.0
  %2628 = vmatpush2.msra.mxu0 0.0
  %2629 = vmatprep.subr.mxu0 0.0
  %2630 = vmatpush2.msra.mxu0 0.0
  %2631 = vmatprep.mubr.f32.mxu0 0.0
  %2632 = vmatmul.mubr.f32.gmra.mxu0 %v2258
  %v2633 = vpop.f32.mrf.mxu0
  %v2634 = vadd.f32 0.0, %v2633
  %v2635 = vpop.f32.mrf.mxu0
  %v2636 = vadd.f32 0.0, %v2635
  %2637 = vdwg.mxu0
  %2638 = vmatprep.subr.mxu0 0.0
  %2639 = vmatpush1.msra.mxu0 %v79
  %2640 = vmatprep.subr.mxu0 0.0
  %2641 = vmatpush1.msra.mxu0 %v76
  %2642 = vmatprep.subr.mxu0 0.0
  %2643 = vmatpush1.msra.mxu0 %v73
  %2644 = vmatprep.subr.mxu0 0.0
  %2645 = vmatpush1.msra.mxu0 %v70
  %2646 = vmatprep.subr.mxu0 0.0
  %2647 = vmatpush1.msra.mxu0 %v67
  %2648 = vmatprep.subr.mxu0 0.0
  %2649 = vmatpush1.msra.mxu0 %v64
  %2650 = vmatprep.subr.mxu0 0.0
  %2651 = vmatpush1.msra.mxu0 %v61
  %2652 = vmatprep.subr.mxu0 0.0
  %2653 = vmatpush1.msra.mxu0 %v58
  %2654 = vmatprep.subr.mxu0 0.0
  %2655 = vmatpush1.msra.mxu0 %v55
  %2656 = vmatprep.subr.mxu0 0.0
  %2657 = vmatpush1.msra.mxu0 %v52
  %2658 = vmatprep.subr.mxu0 0.0
  %2659 = vmatpush1.msra.mxu0 %v49
  %2660 = vmatprep.subr.mxu0 0.0
  %2661 = vmatpush1.msra.mxu0 %v46
  %2662 = vmatprep.subr.mxu0 0.0
  %2663 = vmatpush1.msra.mxu0 %v43
  %2664 = vmatprep.subr.mxu0 0.0
  %2665 = vmatpush1.msra.mxu0 %v40
  %2666 = vmatprep.subr.mxu0 0.0
  %2667 = vmatpush1.msra.mxu0 %v37
  %2668 = vmatprep.subr.mxu0 0.0
  %2669 = vmatpush1.msra.mxu0 %v34
  %2670 = vmatprep.subr.mxu0 0.0
  %2671 = vmatpush2.msra.mxu0 0.0
  %2672 = vmatprep.subr.mxu0 0.0
  %2673 = vmatpush2.msra.mxu0 0.0
  %2674 = vmatprep.subr.mxu0 0.0
  %2675 = vmatpush2.msra.mxu0 0.0
  %2676 = vmatprep.subr.mxu0 0.0
  %2677 = vmatpush2.msra.mxu0 0.0
  %2678 = vmatprep.subr.mxu0 0.0
  %2679 = vmatpush2.msra.mxu0 0.0
  %2680 = vmatprep.subr.mxu0 0.0
  %2681 = vmatpush2.msra.mxu0 0.0
  %2682 = vmatprep.subr.mxu0 0.0
  %2683 = vmatpush2.msra.mxu0 0.0
  %2684 = vmatprep.subr.mxu0 0.0
  %2685 = vmatpush2.msra.mxu0 0.0
  %2686 = vmatprep.subr.mxu0 0.0
  %2687 = vmatpush2.msra.mxu0 0.0
  %2688 = vmatprep.subr.mxu0 0.0
  %2689 = vmatpush2.msra.mxu0 0.0
  %2690 = vmatprep.subr.mxu0 0.0
  %2691 = vmatpush2.msra.mxu0 0.0
  %2692 = vmatprep.subr.mxu0 0.0
  %2693 = vmatpush2.msra.mxu0 0.0
  %2694 = vmatprep.subr.mxu0 0.0
  %2695 = vmatpush2.msra.mxu0 0.0
  %2696 = vmatprep.subr.mxu0 0.0
  %2697 = vmatpush2.msra.mxu0 0.0
  %2698 = vmatprep.subr.mxu0 0.0
  %2699 = vmatpush2.msra.mxu0 0.0
  %2700 = vmatprep.subr.mxu0 0.0
  %2701 = vmatpush2.msra.mxu0 0.0
  %2702 = vmatprep.mubr.f32.mxu0 0.0
  %2703 = vmatmul.mubr.f32.gmra.mxu0 %v2258
  %v2704 = vpop.f32.mrf.mxu0
  %v2705 = vadd.f32 0.0, %v2704
  %v2706 = vpop.f32.mrf.mxu0
  %2707 = vdwg.mxu0
  %v2708 = vadd.f32 %v2564, %v2634
  %v2709 = vxor.u32 %v2708, 2147483648
  %v2710 = vmul.f32 %v2709, 1.442695
  %v2711 = vpow.pop %v2710
  %v2712 = vadd.f32 %v2711, 1.0
  %v2713 = vrcp.pop %v2712
  %v2714 = vmul.f32 1.0, %v2713
  %v2715 = vadd.f32 %v2565, %v2636
  %v2716 = vxor.u32 %v2715, 2147483648
  %v2717 = vmul.f32 %v2716, 1.442695
  %v2718 = vpow.pop %v2717
  %v2719 = vadd.f32 %v2718, 1.0
  %v2720 = vrcp.pop %v2719
  %v2721 = vmul.f32 1.0, %v2720
  %v2722 = vadd.f32 %v2705, %v181
  %v2723 = vmul.f32 %v2714, %v2722
  %v2724 = vadd.f32 %v2566, %v2723
  %v2725 = vtanh.pop %v2724
  %v2726 = vsub.f32 1.0, %v2721
  %v2727 = vmul.f32 %v2726, %v2725
  %v2728 = vmul.f32 %v2721, %v2258
  %v2729 = vadd.f32 %v2727, %v2728
  %2730 = vmatprep.subr.mxu0 %v126
  %2731 = vmatpush1.msra.mxu0 %v125
  %2732 = vmatprep.subr.mxu0 %v123
  %2733 = vmatpush1.msra.mxu0 %v122
  %2734 = vmatprep.subr.mxu0 %v120
  %2735 = vmatpush1.msra.mxu0 %v119
  %2736 = vmatprep.subr.mxu0 %v117
  %2737 = vmatpush1.msra.mxu0 %v116
  %2738 = vmatprep.subr.mxu0 %v114
  %2739 = vmatpush1.msra.mxu0 %v113
  %2740 = vmatprep.subr.mxu0 %v111
  %2741 = vmatpush1.msra.mxu0 %v110
  %2742 = vmatprep.subr.mxu0 %v108
  %2743 = vmatpush1.msra.mxu0 %v107
  %2744 = vmatprep.subr.mxu0 %v105
  %2745 = vmatpush1.msra.mxu0 %v104
  %2746 = vmatprep.subr.mxu0 %v102
  %2747 = vmatpush1.msra.mxu0 %v101
  %2748 = vmatprep.subr.mxu0 %v99
  %2749 = vmatpush1.msra.mxu0 %v98
  %2750 = vmatprep.subr.mxu0 %v96
  %2751 = vmatpush1.msra.mxu0 %v95
  %2752 = vmatprep.subr.mxu0 %v93
  %2753 = vmatpush1.msra.mxu0 %v92
  %2754 = vmatprep.subr.mxu0 %v90
  %2755 = vmatpush1.msra.mxu0 %v89
  %2756 = vmatprep.subr.mxu0 %v87
  %2757 = vmatpush1.msra.mxu0 %v86
  %2758 = vmatprep.subr.mxu0 %v84
  %2759 = vmatpush1.msra.mxu0 %v83
  %2760 = vmatprep.subr.mxu0 %v81
  %2761 = vmatpush1.msra.mxu0 %v80
  %2762 = vmatprep.subr.mxu0 0.0
  %2763 = vmatpush2.msra.mxu0 0.0
  %2764 = vmatprep.subr.mxu0 0.0
  %2765 = vmatpush2.msra.mxu0 0.0
  %2766 = vmatprep.subr.mxu0 0.0
  %2767 = vmatpush2.msra.mxu0 0.0
  %2768 = vmatprep.subr.mxu0 0.0
  %2769 = vmatpush2.msra.mxu0 0.0
  %2770 = vmatprep.subr.mxu0 0.0
  %2771 = vmatpush2.msra.mxu0 0.0
  %2772 = vmatprep.subr.mxu0 0.0
  %2773 = vmatpush2.msra.mxu0 0.0
  %2774 = vmatprep.subr.mxu0 0.0
  %2775 = vmatpush2.msra.mxu0 0.0
  %2776 = vmatprep.subr.mxu0 0.0
  %2777 = vmatpush2.msra.mxu0 0.0
  %2778 = vmatprep.subr.mxu0 0.0
  %2779 = vmatpush2.msra.mxu0 0.0
  %2780 = vmatprep.subr.mxu0 0.0
  %2781 = vmatpush2.msra.mxu0 0.0
  %2782 = vmatprep.subr.mxu0 0.0
  %2783 = vmatpush2.msra.mxu0 0.0
  %2784 = vmatprep.subr.mxu0 0.0
  %2785 = vmatpush2.msra.mxu0 0.0
  %2786 = vmatprep.subr.mxu0 0.0
  %2787 = vmatpush2.msra.mxu0 0.0
  %2788 = vmatprep.subr.mxu0 0.0
  %2789 = vmatpush2.msra.mxu0 0.0
  %2790 = vmatprep.subr.mxu0 0.0
  %2791 = vmatpush2.msra.mxu0 0.0
  %2792 = vmatprep.subr.mxu0 0.0
  %2793 = vmatpush2.msra.mxu0 0.0
  %2794 = vmatprep.mubr.f32.mxu0 0.0
  %2795 = vmatmul.mubr.f32.gmra.mxu0 %v2729
  %v2796 = vpop.f32.mrf.mxu0
  %v2797 = vadd.f32 %v195, %v2796
  %v2798 = vpop.f32.mrf.mxu0
  %v2799 = vadd.f32 %v199, %v2798
  %2800 = vdwg.mxu0
  %2801 = vmatprep.subr.mxu0 0.0
  %2802 = vmatpush1.msra.mxu0 %v127
  %2803 = vmatprep.subr.mxu0 0.0
  %2804 = vmatpush1.msra.mxu0 %v124
  %2805 = vmatprep.subr.mxu0 0.0
  %2806 = vmatpush1.msra.mxu0 %v121
  %2807 = vmatprep.subr.mxu0 0.0
  %2808 = vmatpush1.msra.mxu0 %v118
  %2809 = vmatprep.subr.mxu0 0.0
  %2810 = vmatpush1.msra.mxu0 %v115
  %2811 = vmatprep.subr.mxu0 0.0
  %2812 = vmatpush1.msra.mxu0 %v112
  %2813 = vmatprep.subr.mxu0 0.0
  %2814 = vmatpush1.msra.mxu0 %v109
  %2815 = vmatprep.subr.mxu0 0.0
  %2816 = vmatpush1.msra.mxu0 %v106
  %2817 = vmatprep.subr.mxu0 0.0
  %2818 = vmatpush1.msra.mxu0 %v103
  %2819 = vmatprep.subr.mxu0 0.0
  %2820 = vmatpush1.msra.mxu0 %v100
  %2821 = vmatprep.subr.mxu0 0.0
  %2822 = vmatpush1.msra.mxu0 %v97
  %2823 = vmatprep.subr.mxu0 0.0
  %2824 = vmatpush1.msra.mxu0 %v94
  %2825 = vmatprep.subr.mxu0 0.0
  %2826 = vmatpush1.msra.mxu0 %v91
  %2827 = vmatprep.subr.mxu0 0.0
  %2828 = vmatpush1.msra.mxu0 %v88
  %2829 = vmatprep.subr.mxu0 0.0
  %2830 = vmatpush1.msra.mxu0 %v85
  %2831 = vmatprep.subr.mxu0 0.0
  %2832 = vmatpush1.msra.mxu0 %v82
  %2833 = vmatprep.subr.mxu0 0.0
  %2834 = vmatpush2.msra.mxu0 0.0
  %2835 = vmatprep.subr.mxu0 0.0
  %2836 = vmatpush2.msra.mxu0 0.0
  %2837 = vmatprep.subr.mxu0 0.0
  %2838 = vmatpush2.msra.mxu0 0.0
  %2839 = vmatprep.subr.mxu0 0.0
  %2840 = vmatpush2.msra.mxu0 0.0
  %2841 = vmatprep.subr.mxu0 0.0
  %2842 = vmatpush2.msra.mxu0 0.0
  %2843 = vmatprep.subr.mxu0 0.0
  %2844 = vmatpush2.msra.mxu0 0.0
  %2845 = vmatprep.subr.mxu0 0.0
  %2846 = vmatpush2.msra.mxu0 0.0
  %2847 = vmatprep.subr.mxu0 0.0
  %2848 = vmatpush2.msra.mxu0 0.0
  %2849 = vmatprep.subr.mxu0 0.0
  %2850 = vmatpush2.msra.mxu0 0.0
  %2851 = vmatprep.subr.mxu0 0.0
  %2852 = vmatpush2.msra.mxu0 0.0
  %2853 = vmatprep.subr.mxu0 0.0
  %2854 = vmatpush2.msra.mxu0 0.0
  %2855 = vmatprep.subr.mxu0 0.0
  %2856 = vmatpush2.msra.mxu0 0.0
  %2857 = vmatprep.subr.mxu0 0.0
  %2858 = vmatpush2.msra.mxu0 0.0
  %2859 = vmatprep.subr.mxu0 0.0
  %2860 = vmatpush2.msra.mxu0 0.0
  %2861 = vmatprep.subr.mxu0 0.0
  %2862 = vmatpush2.msra.mxu0 0.0
  %2863 = vmatprep.subr.mxu0 0.0
  %2864 = vmatpush2.msra.mxu0 0.0
  %2865 = vmatprep.mubr.f32.mxu0 0.0
  %2866 = vmatmul.mubr.f32.gmra.mxu0 %v2729
  %v2867 = vpop.f32.mrf.mxu0
  %v2868 = vadd.f32 %v203, %v2867
  %v2869 = vpop.f32.mrf.mxu0
  %2870 = vdwg.mxu0
  %2871 = vmatprep.subr.mxu0 %v174
  %2872 = vmatpush1.msra.mxu0 %v173
  %2873 = vmatprep.subr.mxu0 %v171
  %2874 = vmatpush1.msra.mxu0 %v170
  %2875 = vmatprep.subr.mxu0 %v168
  %2876 = vmatpush1.msra.mxu0 %v167
  %2877 = vmatprep.subr.mxu0 %v165
  %2878 = vmatpush1.msra.mxu0 %v164
  %2879 = vmatprep.subr.mxu0 %v162
  %2880 = vmatpush1.msra.mxu0 %v161
  %2881 = vmatprep.subr.mxu0 %v159
  %2882 = vmatpush1.msra.mxu0 %v158
  %2883 = vmatprep.subr.mxu0 %v156
  %2884 = vmatpush1.msra.mxu0 %v155
  %2885 = vmatprep.subr.mxu0 %v153
  %2886 = vmatpush1.msra.mxu0 %v152
  %2887 = vmatprep.subr.mxu0 %v150
  %2888 = vmatpush1.msra.mxu0 %v149
  %2889 = vmatprep.subr.mxu0 %v147
  %2890 = vmatpush1.msra.mxu0 %v146
  %2891 = vmatprep.subr.mxu0 %v144
  %2892 = vmatpush1.msra.mxu0 %v143
  %2893 = vmatprep.subr.mxu0 %v141
  %2894 = vmatpush1.msra.mxu0 %v140
  %2895 = vmatprep.subr.mxu0 %v138
  %2896 = vmatpush1.msra.mxu0 %v137
  %2897 = vmatprep.subr.mxu0 %v135
  %2898 = vmatpush1.msra.mxu0 %v134
  %2899 = vmatprep.subr.mxu0 %v132
  %2900 = vmatpush1.msra.mxu0 %v131
  %2901 = vmatprep.subr.mxu0 %v129
  %2902 = vmatpush1.msra.mxu0 %v128
  %2903 = vmatprep.subr.mxu0 0.0
  %2904 = vmatpush2.msra.mxu0 0.0
  %2905 = vmatprep.subr.mxu0 0.0
  %2906 = vmatpush2.msra.mxu0 0.0
  %2907 = vmatprep.subr.mxu0 0.0
  %2908 = vmatpush2.msra.mxu0 0.0
  %2909 = vmatprep.subr.mxu0 0.0
  %2910 = vmatpush2.msra.mxu0 0.0
  %2911 = vmatprep.subr.mxu0 0.0
  %2912 = vmatpush2.msra.mxu0 0.0
  %2913 = vmatprep.subr.mxu0 0.0
  %2914 = vmatpush2.msra.mxu0 0.0
  %2915 = vmatprep.subr.mxu0 0.0
  %2916 = vmatpush2.msra.mxu0 0.0
  %2917 = vmatprep.subr.mxu0 0.0
  %2918 = vmatpush2.msra.mxu0 0.0
  %2919 = vmatprep.subr.mxu0 0.0
  %2920 = vmatpush2.msra.mxu0 0.0
  %2921 = vmatprep.subr.mxu0 0.0
  %2922 = vmatpush2.msra.mxu0 0.0
  %2923 = vmatprep.subr.mxu0 0.0
  %2924 = vmatpush2.msra.mxu0 0.0
  %2925 = vmatprep.subr.mxu0 0.0
  %2926 = vmatpush2.msra.mxu0 0.0
  %2927 = vmatprep.subr.mxu0 0.0
  %2928 = vmatpush2.msra.mxu0 0.0
  %2929 = vmatprep.subr.mxu0 0.0
  %2930 = vmatpush2.msra.mxu0 0.0
  %2931 = vmatprep.subr.mxu0 0.0
  %2932 = vmatpush2.msra.mxu0 0.0
  %2933 = vmatprep.subr.mxu0 0.0
  %2934 = vmatpush2.msra.mxu0 0.0
  %2935 = vmatprep.mubr.f32.mxu0 0.0
  %2936 = vmatmul.mubr.f32.gmra.mxu0 %v2562
  %v2937 = vpop.f32.mrf.mxu0
  %v2938 = vadd.f32 0.0, %v2937
  %v2939 = vpop.f32.mrf.mxu0
  %v2940 = vadd.f32 0.0, %v2939
  %2941 = vdwg.mxu0
  %2942 = vmatprep.subr.mxu0 0.0
  %2943 = vmatpush1.msra.mxu0 %v175
  %2944 = vmatprep.subr.mxu0 0.0
  %2945 = vmatpush1.msra.mxu0 %v172
  %2946 = vmatprep.subr.mxu0 0.0
  %2947 = vmatpush1.msra.mxu0 %v169
  %2948 = vmatprep.subr.mxu0 0.0
  %2949 = vmatpush1.msra.mxu0 %v166
  %2950 = vmatprep.subr.mxu0 0.0
  %2951 = vmatpush1.msra.mxu0 %v163
  %2952 = vmatprep.subr.mxu0 0.0
  %2953 = vmatpush1.msra.mxu0 %v160
  %2954 = vmatprep.subr.mxu0 0.0
  %2955 = vmatpush1.msra.mxu0 %v157
  %2956 = vmatprep.subr.mxu0 0.0
  %2957 = vmatpush1.msra.mxu0 %v154
  %2958 = vmatprep.subr.mxu0 0.0
  %2959 = vmatpush1.msra.mxu0 %v151
  %2960 = vmatprep.subr.mxu0 0.0
  %2961 = vmatpush1.msra.mxu0 %v148
  %2962 = vmatprep.subr.mxu0 0.0
  %2963 = vmatpush1.msra.mxu0 %v145
  %2964 = vmatprep.subr.mxu0 0.0
  %2965 = vmatpush1.msra.mxu0 %v142
  %2966 = vmatprep.subr.mxu0 0.0
  %2967 = vmatpush1.msra.mxu0 %v139
  %2968 = vmatprep.subr.mxu0 0.0
  %2969 = vmatpush1.msra.mxu0 %v136
  %2970 = vmatprep.subr.mxu0 0.0
  %2971 = vmatpush1.msra.mxu0 %v133
  %2972 = vmatprep.subr.mxu0 0.0
  %2973 = vmatpush1.msra.mxu0 %v130
  %2974 = vmatprep.subr.mxu0 0.0
  %2975 = vmatpush2.msra.mxu0 0.0
  %2976 = vmatprep.subr.mxu0 0.0
  %2977 = vmatpush2.msra.mxu0 0.0
  %2978 = vmatprep.subr.mxu0 0.0
  %2979 = vmatpush2.msra.mxu0 0.0
  %2980 = vmatprep.subr.mxu0 0.0
  %2981 = vmatpush2.msra.mxu0 0.0
  %2982 = vmatprep.subr.mxu0 0.0
  %2983 = vmatpush2.msra.mxu0 0.0
  %2984 = vmatprep.subr.mxu0 0.0
  %2985 = vmatpush2.msra.mxu0 0.0
  %2986 = vmatprep.subr.mxu0 0.0
  %2987 = vmatpush2.msra.mxu0 0.0
  %2988 = vmatprep.subr.mxu0 0.0
  %2989 = vmatpush2.msra.mxu0 0.0
  %2990 = vmatprep.subr.mxu0 0.0
  %2991 = vmatpush2.msra.mxu0 0.0
  %2992 = vmatprep.subr.mxu0 0.0
  %2993 = vmatpush2.msra.mxu0 0.0
  %2994 = vmatprep.subr.mxu0 0.0
  %2995 = vmatpush2.msra.mxu0 0.0
  %2996 = vmatprep.subr.mxu0 0.0
  %2997 = vmatpush2.msra.mxu0 0.0
  %2998 = vmatprep.subr.mxu0 0.0
  %2999 = vmatpush2.msra.mxu0 0.0
  %3000 = vmatprep.subr.mxu0 0.0
  %3001 = vmatpush2.msra.mxu0 0.0
  %3002 = vmatprep.subr.mxu0 0.0
  %3003 = vmatpush2.msra.mxu0 0.0
  %3004 = vmatprep.subr.mxu0 0.0
  %3005 = vmatpush2.msra.mxu0 0.0
  %3006 = vmatprep.mubr.f32.mxu0 0.0
  %3007 = vmatmul.mubr.f32.gmra.mxu0 %v2562
  %v3008 = vpop.f32.mrf.mxu0
  %v3009 = vadd.f32 0.0, %v3008
  %v3010 = vpop.f32.mrf.mxu0
  %3011 = vdwg.mxu0
  %v3012 = vadd.f32 %v2797, %v2938
  %v3013 = vxor.u32 %v3012, 2147483648
  %v3014 = vmul.f32 %v3013, 1.442695
  %v3015 = vpow.pop %v3014
  %v3016 = vadd.f32 %v3015, 1.0
  %v3017 = vrcp.pop %v3016
  %v3018 = vmul.f32 1.0, %v3017
  %v3019 = vadd.f32 %v2799, %v2940
  %v3020 = vxor.u32 %v3019, 2147483648
  %v3021 = vmul.f32 %v3020, 1.442695
  %v3022 = vpow.pop %v3021
  %v3023 = vadd.f32 %v3022, 1.0
  %v3024 = vrcp.pop %v3023
  %v3025 = vmul.f32 1.0, %v3024
  %v3026 = vadd.f32 %v3009, %v188
  %v3027 = vmul.f32 %v3018, %v3026
  %v3028 = vadd.f32 %v2868, %v3027
  %v3029 = vtanh.pop %v3028
  %v3030 = vsub.f32 1.0, %v3025
  %v3031 = vmul.f32 %v3030, %v3029
  %v3032 = vmul.f32 %v3025, %v2562
  %v3033 = vadd.f32 %v3031, %v3032
  %s3034 = scalar_lea.vmem %s0, 144
  %v3035 = vld [vmem:[%s3034] sm:$0xff]
  %v3036 = vld [vmem:[%s3034 + $0x8] sm:$0xff]
  %v3037 = vld [vmem:[%s3034 + $0x10] sm:$0xff]
  %3038 = vmatprep.subr.mxu0 %v78
  %3039 = vmatpush1.msra.mxu0 %v77
  %3040 = vmatprep.subr.mxu0 %v75
  %3041 = vmatpush1.msra.mxu0 %v74
  %3042 = vmatprep.subr.mxu0 %v72
  %3043 = vmatpush1.msra.mxu0 %v71
  %3044 = vmatprep.subr.mxu0 %v69
  %3045 = vmatpush1.msra.mxu0 %v68
  %3046 = vmatprep.subr.mxu0 %v66
  %3047 = vmatpush1.msra.mxu0 %v65
  %3048 = vmatprep.subr.mxu0 %v63
  %3049 = vmatpush1.msra.mxu0 %v62
  %3050 = vmatprep.subr.mxu0 %v60
  %3051 = vmatpush1.msra.mxu0 %v59
  %3052 = vmatprep.subr.mxu0 %v57
  %3053 = vmatpush1.msra.mxu0 %v56
  %3054 = vmatprep.subr.mxu0 %v54
  %3055 = vmatpush1.msra.mxu0 %v53
  %3056 = vmatprep.subr.mxu0 %v51
  %3057 = vmatpush1.msra.mxu0 %v50
  %3058 = vmatprep.subr.mxu0 %v48
  %3059 = vmatpush1.msra.mxu0 %v47
  %3060 = vmatprep.subr.mxu0 %v45
  %3061 = vmatpush1.msra.mxu0 %v44
  %3062 = vmatprep.subr.mxu0 %v42
  %3063 = vmatpush1.msra.mxu0 %v41
  %3064 = vmatprep.subr.mxu0 %v39
  %3065 = vmatpush1.msra.mxu0 %v38
  %3066 = vmatprep.subr.mxu0 %v36
  %3067 = vmatpush1.msra.mxu0 %v35
  %3068 = vmatprep.subr.mxu0 %v33
  %3069 = vmatpush1.msra.mxu0 %v32
  %3070 = vmatprep.subr.mxu0 0.0
  %3071 = vmatpush2.msra.mxu0 0.0
  %3072 = vmatprep.subr.mxu0 0.0
  %3073 = vmatpush2.msra.mxu0 0.0
  %3074 = vmatprep.subr.mxu0 0.0
  %3075 = vmatpush2.msra.mxu0 0.0
  %3076 = vmatprep.subr.mxu0 0.0
  %3077 = vmatpush2.msra.mxu0 0.0
  %3078 = vmatprep.subr.mxu0 0.0
  %3079 = vmatpush2.msra.mxu0 0.0
  %3080 = vmatprep.subr.mxu0 0.0
  %3081 = vmatpush2.msra.mxu0 0.0
  %3082 = vmatprep.subr.mxu0 0.0
  %3083 = vmatpush2.msra.mxu0 0.0
  %3084 = vmatprep.subr.mxu0 0.0
  %3085 = vmatpush2.msra.mxu0 0.0
  %3086 = vmatprep.subr.mxu0 0.0
  %3087 = vmatpush2.msra.mxu0 0.0
  %3088 = vmatprep.subr.mxu0 0.0
  %3089 = vmatpush2.msra.mxu0 0.0
  %3090 = vmatprep.subr.mxu0 0.0
  %3091 = vmatpush2.msra.mxu0 0.0
  %3092 = vmatprep.subr.mxu0 0.0
  %3093 = vmatpush2.msra.mxu0 0.0
  %3094 = vmatprep.subr.mxu0 0.0
  %3095 = vmatpush2.msra.mxu0 0.0
  %3096 = vmatprep.subr.mxu0 0.0
  %3097 = vmatpush2.msra.mxu0 0.0
  %3098 = vmatprep.subr.mxu0 0.0
  %3099 = vmatpush2.msra.mxu0 0.0
  %3100 = vmatprep.subr.mxu0 0.0
  %3101 = vmatpush2.msra.mxu0 0.0
  %3102 = vmatprep.mubr.f32.mxu0 0.0
  %3103 = vmatmul.mubr.f32.gmra.mxu0 %v2729
  %v3104 = vpop.f32.mrf.mxu0
  %v3105 = vadd.f32 0.0, %v3104
  %v3106 = vpop.f32.mrf.mxu0
  %v3107 = vadd.f32 0.0, %v3106
  %3108 = vdwg.mxu0
  %3109 = vmatprep.subr.mxu0 0.0
  %3110 = vmatpush1.msra.mxu0 %v79
  %3111 = vmatprep.subr.mxu0 0.0
  %3112 = vmatpush1.msra.mxu0 %v76
  %3113 = vmatprep.subr.mxu0 0.0
  %3114 = vmatpush1.msra.mxu0 %v73
  %3115 = vmatprep.subr.mxu0 0.0
  %3116 = vmatpush1.msra.mxu0 %v70
  %3117 = vmatprep.subr.mxu0 0.0
  %3118 = vmatpush1.msra.mxu0 %v67
  %3119 = vmatprep.subr.mxu0 0.0
  %3120 = vmatpush1.msra.mxu0 %v64
  %3121 = vmatprep.subr.mxu0 0.0
  %3122 = vmatpush1.msra.mxu0 %v61
  %3123 = vmatprep.subr.mxu0 0.0
  %3124 = vmatpush1.msra.mxu0 %v58
  %3125 = vmatprep.subr.mxu0 0.0
  %3126 = vmatpush1.msra.mxu0 %v55
  %3127 = vmatprep.subr.mxu0 0.0
  %3128 = vmatpush1.msra.mxu0 %v52
  %3129 = vmatprep.subr.mxu0 0.0
  %3130 = vmatpush1.msra.mxu0 %v49
  %3131 = vmatprep.subr.mxu0 0.0
  %3132 = vmatpush1.msra.mxu0 %v46
  %3133 = vmatprep.subr.mxu0 0.0
  %3134 = vmatpush1.msra.mxu0 %v43
  %3135 = vmatprep.subr.mxu0 0.0
  %3136 = vmatpush1.msra.mxu0 %v40
  %3137 = vmatprep.subr.mxu0 0.0
  %3138 = vmatpush1.msra.mxu0 %v37
  %3139 = vmatprep.subr.mxu0 0.0
  %3140 = vmatpush1.msra.mxu0 %v34
  %3141 = vmatprep.subr.mxu0 0.0
  %3142 = vmatpush2.msra.mxu0 0.0
  %3143 = vmatprep.subr.mxu0 0.0
  %3144 = vmatpush2.msra.mxu0 0.0
  %3145 = vmatprep.subr.mxu0 0.0
  %3146 = vmatpush2.msra.mxu0 0.0
  %3147 = vmatprep.subr.mxu0 0.0
  %3148 = vmatpush2.msra.mxu0 0.0
  %3149 = vmatprep.subr.mxu0 0.0
  %3150 = vmatpush2.msra.mxu0 0.0
  %3151 = vmatprep.subr.mxu0 0.0
  %3152 = vmatpush2.msra.mxu0 0.0
  %3153 = vmatprep.subr.mxu0 0.0
  %3154 = vmatpush2.msra.mxu0 0.0
  %3155 = vmatprep.subr.mxu0 0.0
  %3156 = vmatpush2.msra.mxu0 0.0
  %3157 = vmatprep.subr.mxu0 0.0
  %3158 = vmatpush2.msra.mxu0 0.0
  %3159 = vmatprep.subr.mxu0 0.0
  %3160 = vmatpush2.msra.mxu0 0.0
  %3161 = vmatprep.subr.mxu0 0.0
  %3162 = vmatpush2.msra.mxu0 0.0
  %3163 = vmatprep.subr.mxu0 0.0
  %3164 = vmatpush2.msra.mxu0 0.0
  %3165 = vmatprep.subr.mxu0 0.0
  %3166 = vmatpush2.msra.mxu0 0.0
  %3167 = vmatprep.subr.mxu0 0.0
  %3168 = vmatpush2.msra.mxu0 0.0
  %3169 = vmatprep.subr.mxu0 0.0
  %3170 = vmatpush2.msra.mxu0 0.0
  %3171 = vmatprep.subr.mxu0 0.0
  %3172 = vmatpush2.msra.mxu0 0.0
  %3173 = vmatprep.mubr.f32.mxu0 0.0
  %3174 = vmatmul.mubr.f32.gmra.mxu0 %v2729
  %v3175 = vpop.f32.mrf.mxu0
  %v3176 = vadd.f32 0.0, %v3175
  %v3177 = vpop.f32.mrf.mxu0
  %3178 = vdwg.mxu0
  %v3179 = vadd.f32 %v3035, %v3105
  %v3180 = vxor.u32 %v3179, 2147483648
  %v3181 = vmul.f32 %v3180, 1.442695
  %v3182 = vpow.pop %v3181
  %v3183 = vadd.f32 %v3182, 1.0
  %v3184 = vrcp.pop %v3183
  %v3185 = vmul.f32 1.0, %v3184
  %v3186 = vadd.f32 %v3036, %v3107
  %v3187 = vxor.u32 %v3186, 2147483648
  %v3188 = vmul.f32 %v3187, 1.442695
  %v3189 = vpow.pop %v3188
  %v3190 = vadd.f32 %v3189, 1.0
  %v3191 = vrcp.pop %v3190
  %v3192 = vmul.f32 1.0, %v3191
  %v3193 = vadd.f32 %v3176, %v181
  %v3194 = vmul.f32 %v3185, %v3193
  %v3195 = vadd.f32 %v3037, %v3194
  %v3196 = vtanh.pop %v3195
  %v3197 = vsub.f32 1.0, %v3192
  %v3198 = vmul.f32 %v3197, %v3196
  %v3199 = vmul.f32 %v3192, %v2729
  %v3200 = vadd.f32 %v3198, %v3199
  %3201 = vmatprep.subr.mxu0 %v126
  %3202 = vmatpush1.msra.mxu0 %v125
  %3203 = vmatprep.subr.mxu0 %v123
  %3204 = vmatpush1.msra.mxu0 %v122
  %3205 = vmatprep.subr.mxu0 %v120
  %3206 = vmatpush1.msra.mxu0 %v119
  %3207 = vmatprep.subr.mxu0 %v117
  %3208 = vmatpush1.msra.mxu0 %v116
  %3209 = vmatprep.subr.mxu0 %v114
  %3210 = vmatpush1.msra.mxu0 %v113
  %3211 = vmatprep.subr.mxu0 %v111
  %3212 = vmatpush1.msra.mxu0 %v110
  %3213 = vmatprep.subr.mxu0 %v108
  %3214 = vmatpush1.msra.mxu0 %v107
  %3215 = vmatprep.subr.mxu0 %v105
  %3216 = vmatpush1.msra.mxu0 %v104
  %3217 = vmatprep.subr.mxu0 %v102
  %3218 = vmatpush1.msra.mxu0 %v101
  %3219 = vmatprep.subr.mxu0 %v99
  %3220 = vmatpush1.msra.mxu0 %v98
  %3221 = vmatprep.subr.mxu0 %v96
  %3222 = vmatpush1.msra.mxu0 %v95
  %3223 = vmatprep.subr.mxu0 %v93
  %3224 = vmatpush1.msra.mxu0 %v92
  %3225 = vmatprep.subr.mxu0 %v90
  %3226 = vmatpush1.msra.mxu0 %v89
  %3227 = vmatprep.subr.mxu0 %v87
  %3228 = vmatpush1.msra.mxu0 %v86
  %3229 = vmatprep.subr.mxu0 %v84
  %3230 = vmatpush1.msra.mxu0 %v83
  %3231 = vmatprep.subr.mxu0 %v81
  %3232 = vmatpush1.msra.mxu0 %v80
  %3233 = vmatprep.subr.mxu0 0.0
  %3234 = vmatpush2.msra.mxu0 0.0
  %3235 = vmatprep.subr.mxu0 0.0
  %3236 = vmatpush2.msra.mxu0 0.0
  %3237 = vmatprep.subr.mxu0 0.0
  %3238 = vmatpush2.msra.mxu0 0.0
  %3239 = vmatprep.subr.mxu0 0.0
  %3240 = vmatpush2.msra.mxu0 0.0
  %3241 = vmatprep.subr.mxu0 0.0
  %3242 = vmatpush2.msra.mxu0 0.0
  %3243 = vmatprep.subr.mxu0 0.0
  %3244 = vmatpush2.msra.mxu0 0.0
  %3245 = vmatprep.subr.mxu0 0.0
  %3246 = vmatpush2.msra.mxu0 0.0
  %3247 = vmatprep.subr.mxu0 0.0
  %3248 = vmatpush2.msra.mxu0 0.0
  %3249 = vmatprep.subr.mxu0 0.0
  %3250 = vmatpush2.msra.mxu0 0.0
  %3251 = vmatprep.subr.mxu0 0.0
  %3252 = vmatpush2.msra.mxu0 0.0
  %3253 = vmatprep.subr.mxu0 0.0
  %3254 = vmatpush2.msra.mxu0 0.0
  %3255 = vmatprep.subr.mxu0 0.0
  %3256 = vmatpush2.msra.mxu0 0.0
  %3257 = vmatprep.subr.mxu0 0.0
  %3258 = vmatpush2.msra.mxu0 0.0
  %3259 = vmatprep.subr.mxu0 0.0
  %3260 = vmatpush2.msra.mxu0 0.0
  %3261 = vmatprep.subr.mxu0 0.0
  %3262 = vmatpush2.msra.mxu0 0.0
  %3263 = vmatprep.subr.mxu0 0.0
  %3264 = vmatpush2.msra.mxu0 0.0
  %3265 = vmatprep.mubr.f32.mxu0 0.0
  %3266 = vmatmul.mubr.f32.gmra.mxu0 %v3200
  %v3267 = vpop.f32.mrf.mxu0
  %v3268 = vadd.f32 %v195, %v3267
  %v3269 = vpop.f32.mrf.mxu0
  %v3270 = vadd.f32 %v199, %v3269
  %3271 = vdwg.mxu0
  %3272 = vmatprep.subr.mxu0 0.0
  %3273 = vmatpush1.msra.mxu0 %v127
  %3274 = vmatprep.subr.mxu0 0.0
  %3275 = vmatpush1.msra.mxu0 %v124
  %3276 = vmatprep.subr.mxu0 0.0
  %3277 = vmatpush1.msra.mxu0 %v121
  %3278 = vmatprep.subr.mxu0 0.0
  %3279 = vmatpush1.msra.mxu0 %v118
  %3280 = vmatprep.subr.mxu0 0.0
  %3281 = vmatpush1.msra.mxu0 %v115
  %3282 = vmatprep.subr.mxu0 0.0
  %3283 = vmatpush1.msra.mxu0 %v112
  %3284 = vmatprep.subr.mxu0 0.0
  %3285 = vmatpush1.msra.mxu0 %v109
  %3286 = vmatprep.subr.mxu0 0.0
  %3287 = vmatpush1.msra.mxu0 %v106
  %3288 = vmatprep.subr.mxu0 0.0
  %3289 = vmatpush1.msra.mxu0 %v103
  %3290 = vmatprep.subr.mxu0 0.0
  %3291 = vmatpush1.msra.mxu0 %v100
  %3292 = vmatprep.subr.mxu0 0.0
  %3293 = vmatpush1.msra.mxu0 %v97
  %3294 = vmatprep.subr.mxu0 0.0
  %3295 = vmatpush1.msra.mxu0 %v94
  %3296 = vmatprep.subr.mxu0 0.0
  %3297 = vmatpush1.msra.mxu0 %v91
  %3298 = vmatprep.subr.mxu0 0.0
  %3299 = vmatpush1.msra.mxu0 %v88
  %3300 = vmatprep.subr.mxu0 0.0
  %3301 = vmatpush1.msra.mxu0 %v85
  %3302 = vmatprep.subr.mxu0 0.0
  %3303 = vmatpush1.msra.mxu0 %v82
  %3304 = vmatprep.subr.mxu0 0.0
  %3305 = vmatpush2.msra.mxu0 0.0
  %3306 = vmatprep.subr.mxu0 0.0
  %3307 = vmatpush2.msra.mxu0 0.0
  %3308 = vmatprep.subr.mxu0 0.0
  %3309 = vmatpush2.msra.mxu0 0.0
  %3310 = vmatprep.subr.mxu0 0.0
  %3311 = vmatpush2.msra.mxu0 0.0
  %3312 = vmatprep.subr.mxu0 0.0
  %3313 = vmatpush2.msra.mxu0 0.0
  %3314 = vmatprep.subr.mxu0 0.0
  %3315 = vmatpush2.msra.mxu0 0.0
  %3316 = vmatprep.subr.mxu0 0.0
  %3317 = vmatpush2.msra.mxu0 0.0
  %3318 = vmatprep.subr.mxu0 0.0
  %3319 = vmatpush2.msra.mxu0 0.0
  %3320 = vmatprep.subr.mxu0 0.0
  %3321 = vmatpush2.msra.mxu0 0.0
  %3322 = vmatprep.subr.mxu0 0.0
  %3323 = vmatpush2.msra.mxu0 0.0
  %3324 = vmatprep.subr.mxu0 0.0
  %3325 = vmatpush2.msra.mxu0 0.0
  %3326 = vmatprep.subr.mxu0 0.0
  %3327 = vmatpush2.msra.mxu0 0.0
  %3328 = vmatprep.subr.mxu0 0.0
  %3329 = vmatpush2.msra.mxu0 0.0
  %3330 = vmatprep.subr.mxu0 0.0
  %3331 = vmatpush2.msra.mxu0 0.0
  %3332 = vmatprep.subr.mxu0 0.0
  %3333 = vmatpush2.msra.mxu0 0.0
  %3334 = vmatprep.subr.mxu0 0.0
  %3335 = vmatpush2.msra.mxu0 0.0
  %3336 = vmatprep.mubr.f32.mxu0 0.0
  %3337 = vmatmul.mubr.f32.gmra.mxu0 %v3200
  %v3338 = vpop.f32.mrf.mxu0
  %v3339 = vadd.f32 %v203, %v3338
  %v3340 = vpop.f32.mrf.mxu0
  %3341 = vdwg.mxu0
  %3342 = vmatprep.subr.mxu0 %v174
  %3343 = vmatpush1.msra.mxu0 %v173
  %3344 = vmatprep.subr.mxu0 %v171
  %3345 = vmatpush1.msra.mxu0 %v170
  %3346 = vmatprep.subr.mxu0 %v168
  %3347 = vmatpush1.msra.mxu0 %v167
  %3348 = vmatprep.subr.mxu0 %v165
  %3349 = vmatpush1.msra.mxu0 %v164
  %3350 = vmatprep.subr.mxu0 %v162
  %3351 = vmatpush1.msra.mxu0 %v161
  %3352 = vmatprep.subr.mxu0 %v159
  %3353 = vmatpush1.msra.mxu0 %v158
  %3354 = vmatprep.subr.mxu0 %v156
  %3355 = vmatpush1.msra.mxu0 %v155
  %3356 = vmatprep.subr.mxu0 %v153
  %3357 = vmatpush1.msra.mxu0 %v152
  %3358 = vmatprep.subr.mxu0 %v150
  %3359 = vmatpush1.msra.mxu0 %v149
  %3360 = vmatprep.subr.mxu0 %v147
  %3361 = vmatpush1.msra.mxu0 %v146
  %3362 = vmatprep.subr.mxu0 %v144
  %3363 = vmatpush1.msra.mxu0 %v143
  %3364 = vmatprep.subr.mxu0 %v141
  %3365 = vmatpush1.msra.mxu0 %v140
  %3366 = vmatprep.subr.mxu0 %v138
  %3367 = vmatpush1.msra.mxu0 %v137
  %3368 = vmatprep.subr.mxu0 %v135
  %3369 = vmatpush1.msra.mxu0 %v134
  %3370 = vmatprep.subr.mxu0 %v132
  %3371 = vmatpush1.msra.mxu0 %v131
  %3372 = vmatprep.subr.mxu0 %v129
  %3373 = vmatpush1.msra.mxu0 %v128
  %3374 = vmatprep.subr.mxu0 0.0
  %3375 = vmatpush2.msra.mxu0 0.0
  %3376 = vmatprep.subr.mxu0 0.0
  %3377 = vmatpush2.msra.mxu0 0.0
  %3378 = vmatprep.subr.mxu0 0.0
  %3379 = vmatpush2.msra.mxu0 0.0
  %3380 = vmatprep.subr.mxu0 0.0
  %3381 = vmatpush2.msra.mxu0 0.0
  %3382 = vmatprep.subr.mxu0 0.0
  %3383 = vmatpush2.msra.mxu0 0.0
  %3384 = vmatprep.subr.mxu0 0.0
  %3385 = vmatpush2.msra.mxu0 0.0
  %3386 = vmatprep.subr.mxu0 0.0
  %3387 = vmatpush2.msra.mxu0 0.0
  %3388 = vmatprep.subr.mxu0 0.0
  %3389 = vmatpush2.msra.mxu0 0.0
  %3390 = vmatprep.subr.mxu0 0.0
  %3391 = vmatpush2.msra.mxu0 0.0
  %3392 = vmatprep.subr.mxu0 0.0
  %3393 = vmatpush2.msra.mxu0 0.0
  %3394 = vmatprep.subr.mxu0 0.0
  %3395 = vmatpush2.msra.mxu0 0.0
  %3396 = vmatprep.subr.mxu0 0.0
  %3397 = vmatpush2.msra.mxu0 0.0
  %3398 = vmatprep.subr.mxu0 0.0
  %3399 = vmatpush2.msra.mxu0 0.0
  %3400 = vmatprep.subr.mxu0 0.0
  %3401 = vmatpush2.msra.mxu0 0.0
  %3402 = vmatprep.subr.mxu0 0.0
  %3403 = vmatpush2.msra.mxu0 0.0
  %3404 = vmatprep.subr.mxu0 0.0
  %3405 = vmatpush2.msra.mxu0 0.0
  %3406 = vmatprep.mubr.f32.mxu0 0.0
  %3407 = vmatmul.mubr.f32.gmra.mxu0 %v3033
  %v3408 = vpop.f32.mrf.mxu0
  %v3409 = vadd.f32 0.0, %v3408
  %v3410 = vpop.f32.mrf.mxu0
  %v3411 = vadd.f32 0.0, %v3410
  %3412 = vdwg.mxu0
  %3413 = vmatprep.subr.mxu0 0.0
  %3414 = vmatpush1.msra.mxu0 %v175
  %3415 = vmatprep.subr.mxu0 0.0
  %3416 = vmatpush1.msra.mxu0 %v172
  %3417 = vmatprep.subr.mxu0 0.0
  %3418 = vmatpush1.msra.mxu0 %v169
  %3419 = vmatprep.subr.mxu0 0.0
  %3420 = vmatpush1.msra.mxu0 %v166
  %3421 = vmatprep.subr.mxu0 0.0
  %3422 = vmatpush1.msra.mxu0 %v163
  %3423 = vmatprep.subr.mxu0 0.0
  %3424 = vmatpush1.msra.mxu0 %v160
  %3425 = vmatprep.subr.mxu0 0.0
  %3426 = vmatpush1.msra.mxu0 %v157
  %3427 = vmatprep.subr.mxu0 0.0
  %3428 = vmatpush1.msra.mxu0 %v154
  %3429 = vmatprep.subr.mxu0 0.0
  %3430 = vmatpush1.msra.mxu0 %v151
  %3431 = vmatprep.subr.mxu0 0.0
  %3432 = vmatpush1.msra.mxu0 %v148
  %3433 = vmatprep.subr.mxu0 0.0
  %3434 = vmatpush1.msra.mxu0 %v145
  %3435 = vmatprep.subr.mxu0 0.0
  %3436 = vmatpush1.msra.mxu0 %v142
  %3437 = vmatprep.subr.mxu0 0.0
  %3438 = vmatpush1.msra.mxu0 %v139
  %3439 = vmatprep.subr.mxu0 0.0
  %3440 = vmatpush1.msra.mxu0 %v136
  %3441 = vmatprep.subr.mxu0 0.0
  %3442 = vmatpush1.msra.mxu0 %v133
  %3443 = vmatprep.subr.mxu0 0.0
  %3444 = vmatpush1.msra.mxu0 %v130
  %3445 = vmatprep.subr.mxu0 0.0
  %3446 = vmatpush2.msra.mxu0 0.0
  %3447 = vmatprep.subr.mxu0 0.0
  %3448 = vmatpush2.msra.mxu0 0.0
  %3449 = vmatprep.subr.mxu0 0.0
  %3450 = vmatpush2.msra.mxu0 0.0
  %3451 = vmatprep.subr.mxu0 0.0
  %3452 = vmatpush2.msra.mxu0 0.0
  %3453 = vmatprep.subr.mxu0 0.0
  %3454 = vmatpush2.msra.mxu0 0.0
  %3455 = vmatprep.subr.mxu0 0.0
  %3456 = vmatpush2.msra.mxu0 0.0
  %3457 = vmatprep.subr.mxu0 0.0
  %3458 = vmatpush2.msra.mxu0 0.0
  %3459 = vmatprep.subr.mxu0 0.0
  %3460 = vmatpush2.msra.mxu0 0.0
  %3461 = vmatprep.subr.mxu0 0.0
  %3462 = vmatpush2.msra.mxu0 0.0
  %3463 = vmatprep.subr.mxu0 0.0
  %3464 = vmatpush2.msra.mxu0 0.0
  %3465 = vmatprep.subr.mxu0 0.0
  %3466 = vmatpush2.msra.mxu0 0.0
  %3467 = vmatprep.subr.mxu0 0.0
  %3468 = vmatpush2.msra.mxu0 0.0
  %3469 = vmatprep.subr.mxu0 0.0
  %3470 = vmatpush2.msra.mxu0 0.0
  %3471 = vmatprep.subr.mxu0 0.0
  %3472 = vmatpush2.msra.mxu0 0.0
  %3473 = vmatprep.subr.mxu0 0.0
  %3474 = vmatpush2.msra.mxu0 0.0
  %3475 = vmatprep.subr.mxu0 0.0
  %3476 = vmatpush2.msra.mxu0 0.0
  %3477 = vmatprep.mubr.f32.mxu0 0.0
  %3478 = vmatmul.mubr.f32.gmra.mxu0 %v3033
  %v3479 = vpop.f32.mrf.mxu0
  %v3480 = vadd.f32 0.0, %v3479
  %v3481 = vpop.f32.mrf.mxu0
  %3482 = vdwg.mxu0
  %v3483 = vadd.f32 %v3268, %v3409
  %v3484 = vxor.u32 %v3483, 2147483648
  %v3485 = vmul.f32 %v3484, 1.442695
  %v3486 = vpow.pop %v3485
  %v3487 = vadd.f32 %v3486, 1.0
  %v3488 = vrcp.pop %v3487
  %v3489 = vmul.f32 1.0, %v3488
  %v3490 = vadd.f32 %v3270, %v3411
  %v3491 = vxor.u32 %v3490, 2147483648
  %v3492 = vmul.f32 %v3491, 1.442695
  %v3493 = vpow.pop %v3492
  %v3494 = vadd.f32 %v3493, 1.0
  %v3495 = vrcp.pop %v3494
  %v3496 = vmul.f32 1.0, %v3495
  %v3497 = vadd.f32 %v3480, %v188
  %v3498 = vmul.f32 %v3489, %v3497
  %v3499 = vadd.f32 %v3339, %v3498
  %v3500 = vtanh.pop %v3499
  %v3501 = vsub.f32 1.0, %v3496
  %v3502 = vmul.f32 %v3501, %v3500
  %v3503 = vmul.f32 %v3496, %v3033
  %v3504 = vadd.f32 %v3502, %v3503
  %s3505 = scalar_lea.vmem %s0, 168
  %v3506 = vld [vmem:[%s3505] sm:$0xff]
  %v3507 = vld [vmem:[%s3505 + $0x8] sm:$0xff]
  %v3508 = vld [vmem:[%s3505 + $0x10] sm:$0xff]
  %3509 = vmatprep.subr.mxu0 %v78
  %3510 = vmatpush1.msra.mxu0 %v77
  %3511 = vmatprep.subr.mxu0 %v75
  %3512 = vmatpush1.msra.mxu0 %v74
  %3513 = vmatprep.subr.mxu0 %v72
  %3514 = vmatpush1.msra.mxu0 %v71
  %3515 = vmatprep.subr.mxu0 %v69
  %3516 = vmatpush1.msra.mxu0 %v68
  %3517 = vmatprep.subr.mxu0 %v66
  %3518 = vmatpush1.msra.mxu0 %v65
  %3519 = vmatprep.subr.mxu0 %v63
  %3520 = vmatpush1.msra.mxu0 %v62
  %3521 = vmatprep.subr.mxu0 %v60
  %3522 = vmatpush1.msra.mxu0 %v59
  %3523 = vmatprep.subr.mxu0 %v57
  %3524 = vmatpush1.msra.mxu0 %v56
  %3525 = vmatprep.subr.mxu0 %v54
  %3526 = vmatpush1.msra.mxu0 %v53
  %3527 = vmatprep.subr.mxu0 %v51
  %3528 = vmatpush1.msra.mxu0 %v50
  %3529 = vmatprep.subr.mxu0 %v48
  %3530 = vmatpush1.msra.mxu0 %v47
  %3531 = vmatprep.subr.mxu0 %v45
  %3532 = vmatpush1.msra.mxu0 %v44
  %3533 = vmatprep.subr.mxu0 %v42
  %3534 = vmatpush1.msra.mxu0 %v41
  %3535 = vmatprep.subr.mxu0 %v39
  %3536 = vmatpush1.msra.mxu0 %v38
  %3537 = vmatprep.subr.mxu0 %v36
  %3538 = vmatpush1.msra.mxu0 %v35
  %3539 = vmatprep.subr.mxu0 %v33
  %3540 = vmatpush1.msra.mxu0 %v32
  %3541 = vmatprep.subr.mxu0 0.0
  %3542 = vmatpush2.msra.mxu0 0.0
  %3543 = vmatprep.subr.mxu0 0.0
  %3544 = vmatpush2.msra.mxu0 0.0
  %3545 = vmatprep.subr.mxu0 0.0
  %3546 = vmatpush2.msra.mxu0 0.0
  %3547 = vmatprep.subr.mxu0 0.0
  %3548 = vmatpush2.msra.mxu0 0.0
  %3549 = vmatprep.subr.mxu0 0.0
  %3550 = vmatpush2.msra.mxu0 0.0
  %3551 = vmatprep.subr.mxu0 0.0
  %3552 = vmatpush2.msra.mxu0 0.0
  %3553 = vmatprep.subr.mxu0 0.0
  %3554 = vmatpush2.msra.mxu0 0.0
  %3555 = vmatprep.subr.mxu0 0.0
  %3556 = vmatpush2.msra.mxu0 0.0
  %3557 = vmatprep.subr.mxu0 0.0
  %3558 = vmatpush2.msra.mxu0 0.0
  %3559 = vmatprep.subr.mxu0 0.0
  %3560 = vmatpush2.msra.mxu0 0.0
  %3561 = vmatprep.subr.mxu0 0.0
  %3562 = vmatpush2.msra.mxu0 0.0
  %3563 = vmatprep.subr.mxu0 0.0
  %3564 = vmatpush2.msra.mxu0 0.0
  %3565 = vmatprep.subr.mxu0 0.0
  %3566 = vmatpush2.msra.mxu0 0.0
  %3567 = vmatprep.subr.mxu0 0.0
  %3568 = vmatpush2.msra.mxu0 0.0
  %3569 = vmatprep.subr.mxu0 0.0
  %3570 = vmatpush2.msra.mxu0 0.0
  %3571 = vmatprep.subr.mxu0 0.0
  %3572 = vmatpush2.msra.mxu0 0.0
  %3573 = vmatprep.mubr.f32.mxu0 0.0
  %3574 = vmatmul.mubr.f32.gmra.mxu0 %v3200
  %v3575 = vpop.f32.mrf.mxu0
  %v3576 = vadd.f32 0.0, %v3575
  %v3577 = vpop.f32.mrf.mxu0
  %v3578 = vadd.f32 0.0, %v3577
  %3579 = vdwg.mxu0
  %3580 = vmatprep.subr.mxu0 0.0
  %3581 = vmatpush1.msra.mxu0 %v79
  %3582 = vmatprep.subr.mxu0 0.0
  %3583 = vmatpush1.msra.mxu0 %v76
  %3584 = vmatprep.subr.mxu0 0.0
  %3585 = vmatpush1.msra.mxu0 %v73
  %3586 = vmatprep.subr.mxu0 0.0
  %3587 = vmatpush1.msra.mxu0 %v70
  %3588 = vmatprep.subr.mxu0 0.0
  %3589 = vmatpush1.msra.mxu0 %v67
  %3590 = vmatprep.subr.mxu0 0.0
  %3591 = vmatpush1.msra.mxu0 %v64
  %3592 = vmatprep.subr.mxu0 0.0
  %3593 = vmatpush1.msra.mxu0 %v61
  %3594 = vmatprep.subr.mxu0 0.0
  %3595 = vmatpush1.msra.mxu0 %v58
  %3596 = vmatprep.subr.mxu0 0.0
  %3597 = vmatpush1.msra.mxu0 %v55
  %3598 = vmatprep.subr.mxu0 0.0
  %3599 = vmatpush1.msra.mxu0 %v52
  %3600 = vmatprep.subr.mxu0 0.0
  %3601 = vmatpush1.msra.mxu0 %v49
  %3602 = vmatprep.subr.mxu0 0.0
  %3603 = vmatpush1.msra.mxu0 %v46
  %3604 = vmatprep.subr.mxu0 0.0
  %3605 = vmatpush1.msra.mxu0 %v43
  %3606 = vmatprep.subr.mxu0 0.0
  %3607 = vmatpush1.msra.mxu0 %v40
  %3608 = vmatprep.subr.mxu0 0.0
  %3609 = vmatpush1.msra.mxu0 %v37
  %3610 = vmatprep.subr.mxu0 0.0
  %3611 = vmatpush1.msra.mxu0 %v34
  %3612 = vmatprep.subr.mxu0 0.0
  %3613 = vmatpush2.msra.mxu0 0.0
  %3614 = vmatprep.subr.mxu0 0.0
  %3615 = vmatpush2.msra.mxu0 0.0
  %3616 = vmatprep.subr.mxu0 0.0
  %3617 = vmatpush2.msra.mxu0 0.0
  %3618 = vmatprep.subr.mxu0 0.0
  %3619 = vmatpush2.msra.mxu0 0.0
  %3620 = vmatprep.subr.mxu0 0.0
  %3621 = vmatpush2.msra.mxu0 0.0
  %3622 = vmatprep.subr.mxu0 0.0
  %3623 = vmatpush2.msra.mxu0 0.0
  %3624 = vmatprep.subr.mxu0 0.0
  %3625 = vmatpush2.msra.mxu0 0.0
  %3626 = vmatprep.subr.mxu0 0.0
  %3627 = vmatpush2.msra.mxu0 0.0
  %3628 = vmatprep.subr.mxu0 0.0
  %3629 = vmatpush2.msra.mxu0 0.0
  %3630 = vmatprep.subr.mxu0 0.0
  %3631 = vmatpush2.msra.mxu0 0.0
  %3632 = vmatprep.subr.mxu0 0.0
  %3633 = vmatpush2.msra.mxu0 0.0
  %3634 = vmatprep.subr.mxu0 0.0
  %3635 = vmatpush2.msra.mxu0 0.0
  %3636 = vmatprep.subr.mxu0 0.0
  %3637 = vmatpush2.msra.mxu0 0.0
  %3638 = vmatprep.subr.mxu0 0.0
  %3639 = vmatpush2.msra.mxu0 0.0
  %3640 = vmatprep.subr.mxu0 0.0
  %3641 = vmatpush2.msra.mxu0 0.0
  %3642 = vmatprep.subr.mxu0 0.0
  %3643 = vmatpush2.msra.mxu0 0.0
  %3644 = vmatprep.mubr.f32.mxu0 0.0
  %3645 = vmatmul.mubr.f32.gmra.mxu0 %v3200
  %v3646 = vpop.f32.mrf.mxu0
  %v3647 = vadd.f32 0.0, %v3646
  %v3648 = vpop.f32.mrf.mxu0
  %3649 = vdwg.mxu0
  %v3650 = vadd.f32 %v3506, %v3576
  %v3651 = vxor.u32 %v3650, 2147483648
  %v3652 = vmul.f32 %v3651, 1.442695
  %v3653 = vpow.pop %v3652
  %v3654 = vadd.f32 %v3653, 1.0
  %v3655 = vrcp.pop %v3654
  %v3656 = vmul.f32 1.0, %v3655
  %v3657 = vadd.f32 %v3507, %v3578
  %v3658 = vxor.u32 %v3657, 2147483648
  %v3659 = vmul.f32 %v3658, 1.442695
  %v3660 = vpow.pop %v3659
  %v3661 = vadd.f32 %v3660, 1.0
  %v3662 = vrcp.pop %v3661
  %v3663 = vmul.f32 1.0, %v3662
  %v3664 = vadd.f32 %v3647, %v181
  %v3665 = vmul.f32 %v3656, %v3664
  %v3666 = vadd.f32 %v3508, %v3665
  %v3667 = vtanh.pop %v3666
  %v3668 = vsub.f32 1.0, %v3663
  %v3669 = vmul.f32 %v3668, %v3667
  %v3670 = vmul.f32 %v3663, %v3200
  %v3671 = vadd.f32 %v3669, %v3670
  %3672 = vmatprep.subr.mxu0 %v126
  %3673 = vmatpush1.msra.mxu0 %v125
  %3674 = vmatprep.subr.mxu0 %v123
  %3675 = vmatpush1.msra.mxu0 %v122
  %3676 = vmatprep.subr.mxu0 %v120
  %3677 = vmatpush1.msra.mxu0 %v119
  %3678 = vmatprep.subr.mxu0 %v117
  %3679 = vmatpush1.msra.mxu0 %v116
  %3680 = vmatprep.subr.mxu0 %v114
  %3681 = vmatpush1.msra.mxu0 %v113
  %3682 = vmatprep.subr.mxu0 %v111
  %3683 = vmatpush1.msra.mxu0 %v110
  %3684 = vmatprep.subr.mxu0 %v108
  %3685 = vmatpush1.msra.mxu0 %v107
  %3686 = vmatprep.subr.mxu0 %v105
  %3687 = vmatpush1.msra.mxu0 %v104
  %3688 = vmatprep.subr.mxu0 %v102
  %3689 = vmatpush1.msra.mxu0 %v101
  %3690 = vmatprep.subr.mxu0 %v99
  %3691 = vmatpush1.msra.mxu0 %v98
  %3692 = vmatprep.subr.mxu0 %v96
  %3693 = vmatpush1.msra.mxu0 %v95
  %3694 = vmatprep.subr.mxu0 %v93
  %3695 = vmatpush1.msra.mxu0 %v92
  %3696 = vmatprep.subr.mxu0 %v90
  %3697 = vmatpush1.msra.mxu0 %v89
  %3698 = vmatprep.subr.mxu0 %v87
  %3699 = vmatpush1.msra.mxu0 %v86
  %3700 = vmatprep.subr.mxu0 %v84
  %3701 = vmatpush1.msra.mxu0 %v83
  %3702 = vmatprep.subr.mxu0 %v81
  %3703 = vmatpush1.msra.mxu0 %v80
  %3704 = vmatprep.subr.mxu0 0.0
  %3705 = vmatpush2.msra.mxu0 0.0
  %3706 = vmatprep.subr.mxu0 0.0
  %3707 = vmatpush2.msra.mxu0 0.0
  %3708 = vmatprep.subr.mxu0 0.0
  %3709 = vmatpush2.msra.mxu0 0.0
  %3710 = vmatprep.subr.mxu0 0.0
  %3711 = vmatpush2.msra.mxu0 0.0
  %3712 = vmatprep.subr.mxu0 0.0
  %3713 = vmatpush2.msra.mxu0 0.0
  %3714 = vmatprep.subr.mxu0 0.0
  %3715 = vmatpush2.msra.mxu0 0.0
  %3716 = vmatprep.subr.mxu0 0.0
  %3717 = vmatpush2.msra.mxu0 0.0
  %3718 = vmatprep.subr.mxu0 0.0
  %3719 = vmatpush2.msra.mxu0 0.0
  %3720 = vmatprep.subr.mxu0 0.0
  %3721 = vmatpush2.msra.mxu0 0.0
  %3722 = vmatprep.subr.mxu0 0.0
  %3723 = vmatpush2.msra.mxu0 0.0
  %3724 = vmatprep.subr.mxu0 0.0
  %3725 = vmatpush2.msra.mxu0 0.0
  %3726 = vmatprep.subr.mxu0 0.0
  %3727 = vmatpush2.msra.mxu0 0.0
  %3728 = vmatprep.subr.mxu0 0.0
  %3729 = vmatpush2.msra.mxu0 0.0
  %3730 = vmatprep.subr.mxu0 0.0
  %3731 = vmatpush2.msra.mxu0 0.0
  %3732 = vmatprep.subr.mxu0 0.0
  %3733 = vmatpush2.msra.mxu0 0.0
  %3734 = vmatprep.subr.mxu0 0.0
  %3735 = vmatpush2.msra.mxu0 0.0
  %3736 = vmatprep.mubr.f32.mxu0 0.0
  %3737 = vmatmul.mubr.f32.gmra.mxu0 %v3671
  %v3738 = vpop.f32.mrf.mxu0
  %v3739 = vadd.f32 %v195, %v3738
  %v3740 = vpop.f32.mrf.mxu0
  %v3741 = vadd.f32 %v199, %v3740
  %3742 = vdwg.mxu0
  %3743 = vmatprep.subr.mxu0 0.0
  %3744 = vmatpush1.msra.mxu0 %v127
  %3745 = vmatprep.subr.mxu0 0.0
  %3746 = vmatpush1.msra.mxu0 %v124
  %3747 = vmatprep.subr.mxu0 0.0
  %3748 = vmatpush1.msra.mxu0 %v121
  %3749 = vmatprep.subr.mxu0 0.0
  %3750 = vmatpush1.msra.mxu0 %v118
  %3751 = vmatprep.subr.mxu0 0.0
  %3752 = vmatpush1.msra.mxu0 %v115
  %3753 = vmatprep.subr.mxu0 0.0
  %3754 = vmatpush1.msra.mxu0 %v112
  %3755 = vmatprep.subr.mxu0 0.0
  %3756 = vmatpush1.msra.mxu0 %v109
  %3757 = vmatprep.subr.mxu0 0.0
  %3758 = vmatpush1.msra.mxu0 %v106
  %3759 = vmatprep.subr.mxu0 0.0
  %3760 = vmatpush1.msra.mxu0 %v103
  %3761 = vmatprep.subr.mxu0 0.0
  %3762 = vmatpush1.msra.mxu0 %v100
  %3763 = vmatprep.subr.mxu0 0.0
  %3764 = vmatpush1.msra.mxu0 %v97
  %3765 = vmatprep.subr.mxu0 0.0
  %3766 = vmatpush1.msra.mxu0 %v94
  %3767 = vmatprep.subr.mxu0 0.0
  %3768 = vmatpush1.msra.mxu0 %v91
  %3769 = vmatprep.subr.mxu0 0.0
  %3770 = vmatpush1.msra.mxu0 %v88
  %3771 = vmatprep.subr.mxu0 0.0
  %3772 = vmatpush1.msra.mxu0 %v85
  %3773 = vmatprep.subr.mxu0 0.0
  %3774 = vmatpush1.msra.mxu0 %v82
  %3775 = vmatprep.subr.mxu0 0.0
  %3776 = vmatpush2.msra.mxu0 0.0
  %3777 = vmatprep.subr.mxu0 0.0
  %3778 = vmatpush2.msra.mxu0 0.0
  %3779 = vmatprep.subr.mxu0 0.0
  %3780 = vmatpush2.msra.mxu0 0.0
  %3781 = vmatprep.subr.mxu0 0.0
  %3782 = vmatpush2.msra.mxu0 0.0
  %3783 = vmatprep.subr.mxu0 0.0
  %3784 = vmatpush2.msra.mxu0 0.0
  %3785 = vmatprep.subr.mxu0 0.0
  %3786 = vmatpush2.msra.mxu0 0.0
  %3787 = vmatprep.subr.mxu0 0.0
  %3788 = vmatpush2.msra.mxu0 0.0
  %3789 = vmatprep.subr.mxu0 0.0
  %3790 = vmatpush2.msra.mxu0 0.0
  %3791 = vmatprep.subr.mxu0 0.0
  %3792 = vmatpush2.msra.mxu0 0.0
  %3793 = vmatprep.subr.mxu0 0.0
  %3794 = vmatpush2.msra.mxu0 0.0
  %3795 = vmatprep.subr.mxu0 0.0
  %3796 = vmatpush2.msra.mxu0 0.0
  %3797 = vmatprep.subr.mxu0 0.0
  %3798 = vmatpush2.msra.mxu0 0.0
  %3799 = vmatprep.subr.mxu0 0.0
  %3800 = vmatpush2.msra.mxu0 0.0
  %3801 = vmatprep.subr.mxu0 0.0
  %3802 = vmatpush2.msra.mxu0 0.0
  %3803 = vmatprep.subr.mxu0 0.0
  %3804 = vmatpush2.msra.mxu0 0.0
  %3805 = vmatprep.subr.mxu0 0.0
  %3806 = vmatpush2.msra.mxu0 0.0
  %3807 = vmatprep.mubr.f32.mxu0 0.0
  %3808 = vmatmul.mubr.f32.gmra.mxu0 %v3671
  %v3809 = vpop.f32.mrf.mxu0
  %v3810 = vadd.f32 %v203, %v3809
  %v3811 = vpop.f32.mrf.mxu0
  %3812 = vdwg.mxu0
  %3813 = vmatprep.subr.mxu0 %v174
  %3814 = vmatpush1.msra.mxu0 %v173
  %3815 = vmatprep.subr.mxu0 %v171
  %3816 = vmatpush1.msra.mxu0 %v170
  %3817 = vmatprep.subr.mxu0 %v168
  %3818 = vmatpush1.msra.mxu0 %v167
  %3819 = vmatprep.subr.mxu0 %v165
  %3820 = vmatpush1.msra.mxu0 %v164
  %3821 = vmatprep.subr.mxu0 %v162
  %3822 = vmatpush1.msra.mxu0 %v161
  %3823 = vmatprep.subr.mxu0 %v159
  %3824 = vmatpush1.msra.mxu0 %v158
  %3825 = vmatprep.subr.mxu0 %v156
  %3826 = vmatpush1.msra.mxu0 %v155
  %3827 = vmatprep.subr.mxu0 %v153
  %3828 = vmatpush1.msra.mxu0 %v152
  %3829 = vmatprep.subr.mxu0 %v150
  %3830 = vmatpush1.msra.mxu0 %v149
  %3831 = vmatprep.subr.mxu0 %v147
  %3832 = vmatpush1.msra.mxu0 %v146
  %3833 = vmatprep.subr.mxu0 %v144
  %3834 = vmatpush1.msra.mxu0 %v143
  %3835 = vmatprep.subr.mxu0 %v141
  %3836 = vmatpush1.msra.mxu0 %v140
  %3837 = vmatprep.subr.mxu0 %v138
  %3838 = vmatpush1.msra.mxu0 %v137
  %3839 = vmatprep.subr.mxu0 %v135
  %3840 = vmatpush1.msra.mxu0 %v134
  %3841 = vmatprep.subr.mxu0 %v132
  %3842 = vmatpush1.msra.mxu0 %v131
  %3843 = vmatprep.subr.mxu0 %v129
  %3844 = vmatpush1.msra.mxu0 %v128
  %3845 = vmatprep.subr.mxu0 0.0
  %3846 = vmatpush2.msra.mxu0 0.0
  %3847 = vmatprep.subr.mxu0 0.0
  %3848 = vmatpush2.msra.mxu0 0.0
  %3849 = vmatprep.subr.mxu0 0.0
  %3850 = vmatpush2.msra.mxu0 0.0
  %3851 = vmatprep.subr.mxu0 0.0
  %3852 = vmatpush2.msra.mxu0 0.0
  %3853 = vmatprep.subr.mxu0 0.0
  %3854 = vmatpush2.msra.mxu0 0.0
  %3855 = vmatprep.subr.mxu0 0.0
  %3856 = vmatpush2.msra.mxu0 0.0
  %3857 = vmatprep.subr.mxu0 0.0
  %3858 = vmatpush2.msra.mxu0 0.0
  %3859 = vmatprep.subr.mxu0 0.0
  %3860 = vmatpush2.msra.mxu0 0.0
  %3861 = vmatprep.subr.mxu0 0.0
  %3862 = vmatpush2.msra.mxu0 0.0
  %3863 = vmatprep.subr.mxu0 0.0
  %3864 = vmatpush2.msra.mxu0 0.0
  %3865 = vmatprep.subr.mxu0 0.0
  %3866 = vmatpush2.msra.mxu0 0.0
  %3867 = vmatprep.subr.mxu0 0.0
  %3868 = vmatpush2.msra.mxu0 0.0
  %3869 = vmatprep.subr.mxu0 0.0
  %3870 = vmatpush2.msra.mxu0 0.0
  %3871 = vmatprep.subr.mxu0 0.0
  %3872 = vmatpush2.msra.mxu0 0.0
  %3873 = vmatprep.subr.mxu0 0.0
  %3874 = vmatpush2.msra.mxu0 0.0
  %3875 = vmatprep.subr.mxu0 0.0
  %3876 = vmatpush2.msra.mxu0 0.0
  %3877 = vmatprep.mubr.f32.mxu0 0.0
  %3878 = vmatmul.mubr.f32.gmra.mxu0 %v3504
  %v3879 = vpop.f32.mrf.mxu0
  %v3880 = vadd.f32 0.0, %v3879
  %v3881 = vpop.f32.mrf.mxu0
  %v3882 = vadd.f32 0.0, %v3881
  %3883 = vdwg.mxu0
  %3884 = vmatprep.subr.mxu0 0.0
  %3885 = vmatpush1.msra.mxu0 %v175
  %3886 = vmatprep.subr.mxu0 0.0
  %3887 = vmatpush1.msra.mxu0 %v172
  %3888 = vmatprep.subr.mxu0 0.0
  %3889 = vmatpush1.msra.mxu0 %v169
  %3890 = vmatprep.subr.mxu0 0.0
  %3891 = vmatpush1.msra.mxu0 %v166
  %3892 = vmatprep.subr.mxu0 0.0
  %3893 = vmatpush1.msra.mxu0 %v163
  %3894 = vmatprep.subr.mxu0 0.0
  %3895 = vmatpush1.msra.mxu0 %v160
  %3896 = vmatprep.subr.mxu0 0.0
  %3897 = vmatpush1.msra.mxu0 %v157
  %3898 = vmatprep.subr.mxu0 0.0
  %3899 = vmatpush1.msra.mxu0 %v154
  %3900 = vmatprep.subr.mxu0 0.0
  %3901 = vmatpush1.msra.mxu0 %v151
  %3902 = vmatprep.subr.mxu0 0.0
  %3903 = vmatpush1.msra.mxu0 %v148
  %3904 = vmatprep.subr.mxu0 0.0
  %3905 = vmatpush1.msra.mxu0 %v145
  %3906 = vmatprep.subr.mxu0 0.0
  %3907 = vmatpush1.msra.mxu0 %v142
  %3908 = vmatprep.subr.mxu0 0.0
  %3909 = vmatpush1.msra.mxu0 %v139
  %3910 = vmatprep.subr.mxu0 0.0
  %3911 = vmatpush1.msra.mxu0 %v136
  %3912 = vmatprep.subr.mxu0 0.0
  %3913 = vmatpush1.msra.mxu0 %v133
  %3914 = vmatprep.subr.mxu0 0.0
  %3915 = vmatpush1.msra.mxu0 %v130
  %3916 = vmatprep.subr.mxu0 0.0
  %3917 = vmatpush2.msra.mxu0 0.0
  %3918 = vmatprep.subr.mxu0 0.0
  %3919 = vmatpush2.msra.mxu0 0.0
  %3920 = vmatprep.subr.mxu0 0.0
  %3921 = vmatpush2.msra.mxu0 0.0
  %3922 = vmatprep.subr.mxu0 0.0
  %3923 = vmatpush2.msra.mxu0 0.0
  %3924 = vmatprep.subr.mxu0 0.0
  %3925 = vmatpush2.msra.mxu0 0.0
  %3926 = vmatprep.subr.mxu0 0.0
  %3927 = vmatpush2.msra.mxu0 0.0
  %3928 = vmatprep.subr.mxu0 0.0
  %3929 = vmatpush2.msra.mxu0 0.0
  %3930 = vmatprep.subr.mxu0 0.0
  %3931 = vmatpush2.msra.mxu0 0.0
  %3932 = vmatprep.subr.mxu0 0.0
  %3933 = vmatpush2.msra.mxu0 0.0
  %3934 = vmatprep.subr.mxu0 0.0
  %3935 = vmatpush2.msra.mxu0 0.0
  %3936 = vmatprep.subr.mxu0 0.0
  %3937 = vmatpush2.msra.mxu0 0.0
  %3938 = vmatprep.subr.mxu0 0.0
  %3939 = vmatpush2.msra.mxu0 0.0
  %3940 = vmatprep.subr.mxu0 0.0
  %3941 = vmatpush2.msra.mxu0 0.0
  %3942 = vmatprep.subr.mxu0 0.0
  %3943 = vmatpush2.msra.mxu0 0.0
  %3944 = vmatprep.subr.mxu0 0.0
  %3945 = vmatpush2.msra.mxu0 0.0
  %3946 = vmatprep.subr.mxu0 0.0
  %3947 = vmatpush2.msra.mxu0 0.0
  %3948 = vmatprep.mubr.f32.mxu0 0.0
  %3949 = vmatmul.mubr.f32.gmra.mxu0 %v3504
  %v3950 = vpop.f32.mrf.mxu0
  %v3951 = vadd.f32 0.0, %v3950
  %v3952 = vpop.f32.mrf.mxu0
  %3953 = vdwg.mxu0
  %v3954 = vadd.f32 %v3739, %v3880
  %v3955 = vxor.u32 %v3954, 2147483648
  %v3956 = vmul.f32 %v3955, 1.442695
  %v3957 = vpow.pop %v3956
  %v3958 = vadd.f32 %v3957, 1.0
  %v3959 = vrcp.pop %v3958
  %v3960 = vmul.f32 1.0, %v3959
  %v3961 = vadd.f32 %v3741, %v3882
  %v3962 = vxor.u32 %v3961, 2147483648
  %v3963 = vmul.f32 %v3962, 1.442695
  %v3964 = vpow.pop %v3963
  %v3965 = vadd.f32 %v3964, 1.0
  %v3966 = vrcp.pop %v3965
  %v3967 = vmul.f32 1.0, %v3966
  %v3968 = vadd.f32 %v3951, %v188
  %v3969 = vmul.f32 %v3960, %v3968
  %v3970 = vadd.f32 %v3810, %v3969
  %v3971 = vtanh.pop %v3970
  %v3972 = vsub.f32 1.0, %v3967
  %v3973 = vmul.f32 %v3972, %v3971
  %v3974 = vmul.f32 %v3967, %v3504
  %v3975 = vadd.f32 %v3973, %v3974
  %3976 = vst [vmem:[#allocation2] sm:$0xff] %v3671
  %3977 = vst [vmem:[#allocation3] sm:$0xff] %v3975
  // Predicated region
  $region34: #{encoder_forward.3} parent=0 // pred_check
    %p3978 = pneg %p26
  $region35: #{encoder_forward.3} parent=0 // pred_check_branch
    %3980 = sbr.rel (%p3978) target = $region37
  $region36: #{encoder_forward.3} parent=0 // pred_region
    %3981 = vst [vmem:[%s7] sm:$0xff] %v3975
  $region37: #{encoder_forward.3} parent=0 // pred_fallthru
    _
  // Predicated region
  $region38: #{encoder_forward.3} parent=0 // pred_check
    _
  $region39: #{encoder_forward.3} parent=0 // pred_check_branch
    %3983 = sbr.rel (0) target = $region41
  $region40: #{encoder_forward.3} parent=0 // pred_region
    _
  $region41: #{encoder_forward.3} parent=0 // pred_fallthru
    _
  // Predicated region
  $region42: #{encoder_forward.3} parent=0 // pred_check
    _
  $region43: #{encoder_forward.3} parent=0 // pred_check_branch
    %3985 = sbr.rel (0) target = $region45
  $region44: #{encoder_forward.3} parent=0 // pred_region
    _
  $region45: #{encoder_forward.3} parent=0 // pred_fallthru
    _

</llo_original>
